<compile_context>
chip_gen: v7x
topology: tpu7x:2x2x1
jax: 0.10.0
libtpu: 0.0.40
codegen_flags: <defaults>
</compile_context>

<pallas_src>
import functools

import numpy as np
import jax
import jax.numpy as jnp
from jax.experimental import pallas as pl
from jax.experimental.pallas import tpu as pltpu

LANE = 128
SUB = 8
VMEM_LIMIT = 32 * 1024 * 1024   # explicit and well under v7x's 64 MiB physical VMEM


def _round_up(x, m):
    return (x + m - 1) // m * m


def _pick_tiles(mp):
    """Column tiling: prefer the largest lane tile (per-grid-step overhead dominates at
    dim=8); only split when the column range is big enough for >=2 large blocks, which
    also feeds the v7x megacore via 'parallel' semantics. mp is a multiple of 128."""
    if mp <= 1024:
        return mp, 1
    for tm in range(1024, 127, -128):
        if mp % tm == 0:
            return tm, mp // tm
    return mp, 1


# ----------------------------------------------------------------------------
# Canonical layout helpers (XLA glue, executed once per module boundary)
# ----------------------------------------------------------------------------
def to_canonical(v, N, H, W):
    """(C, N, H, W) -> (Cp, Mp) f32: channels padded to a multiple of 8 (sublanes),
    flattened zero-padded spatial grid padded to a multiple of 128 (lanes)."""
    C = v.shape[0]
    Cp = _round_up(max(C, 1), SUB)
    Hp, Wp = H + 2, W + 2
    M = N * Hp * Wp
    Mp = _round_up(M, LANE)
    vp = jnp.pad(v, ((0, Cp - C), (0, 0), (1, 1), (1, 1)))
    vp = vp.reshape(Cp, M)
    return jnp.pad(vp, ((0, 0), (0, Mp - M))).astype(jnp.float32)


def from_canonical(a, N, H, W):
    Hp, Wp = H + 2, W + 2
    C = a.shape[0]
    return a[:, :N * Hp * Wp].reshape(C, N, Hp, Wp)[:, :, 1:H + 1, 1:W + 1]


@functools.lru_cache(maxsize=None)
def _mask_np(N, H, W, guard):
    """0/1 validity mask over the (optionally guard-padded) flat canonical grid."""
    Hp, Wp = H + 2, W + 2
    M = N * Hp * Wp
    Mp = _round_up(M, LANE)
    m = np.zeros((N, Hp, Wp), np.float32)
    m[:, 1:H + 1, 1:W + 1] = 1.0
    flat = np.zeros((1, Mp + 2 * guard), np.float32)
    flat[0, guard:guard + M] = m.reshape(-1)
    return flat


def _stage_mask(N, H, W, guard=0):
    # bf16 is exact for 0/1 and halves the mask's HBM/DMA footprint.
    return jnp.asarray(_mask_np(N, H, W, guard), dtype=jnp.bfloat16)


# ----------------------------------------------------------------------------
# Pallas kernels
# ----------------------------------------------------------------------------
def _resblock_kernel(*refs, offs1, offs2, tm, grid, ext2, skip_conv):
    """Fused ResBlock: h = relu(conv1(x)+b1)*mask ; out = (conv2(h)+b2 + skip)*mask.
    conv1 is computed over the output tile plus an ext2 halo so conv2 reads h straight
    from a VMEM scratch. Each conv is ONE K-packed matmul (K = taps * Cin)."""
    if skip_conv:
        (x1_ref, w1_ref, b1_ref, w2_ref, b2_ref,
         wsk_ref, bsk_ref, sk_ref, mask_ref, o_ref, h_ref) = refs
    else:
        (x1_ref, w1_ref, b1_ref, w2_ref, b2_ref,
         sk_ref, mask_ref, o_ref, h_ref) = refs
        wsk_ref = bsk_ref = None

    base = 0 if grid == 1 else pl.multiple_of(pl.program_id(0) * tm, LANE)
    wh = tm + 2 * ext2

    # ---- conv1 (+bias, ReLU, zero-pad mask), single K = len(offs1)*Cin matmul ----
    p1 = jnp.concatenate(
        [x1_ref[:, pl.ds(base + off, wh)] for off in offs1], axis=0)
    h = jnp.dot(w1_ref[...], p1.astype(jnp.bfloat16),
                preferred_element_type=jnp.float32)
    h = jnp.maximum(h + b1_ref[...], 0.0)
    h = h * mask_ref[:, pl.ds(base, wh)].astype(jnp.float32)
    h_ref[...] = h

    # ---- conv2 (+bias), single K = 9*Cout matmul on the VMEM-resident h ----
    p2 = jnp.concatenate([h_ref[:, off:off + tm] for off in offs2], axis=0)
    acc = jnp.dot(w2_ref[...], p2.astype(jnp.bfloat16),
                  preferred_element_type=jnp.float32) + b2_ref[...]

    # ---- residual branch fused into the f32 epilogue ----
    s = sk_ref[...]
    if skip_conv:
        acc = acc + jnp.dot(wsk_ref[...], s.astype(jnp.bfloat16),
                            preferred_element_type=jnp.float32) + bsk_ref[...]
    else:
        acc = acc + s

    acc = acc * mask_ref[:, pl.ds(base + ext2, tm)].astype(jnp.float32)
    o_ref[...] = acc


def _conv_skip_kernel(x_ref, w_ref, b_ref, sk_ref, mask_ref, o_ref, *,
                      offs, tm, grid, relu):
    """Single 3x3 conv (K = 9*Cin packed matmul) + bias [+ReLU] + fused skip + mask."""
    base = 0 if grid == 1 else pl.multiple_of(pl.program_id(0) * tm, LANE)
    p = jnp.concatenate(
        [x_ref[:, pl.ds(base + off, tm)] for off in offs], axis=0)
    acc = jnp.dot(w_ref[...], p.astype(jnp.bfloat16),
                  preferred_element_type=jnp.float32) + b_ref[...]
    if relu:
        acc = jnp.maximum(acc, 0.0)
    acc = acc + sk_ref[...]
    acc = acc * mask_ref[...].astype(jnp.float32)
    o_ref[...] = acc


# ----------------------------------------------------------------------------
# pallas_call wrappers
# ----------------------------------------------------------------------------
def fused_resblock(p, x1_can, sk_can, N, Ho, Wo, *, ext1, offs1):
    """One pallas_call for a whole ResBlock.
    x1_can: (K1, Mp) conv1 input in output-res canonical order (shifted-tap input for
            stride 1, pre-patched 9*Cin input for stride 2); sk_can: skip source."""
    skip_conv = "wsk" in p
    cout = p["w2"].shape[0]
    Wpo = Wo + 2
    ext2 = Wpo + 1
    offs2 = tuple(dy * Wpo + dx for dy in range(3) for dx in range(3))
    Mp = x1_can.shape[1]
    tm, grid = _pick_tiles(Mp)
    guard1 = ext1 + ext2

    x1g = jnp.pad(x1_can, ((0, 0), (guard1, guard1)))
    maskg = _stage_mask(N, Ho, Wo, guard=ext2)
    csk = sk_can.shape[0]

    args = [x1g, p["w1"], p["b1"], p["w2"], p["b2"]]
    in_specs = [
        pl.BlockSpec(x1g.shape, lambda i: (0, 0)),        # whole guarded conv1 input
        pl.BlockSpec(p["w1"].shape, lambda i: (0, 0)),
        pl.BlockSpec(p["b1"].shape, lambda i: (0, 0)),
        pl.BlockSpec(p["w2"].shape, lambda i: (0, 0)),
        pl.BlockSpec(p["b2"].shape, lambda i: (0, 0)),
    ]
    if skip_conv:
        args += [p["wsk"], p["bsk"]]
        in_specs += [pl.BlockSpec(p["wsk"].shape, lambda i: (0, 0)),
                     pl.BlockSpec(p["bsk"].shape, lambda i: (0, 0))]
    args += [sk_can, maskg]
    in_specs += [pl.BlockSpec((csk, tm), lambda i: (0, i)),
                 pl.BlockSpec(maskg.shape, lambda i: (0, 0))]

    k1 = p["w1"].shape[1]
    flops = 2 * Mp * cout * (k1 + 9 * cout + (csk if skip_conv else 0))
    bytes_accessed = sum(int(a.size * a.dtype.itemsize) for a in args) + Mp * cout * 4

    kernel = functools.partial(_resblock_kernel, offs1=tuple(offs1), offs2=offs2,
                               tm=tm, grid=grid, ext2=ext2, skip_conv=skip_conv)
    return pl.pallas_call(
        kernel,
        out_shape=jax.ShapeDtypeStruct((cout, Mp), jnp.float32),
        grid=(grid,),
        in_specs=in_specs,
        out_specs=pl.BlockSpec((cout, tm), lambda i: (0, i)),
        scratch_shapes=[pltpu.VMEM((cout, tm + 2 * ext2), jnp.float32)],
        compiler_params=pltpu.CompilerParams(
            dimension_semantics=("parallel",),
            vmem_limit_bytes=VMEM_LIMIT),
        cost_estimate=pl.CostEstimate(flops=int(flops), transcendentals=0,
                                      bytes_accessed=int(bytes_accessed)),
    )(*args)


def fused_conv_skip(x_can, w, b, sk_can, N, H, W, *, relu=False):
    """Stride-1 3x3 conv with bias [+ReLU] and a fused residual add (RIR long skip)."""
    Wp = W + 2
    ext = Wp + 1
    offs = tuple(dy * Wp + dx for dy in range(3) for dx in range(3))
    Mp = x_can.shape[1]
    tm, grid = _pick_tiles(Mp)
    cout = w.shape[0]

    xg = jnp.pad(x_can, ((0, 0), (ext, ext)))
    mask = _stage_mask(N, H, W)
    args = [xg, w, b, sk_can, mask]

    flops = 2 * Mp * cout * w.shape[1]
    bytes_accessed = sum(int(a.size * a.dtype.itemsize) for a in args) + Mp * cout * 4

    kernel = functools.partial(_conv_skip_kernel, offs=offs, tm=tm, grid=grid, relu=relu)
    return pl.pallas_call(
        kernel,
        out_shape=jax.ShapeDtypeStruct((cout, Mp), jnp.float32),
        grid=(grid,),
        in_specs=[pl.BlockSpec(xg.shape, lambda i: (0, 0)),
                  pl.BlockSpec(w.shape, lambda i: (0, 0)),
                  pl.BlockSpec(b.shape, lambda i: (0, 0)),
                  pl.BlockSpec((sk_can.shape[0], tm), lambda i: (0, i)),
                  pl.BlockSpec((1, tm), lambda i: (0, i))],
        out_specs=pl.BlockSpec((cout, tm), lambda i: (0, i)),
        compiler_params=pltpu.CompilerParams(
            dimension_semantics=("parallel",),
            vmem_limit_bytes=VMEM_LIMIT),
        cost_estimate=pl.CostEstimate(flops=int(flops), transcendentals=0,
                                      bytes_accessed=int(bytes_accessed)),
    )(*args)


# ----------------------------------------------------------------------------
# Module forward passes
# ----------------------------------------------------------------------------
def resblock_s1(p, x_can, N, H, W):
    Wp = W + 2
    ext = Wp + 1
    offs = tuple(dy * Wp + dx for dy in range(3) for dx in range(3))
    return fused_resblock(p, x_can, x_can, N, H, W, ext1=ext, offs1=offs)


def resblock_s2(p, x_can, N, H, W):
    cin = x_can.shape[0]
    Hp, Wp = H + 2, W + 2
    Ho, Wo = H // 2, W // 2
    xpad = x_can[:, :N * Hp * Wp].reshape(cin, N, Hp, Wp)
    # XLA-side im2col for the stride-2 conv1, written directly into the half-res
    # canonical order so the whole ResBlock still runs as ONE fused kernel.
    # TODO(synk): replace with an in-kernel polyphase decomposition for large inputs.
    parts = [xpad[:, :, dy:dy + 2 * Ho:2, dx:dx + 2 * Wo:2]
             for dy in range(3) for dx in range(3)]
    patches = to_canonical(jnp.concatenate(parts, axis=0), N, Ho, Wo)
    x_sub = to_canonical(xpad[:, :, 1:1 + 2 * Ho:2, 1:1 + 2 * Wo:2], N, Ho, Wo)
    return fused_resblock(p, patches, x_sub, N, Ho, Wo, ext1=0, offs1=(0,))


def rir(p, x_can, N, H, W):
    y = x_can
    for bp in p["blocks"]:
        y = resblock_s1(bp, y, N, H, W)
    # trailing 3x3 conv with the RIR long skip fused into its epilogue
    return fused_conv_skip(y, p["w"], p["b"], x_can, N, H, W, relu=False)


@functools.lru_cache(maxsize=None)
def _interp_matrix_np(out_size, in_size):
    """PyTorch bilinear (align_corners=False) as an (out, in) interpolation matrix."""
    scale = in_size / out_size
    c = (np.arange(out_size, dtype=np.float64) + 0.5) * scale - 0.5
    c = np.maximum(c, 0.0)
    i0 = np.minimum(np.floor(c).astype(np.int64), in_size - 1)
    i1 = np.minimum(i0 + 1, in_size - 1)
    f = (c - i0).astype(np.float32)
    R = np.zeros((out_size, in_size), np.float32)
    R[np.arange(out_size), i0] += 1.0 - f
    R[np.arange(out_size), i1] += f
    return R


def bilinear_resize(x, out_h, out_w):
    """(C, N, H, W) -> (C, N, out_h, out_w) via separable interpolation-matrix matmuls
    (MXU-friendly, no lane-axis gathers).
    TODO(synk): the exact 2x upsample before upconv could be folded into its conv taps."""
    Ry = jnp.asarray(_interp_matrix_np(out_h, x.shape[2]))
    Rx = jnp.asarray(_interp_matrix_np(out_w, x.shape[3]))
    y = jnp.einsum('oh,cnhw->cnow', Ry, x.astype(jnp.float32))
    return jnp.einsum('cnow,pw->cnop', y, Rx)


def meblock_forward(params, x, scale=4):
    N, C, H, W = x.shape
    x_cf = jnp.transpose(x, (1, 0, 2, 3)).astype(jnp.float32)   # single entry transpose

    H4, W4 = H // scale, W // scale
    H8, W8 = H4 // 2, W4 // 2
    H16, W16 = H8 // 2, W8 // 2
    Hs, Ws = H // 2, W // 2

    # ---- motion path: x(1/scale) -> ResBlock(s2) -> RIR -> ResBlock(s2) -> x(scale*2)
    xm = bilinear_resize(x_cf, H4, W4)
    xm = to_canonical(xm, N, H4, W4)
    xm = resblock_s2(params["m_rb1"], xm, N, H4, W4)
    xm = rir(params["m_rir"], xm, N, H8, W8)
    xm = resblock_s2(params["m_rb2"], xm, N, H8, W8)
    xm = from_canonical(xm, N, H16, W16)
    xm = bilinear_resize(xm, H16 * scale * 2, W16 * scale * 2)

    # ---- spatial path: ResBlock(s2) -> RIR
    xs = to_canonical(x_cf, N, H, W)
    xs = resblock_s2(params["s_rb1"], xs, N, H, W)
    xs = rir(params["s_rir"], xs, N, Hs, Ws)
    xs = from_canonical(xs, N, Hs, Ws)

    # ---- fuse: channel concat -> ResUpsample(2*dim -> dim, x2)
    cat = jnp.concatenate([xm, xs], axis=0)
    up = bilinear_resize(cat, H, W)
    up = to_canonical(up, N, H, W)
    out = resblock_s1(params["upconv"], up, N, H, W)
    out = from_canonical(out, N, H, W)
    return jnp.transpose(out, (1, 0, 2, 3))                     # single exit transpose


# ----------------------------------------------------------------------------
# Parameter init (deterministic, synthetic) -- packs weights into kernel layouts once.
# ----------------------------------------------------------------------------
def conv_params(key, cin, cout, k):
    wkey, bkey = jax.random.split(key)
    fan_in = cin * k * k
    w = jax.random.normal(wkey, (cout, cin, k, k), jnp.float32) / np.sqrt(fan_in)
    b = 0.01 * jax.random.normal(bkey, (cout,), jnp.float32)
    return w, b


def _pack_w(w):
    """(Cout,Cin,kh,kw) -> (Cout, kh*kw*Cin_pad8) bf16, K ordered as (tap, channel)."""
    cout, cin, kh, kw = w.shape
    cin_p = _round_up(cin, SUB)
    w = jnp.pad(w, ((0, 0), (0, cin_p - cin), (0, 0), (0, 0)))
    return jnp.transpose(w, (0, 2, 3, 1)).reshape(cout, kh * kw * cin_p).astype(jnp.bfloat16)


def _pack_b(b):
    return b.reshape(-1, 1).astype(jnp.float32)


def init_resblock(key, cin, cout, stride):
    k1, k2, k3 = jax.random.split(key, 3)
    w1, b1 = conv_params(k1, cin, cout, 3)
    w2, b2 = conv_params(k2, cout, cout, 3)
    p = {"w1": _pack_w(w1), "b1": _pack_b(b1),
         "w2": _pack_w(w2), "b2": _pack_b(b2)}
    if stride == 2 or cin != cout:
        ws, bs = conv_params(k3, cin, cout, 1)
        p["wsk"] = _pack_w(ws)
        p["bsk"] = _pack_b(bs)
    return p


def init_rir(key, dim, n_blocks=2):
    keys = jax.random.split(key, n_blocks + 1)
    w, b = conv_params(keys[-1], dim, dim, 3)
    return {"blocks": [init_resblock(k, dim, dim, 1) for k in keys[:-1]],
            "w": _pack_w(w), "b": _pack_b(b)}


def init_meblock(key, in_channel, dim):
    ks = jax.random.split(key, 6)
    return {
        "m_rb1": init_resblock(ks[0], in_channel, dim, 2),
        "m_rir": init_rir(ks[1], dim),
        "m_rb2": init_resblock(ks[2], dim, dim, 2),
        "s_rb1": init_resblock(ks[3], in_channel, dim, 2),
        "s_rir": init_rir(ks[4], dim),
        "upconv": init_resblock(ks[5], 2 * dim, dim, 1),
    }


# ----------------------------------------------------------------------------
if __name__ == "__main__":
    key = jax.random.PRNGKey(0)
    kx, kp = jax.random.split(key)

    batch, in_channel, H, W = 2, 4, 16, 16
    dim, scale = 8, 4

    x = jax.random.normal(kx, (batch, in_channel, H, W), jnp.float32)
    params = init_meblock(kp, in_channel, dim)

    fwd = jax.jit(functools.partial(meblock_forward, scale=scale))
    out = jax.block_until_ready(fwd(params, x))

    assert out.shape == (batch, dim, H, W), out.shape
    assert bool(jnp.all(jnp.isfinite(out)))
    print("KERNEL_OK")
</pallas_src>

<mosaic_0001>
module attributes {stable_mosaic.version = 11 : i64} {
  func.func @_resblock_kernel(%arg0: i32, %arg1: memref<72x278xf32, #tpu.memory_space<vmem>>, %arg2: memref<8x72xbf16, #tpu.memory_space<vmem>>, %arg3: memref<8x1xf32, #tpu.memory_space<vmem>>, %arg4: memref<8x72xbf16, #tpu.memory_space<vmem>>, %arg5: memref<8x1xf32, #tpu.memory_space<vmem>>, %arg6: memref<8x8xbf16, #tpu.memory_space<vmem>>, %arg7: memref<8x1xf32, #tpu.memory_space<vmem>>, %arg8: memref<8x256xf32, #tpu.memory_space<vmem>>, %arg9: memref<1x278xbf16, #tpu.memory_space<vmem>>, %arg10: memref<8x256xf32, #tpu.memory_space<vmem>>, %arg11: memref<8x278xf32, #tpu.memory_space<vmem>>) attributes {dimension_semantics = [#tpu.dimension_semantics<parallel>], iteration_bounds = array<i64: 1>, scalar_prefetch = 0 : i64, scratch_operands = 1 : i64, tpu.core_type = #tpu.core_type<tc>, window_params = [{pipeline_mode = #tpu.pipeline_mode<synchronous>, transform_indices = @transform_0, window_bounds = array<i64: 72, 278>}, {pipeline_mode = #tpu.pipeline_mode<synchronous>, transform_indices = @transform_1, window_bounds = array<i64: 8, 72>}, {pipeline_mode = #tpu.pipeline_mode<synchronous>, transform_indices = @transform_2, window_bounds = array<i64: 8, 1>}, {pipeline_mode = #tpu.pipeline_mode<synchronous>, transform_indices = @transform_3, window_bounds = array<i64: 8, 72>}, {pipeline_mode = #tpu.pipeline_mode<synchronous>, transform_indices = @transform_4, window_bounds = array<i64: 8, 1>}, {pipeline_mode = #tpu.pipeline_mode<synchronous>, transform_indices = @transform_5, window_bounds = array<i64: 8, 8>}, {pipeline_mode = #tpu.pipeline_mode<synchronous>, transform_indices = @transform_6, window_bounds = array<i64: 8, 1>}, {transform_indices = @transform_7, window_bounds = array<i64: 8, 256>}, {pipeline_mode = #tpu.pipeline_mode<synchronous>, transform_indices = @transform_8, window_bounds = array<i64: 1, 278>}, {transform_indices = @transform_9, window_bounds = array<i64: 8, 256>}]} {
    %c0 = arith.constant 0 : index
    %c0_0 = arith.constant 0 : index
    %0 = vector.load %arg1[%c0, %c0_0] : memref<72x278xf32, #tpu.memory_space<vmem>>, vector<72x278xf32>
    %c0_1 = arith.constant 0 : index
    %c0_2 = arith.constant 0 : index
    %1 = vector.load %arg2[%c0_1, %c0_2] : memref<8x72xbf16, #tpu.memory_space<vmem>>, vector<8x72xbf16>
    %2 = arith.truncf %0 : vector<72x278xf32> to vector<72x278xbf16>
    %cst = arith.constant dense<0.000000e+00> : vector<8x278xf32>
    %3 = tpu.matmul %1, %2, %cst {dimension_numbers = #tpu.dot_dimension_numbers<[1], [0], [0], [1], [0, 0, 1, 1], [], []>} : vector<8x72xbf16>, vector<72x278xbf16>, vector<8x278xf32> -> vector<8x278xf32>
    %c0_3 = arith.constant 0 : index
    %c0_4 = arith.constant 0 : index
    %4 = vector.load %arg3[%c0_3, %c0_4] : memref<8x1xf32, #tpu.memory_space<vmem>>, vector<8x1xf32>
    %5 = vector.broadcast %4 : vector<8x1xf32> to vector<8x278xf32>
    %6 = arith.addf %3, %5 : vector<8x278xf32>
    %cst_5 = arith.constant 0.000000e+00 : f32
    %7 = vector.broadcast %cst_5 : f32 to vector<8x278xf32>
    %8 = arith.maximumf %6, %7 : vector<8x278xf32>
    %c0_6 = arith.constant 0 : index
    %c0_7 = arith.constant 0 : index
    %9 = vector.load %arg9[%c0_6, %c0_7] : memref<1x278xbf16, #tpu.memory_space<vmem>>, vector<1x278xbf16>
    %10 = arith.extf %9 : vector<1x278xbf16> to vector<1x278xf32>
    %11 = vector.broadcast %10 : vector<1x278xf32> to vector<8x278xf32>
    %12 = arith.mulf %8, %11 : vector<8x278xf32>
    %c0_8 = arith.constant 0 : index
    %c0_9 = arith.constant 0 : index
    %13 = vector.load %arg11[%c0_8, %c0_9] : memref<8x278xf32, #tpu.memory_space<vmem>>, vector<8x278xf32>
    tpu.vector_store %arg11[%c0_8, %c0_9], %12 {strides = array<i32>} : memref<8x278xf32, #tpu.memory_space<vmem>>, vector<8x278xf32>,
    %c0_10 = arith.constant 0 : index
    %c0_11 = arith.constant 0 : index
    %14 = vector.load %arg11[%c0_10, %c0_11] : memref<8x278xf32, #tpu.memory_space<vmem>>, vector<8x256xf32>
    %c0_12 = arith.constant 0 : index
    %c1 = arith.constant 1 : index
    %15 = vector.load %arg11[%c0_12, %c1] : memref<8x278xf32, #tpu.memory_space<vmem>>, vector<8x256xf32>
    %c0_13 = arith.constant 0 : index
    %c2 = arith.constant 2 : index
    %16 = vector.load %arg11[%c0_13, %c2] : memref<8x278xf32, #tpu.memory_space<vmem>>, vector<8x256xf32>
    %c0_14 = arith.constant 0 : index
    %c10 = arith.constant 10 : index
    %17 = vector.load %arg11[%c0_14, %c10] : memref<8x278xf32, #tpu.memory_space<vmem>>, vector<8x256xf32>
    %c0_15 = arith.constant 0 : index
    %c11 = arith.constant 11 : index
    %18 = vector.load %arg11[%c0_15, %c11] : memref<8x278xf32, #tpu.memory_space<vmem>>, vector<8x256xf32>
    %c0_16 = arith.constant 0 : index
    %c12 = arith.constant 12 : index
    %19 = vector.load %arg11[%c0_16, %c12] : memref<8x278xf32, #tpu.memory_space<vmem>>, vector<8x256xf32>
    %c0_17 = arith.constant 0 : index
    %c20 = arith.constant 20 : index
    %20 = vector.load %arg11[%c0_17, %c20] : memref<8x278xf32, #tpu.memory_space<vmem>>, vector<8x256xf32>
    %c0_18 = arith.constant 0 : index
    %c21 = arith.constant 21 : index
    %21 = vector.load %arg11[%c0_18, %c21] : memref<8x278xf32, #tpu.memory_space<vmem>>, vector<8x256xf32>
    %c0_19 = arith.constant 0 : index
    %c22 = arith.constant 22 : index
    %22 = vector.load %arg11[%c0_19, %c22] : memref<8x278xf32, #tpu.memory_space<vmem>>, vector<8x256xf32>
    %23 = tpu.concatenate %14, %15, %16, %17, %18, %19, %20, %21, %22 in 0 : vector<8x256xf32>, vector<8x256xf32>, vector<8x256xf32>, vector<8x256xf32>, vector<8x256xf32>, vector<8x256xf32>, vector<8x256xf32>, vector<8x256xf32>, vector<8x256xf32> -> vector<72x256xf32>
    %c0_20 = arith.constant 0 : index
    %c0_21 = arith.constant 0 : index
    %24 = vector.load %arg4[%c0_20, %c0_21] : memref<8x72xbf16, #tpu.memory_space<vmem>>, vector<8x72xbf16>
    %25 = arith.truncf %23 : vector<72x256xf32> to vector<72x256xbf16>
    %cst_22 = arith.constant dense<0.000000e+00> : vector<8x256xf32>
    %26 = tpu.matmul %24, %25, %cst_22 {dimension_numbers = #tpu.dot_dimension_numbers<[1], [0], [0], [1], [0, 0, 1, 1], [], []>} : vector<8x72xbf16>, vector<72x256xbf16>, vector<8x256xf32> -> vector<8x256xf32>
    %c0_23 = arith.constant 0 : index
    %c0_24 = arith.constant 0 : index
    %27 = vector.load %arg5[%c0_23, %c0_24] : memref<8x1xf32, #tpu.memory_space<vmem>>, vector<8x1xf32>
    %28 = vector.broadcast %27 : vector<8x1xf32> to vector<8x256xf32>
    %29 = arith.addf %26, %28 : vector<8x256xf32>
    %c0_25 = arith.constant 0 : index
    %c0_26 = arith.constant 0 : index
    %30 = vector.load %arg8[%c0_25, %c0_26] : memref<8x256xf32, #tpu.memory_space<vmem>>, vector<8x256xf32>
    %c0_27 = arith.constant 0 : index
    %c0_28 = arith.constant 0 : index
    %31 = vector.load %arg6[%c0_27, %c0_28] : memref<8x8xbf16, #tpu.memory_space<vmem>>, vector<8x8xbf16>
    %32 = arith.truncf %30 : vector<8x256xf32> to vector<8x256xbf16>
    %cst_29 = arith.constant dense<0.000000e+00> : vector<8x256xf32>
    %33 = tpu.matmul %31, %32, %cst_29 {dimension_numbers = #tpu.dot_dimension_numbers<[1], [0], [0], [1], [0, 0, 1, 1], [], []>} : vector<8x8xbf16>, vector<8x256xbf16>, vector<8x256xf32> -> vector<8x256xf32>
    %34 = arith.addf %29, %33 : vector<8x256xf32>
    %c0_30 = arith.constant 0 : index
    %c0_31 = arith.constant 0 : index
    %35 = vector.load %arg7[%c0_30, %c0_31] : memref<8x1xf32, #tpu.memory_space<vmem>>, vector<8x1xf32>
    %36 = vector.broadcast %35 : vector<8x1xf32> to vector<8x256xf32>
    %37 = arith.addf %34, %36 : vector<8x256xf32>
    %c0_32 = arith.constant 0 : index
    %c11_33 = arith.constant 11 : index
    %38 = vector.load %arg9[%c0_32, %c11_33] : memref<1x278xbf16, #tpu.memory_space<vmem>>, vector<1x256xbf16>
    %39 = arith.extf %38 : vector<1x256xbf16> to vector<1x256xf32>
    %40 = vector.broadcast %39 : vector<1x256xf32> to vector<8x256xf32>
    %41 = arith.mulf %37, %40 : vector<8x256xf32>
    %c0_34 = arith.constant 0 : index
    %c0_35 = arith.constant 0 : index
    %42 = vector.load %arg10[%c0_34, %c0_35] : memref<8x256xf32, #tpu.memory_space<vmem>>, vector<8x256xf32>
    tpu.vector_store %arg10[%c0_34, %c0_35], %41 {strides = array<i32>} : memref<8x256xf32, #tpu.memory_space<vmem>>, vector<8x256xf32>,
    return
  }
  func.func @transform_0(%arg0: i32) -> (i32, i32) {
    %c0_i32 = arith.constant 0 : i32
    %c0_i32_0 = arith.constant 0 : i32
    %c0_i32_1 = arith.constant 0 : i32
    return %c0_i32, %c0_i32_0 : i32, i32
  }
  func.func @transform_1(%arg0: i32) -> (i32, i32) {
    %c0_i32 = arith.constant 0 : i32
    %c0_i32_0 = arith.constant 0 : i32
    %c0_i32_1 = arith.constant 0 : i32
    return %c0_i32, %c0_i32_0 : i32, i32
  }
  func.func @transform_2(%arg0: i32) -> (i32, i32) {
    %c0_i32 = arith.constant 0 : i32
    %c0_i32_0 = arith.constant 0 : i32
    %c0_i32_1 = arith.constant 0 : i32
    return %c0_i32, %c0_i32_0 : i32, i32
  }
  func.func @transform_3(%arg0: i32) -> (i32, i32) {
    %c0_i32 = arith.constant 0 : i32
    %c0_i32_0 = arith.constant 0 : i32
    %c0_i32_1 = arith.constant 0 : i32
    return %c0_i32, %c0_i32_0 : i32, i32
  }
  func.func @transform_4(%arg0: i32) -> (i32, i32) {
    %c0_i32 = arith.constant 0 : i32
    %c0_i32_0 = arith.constant 0 : i32
    %c0_i32_1 = arith.constant 0 : i32
    return %c0_i32, %c0_i32_0 : i32, i32
  }
  func.func @transform_5(%arg0: i32) -> (i32, i32) {
    %c0_i32 = arith.constant 0 : i32
    %c0_i32_0 = arith.constant 0 : i32
    %c0_i32_1 = arith.constant 0 : i32
    return %c0_i32, %c0_i32_0 : i32, i32
  }
  func.func @transform_6(%arg0: i32) -> (i32, i32) {
    %c0_i32 = arith.constant 0 : i32
    %c0_i32_0 = arith.constant 0 : i32
    %c0_i32_1 = arith.constant 0 : i32
    return %c0_i32, %c0_i32_0 : i32, i32
  }
  func.func @transform_7(%arg0: i32) -> (i32, i32) {
    %c0_i32 = arith.constant 0 : i32
    %c0_i32_0 = arith.constant 0 : i32
    return %c0_i32, %arg0 : i32, i32
  }
  func.func @transform_8(%arg0: i32) -> (i32, i32) {
    %c0_i32 = arith.constant 0 : i32
    %c0_i32_0 = arith.constant 0 : i32
    %c0_i32_1 = arith.constant 0 : i32
    return %c0_i32, %c0_i32_0 : i32, i32
  }
  func.func @transform_9(%arg0: i32) -> (i32, i32) {
    %c0_i32 = arith.constant 0 : i32
    %c0_i32_0 = arith.constant 0 : i32
    return %c0_i32, %arg0 : i32, i32
  }
}

module attributes {stable_mosaic.version = 11 : i64} {
  func.func @_resblock_kernel(%arg0: i32, %arg1: memref<8x300xf32, #tpu.memory_space<vmem>>, %arg2: memref<8x72xbf16, #tpu.memory_space<vmem>>, %arg3: memref<8x1xf32, #tpu.memory_space<vmem>>, %arg4: memref<8x72xbf16, #tpu.memory_space<vmem>>, %arg5: memref<8x1xf32, #tpu.memory_space<vmem>>, %arg6: memref<8x256xf32, #tpu.memory_space<vmem>>, %arg7: memref<1x278xbf16, #tpu.memory_space<vmem>>, %arg8: memref<8x256xf32, #tpu.memory_space<vmem>>, %arg9: memref<8x278xf32, #tpu.memory_space<vmem>>) attributes {dimension_semantics = [#tpu.dimension_semantics<parallel>], iteration_bounds = array<i64: 1>, scalar_prefetch = 0 : i64, scratch_operands = 1 : i64, tpu.core_type = #tpu.core_type<tc>, window_params = [{pipeline_mode = #tpu.pipeline_mode<synchronous>, transform_indices = @transform_0, window_bounds = array<i64: 8, 300>}, {pipeline_mode = #tpu.pipeline_mode<synchronous>, transform_indices = @transform_1, window_bounds = array<i64: 8, 72>}, {pipeline_mode = #tpu.pipeline_mode<synchronous>, transform_indices = @transform_2, window_bounds = array<i64: 8, 1>}, {pipeline_mode = #tpu.pipeline_mode<synchronous>, transform_indices = @transform_3, window_bounds = array<i64: 8, 72>}, {pipeline_mode = #tpu.pipeline_mode<synchronous>, transform_indices = @transform_4, window_bounds = array<i64: 8, 1>}, {transform_indices = @transform_5, window_bounds = array<i64: 8, 256>}, {pipeline_mode = #tpu.pipeline_mode<synchronous>, transform_indices = @transform_6, window_bounds = array<i64: 1, 278>}, {transform_indices = @transform_7, window_bounds = array<i64: 8, 256>}]} {
    %c0 = arith.constant 0 : index
    %c0_0 = arith.constant 0 : index
    %0 = vector.load %arg1[%c0, %c0_0] : memref<8x300xf32, #tpu.memory_space<vmem>>, vector<8x278xf32>
    %c0_1 = arith.constant 0 : index
    %c1 = arith.constant 1 : index
    %1 = vector.load %arg1[%c0_1, %c1] : memref<8x300xf32, #tpu.memory_space<vmem>>, vector<8x278xf32>
    %c0_2 = arith.constant 0 : index
    %c2 = arith.constant 2 : index
    %2 = vector.load %arg1[%c0_2, %c2] : memref<8x300xf32, #tpu.memory_space<vmem>>, vector<8x278xf32>
    %c0_3 = arith.constant 0 : index
    %c10 = arith.constant 10 : index
    %3 = vector.load %arg1[%c0_3, %c10] : memref<8x300xf32, #tpu.memory_space<vmem>>, vector<8x278xf32>
    %c0_4 = arith.constant 0 : index
    %c11 = arith.constant 11 : index
    %4 = vector.load %arg1[%c0_4, %c11] : memref<8x300xf32, #tpu.memory_space<vmem>>, vector<8x278xf32>
    %c0_5 = arith.constant 0 : index
    %c12 = arith.constant 12 : index
    %5 = vector.load %arg1[%c0_5, %c12] : memref<8x300xf32, #tpu.memory_space<vmem>>, vector<8x278xf32>
    %c0_6 = arith.constant 0 : index
    %c20 = arith.constant 20 : index
    %6 = vector.load %arg1[%c0_6, %c20] : memref<8x300xf32, #tpu.memory_space<vmem>>, vector<8x278xf32>
    %c0_7 = arith.constant 0 : index
    %c21 = arith.constant 21 : index
    %7 = vector.load %arg1[%c0_7, %c21] : memref<8x300xf32, #tpu.memory_space<vmem>>, vector<8x278xf32>
    %c0_8 = arith.constant 0 : index
    %c22 = arith.constant 22 : index
    %8 = vector.load %arg1[%c0_8, %c22] : memref<8x300xf32, #tpu.memory_space<vmem>>, vector<8x278xf32>
    %9 = tpu.concatenate %0, %1, %2, %3, %4, %5, %6, %7, %8 in 0 : vector<8x278xf32>, vector<8x278xf32>, vector<8x278xf32>, vector<8x278xf32>, vector<8x278xf32>, vector<8x278xf32>, vector<8x278xf32>, vector<8x278xf32>, vector<8x278xf32> -> vector<72x278xf32>
    %c0_9 = arith.constant 0 : index
    %c0_10 = arith.constant 0 : index
    %10 = vector.load %arg2[%c0_9, %c0_10] : memref<8x72xbf16, #tpu.memory_space<vmem>>, vector<8x72xbf16>
    %11 = arith.truncf %9 : vector<72x278xf32> to vector<72x278xbf16>
    %cst = arith.constant dense<0.000000e+00> : vector<8x278xf32>
    %12 = tpu.matmul %10, %11, %cst {dimension_numbers = #tpu.dot_dimension_numbers<[1], [0], [0], [1], [0, 0, 1, 1], [], []>} : vector<8x72xbf16>, vector<72x278xbf16>, vector<8x278xf32> -> vector<8x278xf32>
    %c0_11 = arith.constant 0 : index
    %c0_12 = arith.constant 0 : index
    %13 = vector.load %arg3[%c0_11, %c0_12] : memref<8x1xf32, #tpu.memory_space<vmem>>, vector<8x1xf32>
    %14 = vector.broadcast %13 : vector<8x1xf32> to vector<8x278xf32>
    %15 = arith.addf %12, %14 : vector<8x278xf32>
    %cst_13 = arith.constant 0.000000e+00 : f32
    %16 = vector.broadcast %cst_13 : f32 to vector<8x278xf32>
    %17 = arith.maximumf %15, %16 : vector<8x278xf32>
    %c0_14 = arith.constant 0 : index
    %c0_15 = arith.constant 0 : index
    %18 = vector.load %arg7[%c0_14, %c0_15] : memref<1x278xbf16, #tpu.memory_space<vmem>>, vector<1x278xbf16>
    %19 = arith.extf %18 : vector<1x278xbf16> to vector<1x278xf32>
    %20 = vector.broadcast %19 : vector<1x278xf32> to vector<8x278xf32>
    %21 = arith.mulf %17, %20 : vector<8x278xf32>
    %c0_16 = arith.constant 0 : index
    %c0_17 = arith.constant 0 : index
    %22 = vector.load %arg9[%c0_16, %c0_17] : memref<8x278xf32, #tpu.memory_space<vmem>>, vector<8x278xf32>
    tpu.vector_store %arg9[%c0_16, %c0_17], %21 {strides = array<i32>} : memref<8x278xf32, #tpu.memory_space<vmem>>, vector<8x278xf32>,
    %c0_18 = arith.constant 0 : index
    %c0_19 = arith.constant 0 : index
    %23 = vector.load %arg9[%c0_18, %c0_19] : memref<8x278xf32, #tpu.memory_space<vmem>>, vector<8x256xf32>
    %c0_20 = arith.constant 0 : index
    %c1_21 = arith.constant 1 : index
    %24 = vector.load %arg9[%c0_20, %c1_21] : memref<8x278xf32, #tpu.memory_space<vmem>>, vector<8x256xf32>
    %c0_22 = arith.constant 0 : index
    %c2_23 = arith.constant 2 : index
    %25 = vector.load %arg9[%c0_22, %c2_23] : memref<8x278xf32, #tpu.memory_space<vmem>>, vector<8x256xf32>
    %c0_24 = arith.constant 0 : index
    %c10_25 = arith.constant 10 : index
    %26 = vector.load %arg9[%c0_24, %c10_25] : memref<8x278xf32, #tpu.memory_space<vmem>>, vector<8x256xf32>
    %c0_26 = arith.constant 0 : index
    %c11_27 = arith.constant 11 : index
    %27 = vector.load %arg9[%c0_26, %c11_27] : memref<8x278xf32, #tpu.memory_space<vmem>>, vector<8x256xf32>
    %c0_28 = arith.constant 0 : index
    %c12_29 = arith.constant 12 : index
    %28 = vector.load %arg9[%c0_28, %c12_29] : memref<8x278xf32, #tpu.memory_space<vmem>>, vector<8x256xf32>
    %c0_30 = arith.constant 0 : index
    %c20_31 = arith.constant 20 : index
    %29 = vector.load %arg9[%c0_30, %c20_31] : memref<8x278xf32, #tpu.memory_space<vmem>>, vector<8x256xf32>
    %c0_32 = arith.constant 0 : index
    %c21_33 = arith.constant 21 : index
    %30 = vector.load %arg9[%c0_32, %c21_33] : memref<8x278xf32, #tpu.memory_space<vmem>>, vector<8x256xf32>
    %c0_34 = arith.constant 0 : index
    %c22_35 = arith.constant 22 : index
    %31 = vector.load %arg9[%c0_34, %c22_35] : memref<8x278xf32, #tpu.memory_space<vmem>>, vector<8x256xf32>
    %32 = tpu.concatenate %23, %24, %25, %26, %27, %28, %29, %30, %31 in 0 : vector<8x256xf32>, vector<8x256xf32>, vector<8x256xf32>, vector<8x256xf32>, vector<8x256xf32>, vector<8x256xf32>, vector<8x256xf32>, vector<8x256xf32>, vector<8x256xf32> -> vector<72x256xf32>
    %c0_36 = arith.constant 0 : index
    %c0_37 = arith.constant 0 : index
    %33 = vector.load %arg4[%c0_36, %c0_37] : memref<8x72xbf16, #tpu.memory_space<vmem>>, vector<8x72xbf16>
    %34 = arith.truncf %32 : vector<72x256xf32> to vector<72x256xbf16>
    %cst_38 = arith.constant dense<0.000000e+00> : vector<8x256xf32>
    %35 = tpu.matmul %33, %34, %cst_38 {dimension_numbers = #tpu.dot_dimension_numbers<[1], [0], [0], [1], [0, 0, 1, 1], [], []>} : vector<8x72xbf16>, vector<72x256xbf16>, vector<8x256xf32> -> vector<8x256xf32>
    %c0_39 = arith.constant 0 : index
    %c0_40 = arith.constant 0 : index
    %36 = vector.load %arg5[%c0_39, %c0_40] : memref<8x1xf32, #tpu.memory_space<vmem>>, vector<8x1xf32>
    %37 = vector.broadcast %36 : vector<8x1xf32> to vector<8x256xf32>
    %38 = arith.addf %35, %37 : vector<8x256xf32>
    %c0_41 = arith.constant 0 : index
    %c0_42 = arith.constant 0 : index
    %39 = vector.load %arg6[%c0_41, %c0_42] : memref<8x256xf32, #tpu.memory_space<vmem>>, vector<8x256xf32>
    %40 = arith.addf %38, %39 : vector<8x256xf32>
    %c0_43 = arith.constant 0 : index
    %c11_44 = arith.constant 11 : index
    %41 = vector.load %arg7[%c0_43, %c11_44] : memref<1x278xbf16, #tpu.memory_space<vmem>>, vector<1x256xbf16>
    %42 = arith.extf %41 : vector<1x256xbf16> to vector<1x256xf32>
    %43 = vector.broadcast %42 : vector<1x256xf32> to vector<8x256xf32>
    %44 = arith.mulf %40, %43 : vector<8x256xf32>
    %c0_45 = arith.constant 0 : index
    %c0_46 = arith.constant 0 : index
    %45 = vector.load %arg8[%c0_45, %c0_46] : memref<8x256xf32, #tpu.memory_space<vmem>>, vector<8x256xf32>
    tpu.vector_store %arg8[%c0_45, %c0_46], %44 {strides = array<i32>} : memref<8x256xf32, #tpu.memory_space<vmem>>, vector<8x256xf32>,
    return
  }
  func.func @transform_0(%arg0: i32) -> (i32, i32) {
    %c0_i32 = arith.constant 0 : i32
    %c0_i32_0 = arith.constant 0 : i32
    %c0_i32_1 = arith.constant 0 : i32
    return %c0_i32, %c0_i32_0 : i32, i32
  }
  func.func @transform_1(%arg0: i32) -> (i32, i32) {
    %c0_i32 = arith.constant 0 : i32
    %c0_i32_0 = arith.constant 0 : i32
    %c0_i32_1 = arith.constant 0 : i32
    return %c0_i32, %c0_i32_0 : i32, i32
  }
  func.func @transform_2(%arg0: i32) -> (i32, i32) {
    %c0_i32 = arith.constant 0 : i32
    %c0_i32_0 = arith.constant 0 : i32
    %c0_i32_1 = arith.constant 0 : i32
    return %c0_i32, %c0_i32_0 : i32, i32
  }
  func.func @transform_3(%arg0: i32) -> (i32, i32) {
    %c0_i32 = arith.constant 0 : i32
    %c0_i32_0 = arith.constant 0 : i32
    %c0_i32_1 = arith.constant 0 : i32
    return %c0_i32, %c0_i32_0 : i32, i32
  }
  func.func @transform_4(%arg0: i32) -> (i32, i32) {
    %c0_i32 = arith.constant 0 : i32
    %c0_i32_0 = arith.constant 0 : i32
    %c0_i32_1 = arith.constant 0 : i32
    return %c0_i32, %c0_i32_0 : i32, i32
  }
  func.func @transform_5(%arg0: i32) -> (i32, i32) {
    %c0_i32 = arith.constant 0 : i32
    %c0_i32_0 = arith.constant 0 : i32
    return %c0_i32, %arg0 : i32, i32
  }
  func.func @transform_6(%arg0: i32) -> (i32, i32) {
    %c0_i32 = arith.constant 0 : i32
    %c0_i32_0 = arith.constant 0 : i32
    %c0_i32_1 = arith.constant 0 : i32
    return %c0_i32, %c0_i32_0 : i32, i32
  }
  func.func @transform_7(%arg0: i32) -> (i32, i32) {
    %c0_i32 = arith.constant 0 : i32
    %c0_i32_0 = arith.constant 0 : i32
    return %c0_i32, %arg0 : i32, i32
  }
}

module attributes {stable_mosaic.version = 11 : i64} {
  func.func @_conv_skip_kernel(%arg0: i32, %arg1: memref<8x278xf32, #tpu.memory_space<vmem>>, %arg2: memref<8x72xbf16, #tpu.memory_space<vmem>>, %arg3: memref<8x1xf32, #tpu.memory_space<vmem>>, %arg4: memref<8x256xf32, #tpu.memory_space<vmem>>, %arg5: memref<1x256xbf16, #tpu.memory_space<vmem>>, %arg6: memref<8x256xf32, #tpu.memory_space<vmem>>) attributes {dimension_semantics = [#tpu.dimension_semantics<parallel>], iteration_bounds = array<i64: 1>, scalar_prefetch = 0 : i64, scratch_operands = 0 : i64, tpu.core_type = #tpu.core_type<tc>, window_params = [{pipeline_mode = #tpu.pipeline_mode<synchronous>, transform_indices = @transform_0, window_bounds = array<i64: 8, 278>}, {pipeline_mode = #tpu.pipeline_mode<synchronous>, transform_indices = @transform_1, window_bounds = array<i64: 8, 72>}, {pipeline_mode = #tpu.pipeline_mode<synchronous>, transform_indices = @transform_2, window_bounds = array<i64: 8, 1>}, {transform_indices = @transform_3, window_bounds = array<i64: 8, 256>}, {transform_indices = @transform_4, window_bounds = array<i64: 1, 256>}, {transform_indices = @transform_5, window_bounds = array<i64: 8, 256>}]} {
    %c0 = arith.constant 0 : index
    %c0_0 = arith.constant 0 : index
    %0 = vector.load %arg1[%c0, %c0_0] : memref<8x278xf32, #tpu.memory_space<vmem>>, vector<8x256xf32>
    %c0_1 = arith.constant 0 : index
    %c1 = arith.constant 1 : index
    %1 = vector.load %arg1[%c0_1, %c1] : memref<8x278xf32, #tpu.memory_space<vmem>>, vector<8x256xf32>
    %c0_2 = arith.constant 0 : index
    %c2 = arith.constant 2 : index
    %2 = vector.load %arg1[%c0_2, %c2] : memref<8x278xf32, #tpu.memory_space<vmem>>, vector<8x256xf32>
    %c0_3 = arith.constant 0 : index
    %c10 = arith.constant 10 : index
    %3 = vector.load %arg1[%c0_3, %c10] : memref<8x278xf32, #tpu.memory_space<vmem>>, vector<8x256xf32>
    %c0_4 = arith.constant 0 : index
    %c11 = arith.constant 11 : index
    %4 = vector.load %arg1[%c0_4, %c11] : memref<8x278xf32, #tpu.memory_space<vmem>>, vector<8x256xf32>
    %c0_5 = arith.constant 0 : index
    %c12 = arith.constant 12 : index
    %5 = vector.load %arg1[%c0_5, %c12] : memref<8x278xf32, #tpu.memory_space<vmem>>, vector<8x256xf32>
    %c0_6 = arith.constant 0 : index
    %c20 = arith.constant 20 : index
    %6 = vector.load %arg1[%c0_6, %c20] : memref<8x278xf32, #tpu.memory_space<vmem>>, vector<8x256xf32>
    %c0_7 = arith.constant 0 : index
    %c21 = arith.constant 21 : index
    %7 = vector.load %arg1[%c0_7, %c21] : memref<8x278xf32, #tpu.memory_space<vmem>>, vector<8x256xf32>
    %c0_8 = arith.constant 0 : index
    %c22 = arith.constant 22 : index
    %8 = vector.load %arg1[%c0_8, %c22] : memref<8x278xf32, #tpu.memory_space<vmem>>, vector<8x256xf32>
    %9 = tpu.concatenate %0, %1, %2, %3, %4, %5, %6, %7, %8 in 0 : vector<8x256xf32>, vector<8x256xf32>, vector<8x256xf32>, vector<8x256xf32>, vector<8x256xf32>, vector<8x256xf32>, vector<8x256xf32>, vector<8x256xf32>, vector<8x256xf32> -> vector<72x256xf32>
    %c0_9 = arith.constant 0 : index
    %c0_10 = arith.constant 0 : index
    %10 = vector.load %arg2[%c0_9, %c0_10] : memref<8x72xbf16, #tpu.memory_space<vmem>>, vector<8x72xbf16>
    %11 = arith.truncf %9 : vector<72x256xf32> to vector<72x256xbf16>
    %cst = arith.constant dense<0.000000e+00> : vector<8x256xf32>
    %12 = tpu.matmul %10, %11, %cst {dimension_numbers = #tpu.dot_dimension_numbers<[1], [0], [0], [1], [0, 0, 1, 1], [], []>} : vector<8x72xbf16>, vector<72x256xbf16>, vector<8x256xf32> -> vector<8x256xf32>
    %c0_11 = arith.constant 0 : index
    %c0_12 = arith.constant 0 : index
    %13 = vector.load %arg3[%c0_11, %c0_12] : memref<8x1xf32, #tpu.memory_space<vmem>>, vector<8x1xf32>
    %14 = vector.broadcast %13 : vector<8x1xf32> to vector<8x256xf32>
    %15 = arith.addf %12, %14 : vector<8x256xf32>
    %c0_13 = arith.constant 0 : index
    %c0_14 = arith.constant 0 : index
    %16 = vector.load %arg4[%c0_13, %c0_14] : memref<8x256xf32, #tpu.memory_space<vmem>>, vector<8x256xf32>
    %17 = arith.addf %15, %16 : vector<8x256xf32>
    %c0_15 = arith.constant 0 : index
    %c0_16 = arith.constant 0 : index
    %18 = vector.load %arg5[%c0_15, %c0_16] : memref<1x256xbf16, #tpu.memory_space<vmem>>, vector<1x256xbf16>
    %19 = arith.extf %18 : vector<1x256xbf16> to vector<1x256xf32>
    %20 = vector.broadcast %19 : vector<1x256xf32> to vector<8x256xf32>
    %21 = arith.mulf %17, %20 : vector<8x256xf32>
    %c0_17 = arith.constant 0 : index
    %c0_18 = arith.constant 0 : index
    %22 = vector.load %arg6[%c0_17, %c0_18] : memref<8x256xf32, #tpu.memory_space<vmem>>, vector<8x256xf32>
    tpu.vector_store %arg6[%c0_17, %c0_18], %21 {strides = array<i32>} : memref<8x256xf32, #tpu.memory_space<vmem>>, vector<8x256xf32>,
    return
  }
  func.func @transform_0(%arg0: i32) -> (i32, i32) {
    %c0_i32 = arith.constant 0 : i32
    %c0_i32_0 = arith.constant 0 : i32
    %c0_i32_1 = arith.constant 0 : i32
    return %c0_i32, %c0_i32_0 : i32, i32
  }
  func.func @transform_1(%arg0: i32) -> (i32, i32) {
    %c0_i32 = arith.constant 0 : i32
    %c0_i32_0 = arith.constant 0 : i32
    %c0_i32_1 = arith.constant 0 : i32
    return %c0_i32, %c0_i32_0 : i32, i32
  }
  func.func @transform_2(%arg0: i32) -> (i32, i32) {
    %c0_i32 = arith.constant 0 : i32
    %c0_i32_0 = arith.constant 0 : i32
    %c0_i32_1 = arith.constant 0 : i32
    return %c0_i32, %c0_i32_0 : i32, i32
  }
  func.func @transform_3(%arg0: i32) -> (i32, i32) {
    %c0_i32 = arith.constant 0 : i32
    %c0_i32_0 = arith.constant 0 : i32
    return %c0_i32, %arg0 : i32, i32
  }
  func.func @transform_4(%arg0: i32) -> (i32, i32) {
    %c0_i32 = arith.constant 0 : i32
    %c0_i32_0 = arith.constant 0 : i32
    return %c0_i32, %arg0 : i32, i32
  }
  func.func @transform_5(%arg0: i32) -> (i32, i32) {
    %c0_i32 = arith.constant 0 : i32
    %c0_i32_0 = arith.constant 0 : i32
    return %c0_i32, %arg0 : i32, i32
  }
}

module attributes {stable_mosaic.version = 11 : i64} {
  func.func @_resblock_kernel(%arg0: i32, %arg1: memref<8x148xf32, #tpu.memory_space<vmem>>, %arg2: memref<8x72xbf16, #tpu.memory_space<vmem>>, %arg3: memref<8x1xf32, #tpu.memory_space<vmem>>, %arg4: memref<8x72xbf16, #tpu.memory_space<vmem>>, %arg5: memref<8x1xf32, #tpu.memory_space<vmem>>, %arg6: memref<8x128xf32, #tpu.memory_space<vmem>>, %arg7: memref<1x138xbf16, #tpu.memory_space<vmem>>, %arg8: memref<8x128xf32, #tpu.memory_space<vmem>>, %arg9: memref<8x138xf32, #tpu.memory_space<vmem>>) attributes {dimension_semantics = [#tpu.dimension_semantics<parallel>], iteration_bounds = array<i64: 1>, scalar_prefetch = 0 : i64, scratch_operands = 1 : i64, tpu.core_type = #tpu.core_type<tc>, window_params = [{pipeline_mode = #tpu.pipeline_mode<synchronous>, transform_indices = @transform_0, window_bounds = array<i64: 8, 148>}, {pipeline_mode = #tpu.pipeline_mode<synchronous>, transform_indices = @transform_1, window_bounds = array<i64: 8, 72>}, {pipeline_mode = #tpu.pipeline_mode<synchronous>, transform_indices = @transform_2, window_bounds = array<i64: 8, 1>}, {pipeline_mode = #tpu.pipeline_mode<synchronous>, transform_indices = @transform_3, window_bounds = array<i64: 8, 72>}, {pipeline_mode = #tpu.pipeline_mode<synchronous>, transform_indices = @transform_4, window_bounds = array<i64: 8, 1>}, {transform_indices = @transform_5, window_bounds = array<i64: 8, 128>}, {pipeline_mode = #tpu.pipeline_mode<synchronous>, transform_indices = @transform_6, window_bounds = array<i64: 1, 138>}, {transform_indices = @transform_7, window_bounds = array<i64: 8, 128>}]} {
    %c0 = arith.constant 0 : index
    %c0_0 = arith.constant 0 : index
    %0 = vector.load %arg1[%c0, %c0_0] : memref<8x148xf32, #tpu.memory_space<vmem>>, vector<8x138xf32>
    %c0_1 = arith.constant 0 : index
    %c1 = arith.constant 1 : index
    %1 = vector.load %arg1[%c0_1, %c1] : memref<8x148xf32, #tpu.memory_space<vmem>>, vector<8x138xf32>
    %c0_2 = arith.constant 0 : index
    %c2 = arith.constant 2 : index
    %2 = vector.load %arg1[%c0_2, %c2] : memref<8x148xf32, #tpu.memory_space<vmem>>, vector<8x138xf32>
    %c0_3 = arith.constant 0 : index
    %c4 = arith.constant 4 : index
    %3 = vector.load %arg1[%c0_3, %c4] : memref<8x148xf32, #tpu.memory_space<vmem>>, vector<8x138xf32>
    %c0_4 = arith.constant 0 : index
    %c5 = arith.constant 5 : index
    %4 = vector.load %arg1[%c0_4, %c5] : memref<8x148xf32, #tpu.memory_space<vmem>>, vector<8x138xf32>
    %c0_5 = arith.constant 0 : index
    %c6 = arith.constant 6 : index
    %5 = vector.load %arg1[%c0_5, %c6] : memref<8x148xf32, #tpu.memory_space<vmem>>, vector<8x138xf32>
    %c0_6 = arith.constant 0 : index
    %c8 = arith.constant 8 : index
    %6 = vector.load %arg1[%c0_6, %c8] : memref<8x148xf32, #tpu.memory_space<vmem>>, vector<8x138xf32>
    %c0_7 = arith.constant 0 : index
    %c9 = arith.constant 9 : index
    %7 = vector.load %arg1[%c0_7, %c9] : memref<8x148xf32, #tpu.memory_space<vmem>>, vector<8x138xf32>
    %c0_8 = arith.constant 0 : index
    %c10 = arith.constant 10 : index
    %8 = vector.load %arg1[%c0_8, %c10] : memref<8x148xf32, #tpu.memory_space<vmem>>, vector<8x138xf32>
    %9 = tpu.concatenate %0, %1, %2, %3, %4, %5, %6, %7, %8 in 0 : vector<8x138xf32>, vector<8x138xf32>, vector<8x138xf32>, vector<8x138xf32>, vector<8x138xf32>, vector<8x138xf32>, vector<8x138xf32>, vector<8x138xf32>, vector<8x138xf32> -> vector<72x138xf32>
    %c0_9 = arith.constant 0 : index
    %c0_10 = arith.constant 0 : index
    %10 = vector.load %arg2[%c0_9, %c0_10] : memref<8x72xbf16, #tpu.memory_space<vmem>>, vector<8x72xbf16>
    %11 = arith.truncf %9 : vector<72x138xf32> to vector<72x138xbf16>
    %cst = arith.constant dense<0.000000e+00> : vector<8x138xf32>
    %12 = tpu.matmul %10, %11, %cst {dimension_numbers = #tpu.dot_dimension_numbers<[1], [0], [0], [1], [0, 0, 1, 1], [], []>} : vector<8x72xbf16>, vector<72x138xbf16>, vector<8x138xf32> -> vector<8x138xf32>
    %c0_11 = arith.constant 0 : index
    %c0_12 = arith.constant 0 : index
    %13 = vector.load %arg3[%c0_11, %c0_12] : memref<8x1xf32, #tpu.memory_space<vmem>>, vector<8x1xf32>
    %14 = vector.broadcast %13 : vector<8x1xf32> to vector<8x138xf32>
    %15 = arith.addf %12, %14 : vector<8x138xf32>
    %cst_13 = arith.constant 0.000000e+00 : f32
    %16 = vector.broadcast %cst_13 : f32 to vector<8x138xf32>
    %17 = arith.maximumf %15, %16 : vector<8x138xf32>
    %c0_14 = arith.constant 0 : index
    %c0_15 = arith.constant 0 : index
    %18 = vector.load %arg7[%c0_14, %c0_15] : memref<1x138xbf16, #tpu.memory_space<vmem>>, vector<1x138xbf16>
    %19 = arith.extf %18 : vector<1x138xbf16> to vector<1x138xf32>
    %20 = vector.broadcast %19 : vector<1x138xf32> to vector<8x138xf32>
    %21 = arith.mulf %17, %20 : vector<8x138xf32>
    %c0_16 = arith.constant 0 : index
    %c0_17 = arith.constant 0 : index
    %22 = vector.load %arg9[%c0_16, %c0_17] : memref<8x138xf32, #tpu.memory_space<vmem>>, vector<8x138xf32>
    tpu.vector_store %arg9[%c0_16, %c0_17], %21 {strides = array<i32>} : memref<8x138xf32, #tpu.memory_space<vmem>>, vector<8x138xf32>,
    %c0_18 = arith.constant 0 : index
    %c0_19 = arith.constant 0 : index
    %23 = vector.load %arg9[%c0_18, %c0_19] : memref<8x138xf32, #tpu.memory_space<vmem>>, vector<8x128xf32>
    %c0_20 = arith.constant 0 : index
    %c1_21 = arith.constant 1 : index
    %24 = vector.load %arg9[%c0_20, %c1_21] : memref<8x138xf32, #tpu.memory_space<vmem>>, vector<8x128xf32>
    %c0_22 = arith.constant 0 : index
    %c2_23 = arith.constant 2 : index
    %25 = vector.load %arg9[%c0_22, %c2_23] : memref<8x138xf32, #tpu.memory_space<vmem>>, vector<8x128xf32>
    %c0_24 = arith.constant 0 : index
    %c4_25 = arith.constant 4 : index
    %26 = vector.load %arg9[%c0_24, %c4_25] : memref<8x138xf32, #tpu.memory_space<vmem>>, vector<8x128xf32>
    %c0_26 = arith.constant 0 : index
    %c5_27 = arith.constant 5 : index
    %27 = vector.load %arg9[%c0_26, %c5_27] : memref<8x138xf32, #tpu.memory_space<vmem>>, vector<8x128xf32>
    %c0_28 = arith.constant 0 : index
    %c6_29 = arith.constant 6 : index
    %28 = vector.load %arg9[%c0_28, %c6_29] : memref<8x138xf32, #tpu.memory_space<vmem>>, vector<8x128xf32>
    %c0_30 = arith.constant 0 : index
    %c8_31 = arith.constant 8 : index
    %29 = vector.load %arg9[%c0_30, %c8_31] : memref<8x138xf32, #tpu.memory_space<vmem>>, vector<8x128xf32>
    %c0_32 = arith.constant 0 : index
    %c9_33 = arith.constant 9 : index
    %30 = vector.load %arg9[%c0_32, %c9_33] : memref<8x138xf32, #tpu.memory_space<vmem>>, vector<8x128xf32>
    %c0_34 = arith.constant 0 : index
    %c10_35 = arith.constant 10 : index
    %31 = vector.load %arg9[%c0_34, %c10_35] : memref<8x138xf32, #tpu.memory_space<vmem>>, vector<8x128xf32>
    %32 = tpu.concatenate %23, %24, %25, %26, %27, %28, %29, %30, %31 in 0 : vector<8x128xf32>, vector<8x128xf32>, vector<8x128xf32>, vector<8x128xf32>, vector<8x128xf32>, vector<8x128xf32>, vector<8x128xf32>, vector<8x128xf32>, vector<8x128xf32> -> vector<72x128xf32>
    %c0_36 = arith.constant 0 : index
    %c0_37 = arith.constant 0 : index
    %33 = vector.load %arg4[%c0_36, %c0_37] : memref<8x72xbf16, #tpu.memory_space<vmem>>, vector<8x72xbf16>
    %34 = arith.truncf %32 : vector<72x128xf32> to vector<72x128xbf16>
    %cst_38 = arith.constant dense<0.000000e+00> : vector<8x128xf32>
    %35 = tpu.matmul %33, %34, %cst_38 {dimension_numbers = #tpu.dot_dimension_numbers<[1], [0], [0], [1], [0, 0, 1, 1], [], []>} : vector<8x72xbf16>, vector<72x128xbf16>, vector<8x128xf32> -> vector<8x128xf32>
    %c0_39 = arith.constant 0 : index
    %c0_40 = arith.constant 0 : index
    %36 = vector.load %arg5[%c0_39, %c0_40] : memref<8x1xf32, #tpu.memory_space<vmem>>, vector<8x1xf32>
    %37 = vector.broadcast %36 : vector<8x1xf32> to vector<8x128xf32>
    %38 = arith.addf %35, %37 : vector<8x128xf32>
    %c0_41 = arith.constant 0 : index
    %c0_42 = arith.constant 0 : index
    %39 = vector.load %arg6[%c0_41, %c0_42] : memref<8x128xf32, #tpu.memory_space<vmem>>, vector<8x128xf32>
    %40 = arith.addf %38, %39 : vector<8x128xf32>
    %c0_43 = arith.constant 0 : index
    %c5_44 = arith.constant 5 : index
    %41 = vector.load %arg7[%c0_43, %c5_44] : memref<1x138xbf16, #tpu.memory_space<vmem>>, vector<1x128xbf16>
    %42 = arith.extf %41 : vector<1x128xbf16> to vector<1x128xf32>
    %43 = vector.broadcast %42 : vector<1x128xf32> to vector<8x128xf32>
    %44 = arith.mulf %40, %43 : vector<8x128xf32>
    %c0_45 = arith.constant 0 : index
    %c0_46 = arith.constant 0 : index
    %45 = vector.load %arg8[%c0_45, %c0_46] : memref<8x128xf32, #tpu.memory_space<vmem>>, vector<8x128xf32>
    tpu.vector_store %arg8[%c0_45, %c0_46], %44 {strides = array<i32>} : memref<8x128xf32, #tpu.memory_space<vmem>>, vector<8x128xf32>,
    return
  }
  func.func @transform_0(%arg0: i32) -> (i32, i32) {
    %c0_i32 = arith.constant 0 : i32
    %c0_i32_0 = arith.constant 0 : i32
    %c0_i32_1 = arith.constant 0 : i32
    return %c0_i32, %c0_i32_0 : i32, i32
  }
  func.func @transform_1(%arg0: i32) -> (i32, i32) {
    %c0_i32 = arith.constant 0 : i32
    %c0_i32_0 = arith.constant 0 : i32
    %c0_i32_1 = arith.constant 0 : i32
    return %c0_i32, %c0_i32_0 : i32, i32
  }
  func.func @transform_2(%arg0: i32) -> (i32, i32) {
    %c0_i32 = arith.constant 0 : i32
    %c0_i32_0 = arith.constant 0 : i32
    %c0_i32_1 = arith.constant 0 : i32
    return %c0_i32, %c0_i32_0 : i32, i32
  }
  func.func @transform_3(%arg0: i32) -> (i32, i32) {
    %c0_i32 = arith.constant 0 : i32
    %c0_i32_0 = arith.constant 0 : i32
    %c0_i32_1 = arith.constant 0 : i32
    return %c0_i32, %c0_i32_0 : i32, i32
  }
  func.func @transform_4(%arg0: i32) -> (i32, i32) {
    %c0_i32 = arith.constant 0 : i32
    %c0_i32_0 = arith.constant 0 : i32
    %c0_i32_1 = arith.constant 0 : i32
    return %c0_i32, %c0_i32_0 : i32, i32
  }
  func.func @transform_5(%arg0: i32) -> (i32, i32) {
    %c0_i32 = arith.constant 0 : i32
    %c0_i32_0 = arith.constant 0 : i32
    return %c0_i32, %arg0 : i32, i32
  }
  func.func @transform_6(%arg0: i32) -> (i32, i32) {
    %c0_i32 = arith.constant 0 : i32
    %c0_i32_0 = arith.constant 0 : i32
    %c0_i32_1 = arith.constant 0 : i32
    return %c0_i32, %c0_i32_0 : i32, i32
  }
  func.func @transform_7(%arg0: i32) -> (i32, i32) {
    %c0_i32 = arith.constant 0 : i32
    %c0_i32_0 = arith.constant 0 : i32
    return %c0_i32, %arg0 : i32, i32
  }
}

module attributes {stable_mosaic.version = 11 : i64} {
  func.func @_resblock_kernel(%arg0: i32, %arg1: memref<72x138xf32, #tpu.memory_space<vmem>>, %arg2: memref<8x72xbf16, #tpu.memory_space<vmem>>, %arg3: memref<8x1xf32, #tpu.memory_space<vmem>>, %arg4: memref<8x72xbf16, #tpu.memory_space<vmem>>, %arg5: memref<8x1xf32, #tpu.memory_space<vmem>>, %arg6: memref<8x8xbf16, #tpu.memory_space<vmem>>, %arg7: memref<8x1xf32, #tpu.memory_space<vmem>>, %arg8: memref<8x128xf32, #tpu.memory_space<vmem>>, %arg9: memref<1x138xbf16, #tpu.memory_space<vmem>>, %arg10: memref<8x128xf32, #tpu.memory_space<vmem>>, %arg11: memref<8x138xf32, #tpu.memory_space<vmem>>) attributes {dimension_semantics = [#tpu.dimension_semantics<parallel>], iteration_bounds = array<i64: 1>, scalar_prefetch = 0 : i64, scratch_operands = 1 : i64, tpu.core_type = #tpu.core_type<tc>, window_params = [{pipeline_mode = #tpu.pipeline_mode<synchronous>, transform_indices = @transform_0, window_bounds = array<i64: 72, 138>}, {pipeline_mode = #tpu.pipeline_mode<synchronous>, transform_indices = @transform_1, window_bounds = array<i64: 8, 72>}, {pipeline_mode = #tpu.pipeline_mode<synchronous>, transform_indices = @transform_2, window_bounds = array<i64: 8, 1>}, {pipeline_mode = #tpu.pipeline_mode<synchronous>, transform_indices = @transform_3, window_bounds = array<i64: 8, 72>}, {pipeline_mode = #tpu.pipeline_mode<synchronous>, transform_indices = @transform_4, window_bounds = array<i64: 8, 1>}, {pipeline_mode = #tpu.pipeline_mode<synchronous>, transform_indices = @transform_5, window_bounds = array<i64: 8, 8>}, {pipeline_mode = #tpu.pipeline_mode<synchronous>, transform_indices = @transform_6, window_bounds = array<i64: 8, 1>}, {transform_indices = @transform_7, window_bounds = array<i64: 8, 128>}, {pipeline_mode = #tpu.pipeline_mode<synchronous>, transform_indices = @transform_8, window_bounds = array<i64: 1, 138>}, {transform_indices = @transform_9, window_bounds = array<i64: 8, 128>}]} {
    %c0 = arith.constant 0 : index
    %c0_0 = arith.constant 0 : index
    %0 = vector.load %arg1[%c0, %c0_0] : memref<72x138xf32, #tpu.memory_space<vmem>>, vector<72x138xf32>
    %c0_1 = arith.constant 0 : index
    %c0_2 = arith.constant 0 : index
    %1 = vector.load %arg2[%c0_1, %c0_2] : memref<8x72xbf16, #tpu.memory_space<vmem>>, vector<8x72xbf16>
    %2 = arith.truncf %0 : vector<72x138xf32> to vector<72x138xbf16>
    %cst = arith.constant dense<0.000000e+00> : vector<8x138xf32>
    %3 = tpu.matmul %1, %2, %cst {dimension_numbers = #tpu.dot_dimension_numbers<[1], [0], [0], [1], [0, 0, 1, 1], [], []>} : vector<8x72xbf16>, vector<72x138xbf16>, vector<8x138xf32> -> vector<8x138xf32>
    %c0_3 = arith.constant 0 : index
    %c0_4 = arith.constant 0 : index
    %4 = vector.load %arg3[%c0_3, %c0_4] : memref<8x1xf32, #tpu.memory_space<vmem>>, vector<8x1xf32>
    %5 = vector.broadcast %4 : vector<8x1xf32> to vector<8x138xf32>
    %6 = arith.addf %3, %5 : vector<8x138xf32>
    %cst_5 = arith.constant 0.000000e+00 : f32
    %7 = vector.broadcast %cst_5 : f32 to vector<8x138xf32>
    %8 = arith.maximumf %6, %7 : vector<8x138xf32>
    %c0_6 = arith.constant 0 : index
    %c0_7 = arith.constant 0 : index
    %9 = vector.load %arg9[%c0_6, %c0_7] : memref<1x138xbf16, #tpu.memory_space<vmem>>, vector<1x138xbf16>
    %10 = arith.extf %9 : vector<1x138xbf16> to vector<1x138xf32>
    %11 = vector.broadcast %10 : vector<1x138xf32> to vector<8x138xf32>
    %12 = arith.mulf %8, %11 : vector<8x138xf32>
    %c0_8 = arith.constant 0 : index
    %c0_9 = arith.constant 0 : index
    %13 = vector.load %arg11[%c0_8, %c0_9] : memref<8x138xf32, #tpu.memory_space<vmem>>, vector<8x138xf32>
    tpu.vector_store %arg11[%c0_8, %c0_9], %12 {strides = array<i32>} : memref<8x138xf32, #tpu.memory_space<vmem>>, vector<8x138xf32>,
    %c0_10 = arith.constant 0 : index
    %c0_11 = arith.constant 0 : index
    %14 = vector.load %arg11[%c0_10, %c0_11] : memref<8x138xf32, #tpu.memory_space<vmem>>, vector<8x128xf32>
    %c0_12 = arith.constant 0 : index
    %c1 = arith.constant 1 : index
    %15 = vector.load %arg11[%c0_12, %c1] : memref<8x138xf32, #tpu.memory_space<vmem>>, vector<8x128xf32>
    %c0_13 = arith.constant 0 : index
    %c2 = arith.constant 2 : index
    %16 = vector.load %arg11[%c0_13, %c2] : memref<8x138xf32, #tpu.memory_space<vmem>>, vector<8x128xf32>
    %c0_14 = arith.constant 0 : index
    %c4 = arith.constant 4 : index
    %17 = vector.load %arg11[%c0_14, %c4] : memref<8x138xf32, #tpu.memory_space<vmem>>, vector<8x128xf32>
    %c0_15 = arith.constant 0 : index
    %c5 = arith.constant 5 : index
    %18 = vector.load %arg11[%c0_15, %c5] : memref<8x138xf32, #tpu.memory_space<vmem>>, vector<8x128xf32>
    %c0_16 = arith.constant 0 : index
    %c6 = arith.constant 6 : index
    %19 = vector.load %arg11[%c0_16, %c6] : memref<8x138xf32, #tpu.memory_space<vmem>>, vector<8x128xf32>
    %c0_17 = arith.constant 0 : index
    %c8 = arith.constant 8 : index
    %20 = vector.load %arg11[%c0_17, %c8] : memref<8x138xf32, #tpu.memory_space<vmem>>, vector<8x128xf32>
    %c0_18 = arith.constant 0 : index
    %c9 = arith.constant 9 : index
    %21 = vector.load %arg11[%c0_18, %c9] : memref<8x138xf32, #tpu.memory_space<vmem>>, vector<8x128xf32>
    %c0_19 = arith.constant 0 : index
    %c10 = arith.constant 10 : index
    %22 = vector.load %arg11[%c0_19, %c10] : memref<8x138xf32, #tpu.memory_space<vmem>>, vector<8x128xf32>
    %23 = tpu.concatenate %14, %15, %16, %17, %18, %19, %20, %21, %22 in 0 : vector<8x128xf32>, vector<8x128xf32>, vector<8x128xf32>, vector<8x128xf32>, vector<8x128xf32>, vector<8x128xf32>, vector<8x128xf32>, vector<8x128xf32>, vector<8x128xf32> -> vector<72x128xf32>
    %c0_20 = arith.constant 0 : index
    %c0_21 = arith.constant 0 : index
    %24 = vector.load %arg4[%c0_20, %c0_21] : memref<8x72xbf16, #tpu.memory_space<vmem>>, vector<8x72xbf16>
    %25 = arith.truncf %23 : vector<72x128xf32> to vector<72x128xbf16>
    %cst_22 = arith.constant dense<0.000000e+00> : vector<8x128xf32>
    %26 = tpu.matmul %24, %25, %cst_22 {dimension_numbers = #tpu.dot_dimension_numbers<[1], [0], [0], [1], [0, 0, 1, 1], [], []>} : vector<8x72xbf16>, vector<72x128xbf16>, vector<8x128xf32> -> vector<8x128xf32>
    %c0_23 = arith.constant 0 : index
    %c0_24 = arith.constant 0 : index
    %27 = vector.load %arg5[%c0_23, %c0_24] : memref<8x1xf32, #tpu.memory_space<vmem>>, vector<8x1xf32>
    %28 = vector.broadcast %27 : vector<8x1xf32> to vector<8x128xf32>
    %29 = arith.addf %26, %28 : vector<8x128xf32>
    %c0_25 = arith.constant 0 : index
    %c0_26 = arith.constant 0 : index
    %30 = vector.load %arg8[%c0_25, %c0_26] : memref<8x128xf32, #tpu.memory_space<vmem>>, vector<8x128xf32>
    %c0_27 = arith.constant 0 : index
    %c0_28 = arith.constant 0 : index
    %31 = vector.load %arg6[%c0_27, %c0_28] : memref<8x8xbf16, #tpu.memory_space<vmem>>, vector<8x8xbf16>
    %32 = arith.truncf %30 : vector<8x128xf32> to vector<8x128xbf16>
    %cst_29 = arith.constant dense<0.000000e+00> : vector<8x128xf32>
    %33 = tpu.matmul %31, %32, %cst_29 {dimension_numbers = #tpu.dot_dimension_numbers<[1], [0], [0], [1], [0, 0, 1, 1], [], []>} : vector<8x8xbf16>, vector<8x128xbf16>, vector<8x128xf32> -> vector<8x128xf32>
    %34 = arith.addf %29, %33 : vector<8x128xf32>
    %c0_30 = arith.constant 0 : index
    %c0_31 = arith.constant 0 : index
    %35 = vector.load %arg7[%c0_30, %c0_31] : memref<8x1xf32, #tpu.memory_space<vmem>>, vector<8x1xf32>
    %36 = vector.broadcast %35 : vector<8x1xf32> to vector<8x128xf32>
    %37 = arith.addf %34, %36 : vector<8x128xf32>
    %c0_32 = arith.constant 0 : index
    %c5_33 = arith.constant 5 : index
    %38 = vector.load %arg9[%c0_32, %c5_33] : memref<1x138xbf16, #tpu.memory_space<vmem>>, vector<1x128xbf16>
    %39 = arith.extf %38 : vector<1x128xbf16> to vector<1x128xf32>
    %40 = vector.broadcast %39 : vector<1x128xf32> to vector<8x128xf32>
    %41 = arith.mulf %37, %40 : vector<8x128xf32>
    %c0_34 = arith.constant 0 : index
    %c0_35 = arith.constant 0 : index
    %42 = vector.load %arg10[%c0_34, %c0_35] : memref<8x128xf32, #tpu.memory_space<vmem>>, vector<8x128xf32>
    tpu.vector_store %arg10[%c0_34, %c0_35], %41 {strides = array<i32>} : memref<8x128xf32, #tpu.memory_space<vmem>>, vector<8x128xf32>,
    return
  }
  func.func @transform_0(%arg0: i32) -> (i32, i32) {
    %c0_i32 = arith.constant 0 : i32
    %c0_i32_0 = arith.constant 0 : i32
    %c0_i32_1 = arith.constant 0 : i32
    return %c0_i32, %c0_i32_0 : i32, i32
  }
  func.func @transform_1(%arg0: i32) -> (i32, i32) {
    %c0_i32 = arith.constant 0 : i32
    %c0_i32_0 = arith.constant 0 : i32
    %c0_i32_1 = arith.constant 0 : i32
    return %c0_i32, %c0_i32_0 : i32, i32
  }
  func.func @transform_2(%arg0: i32) -> (i32, i32) {
    %c0_i32 = arith.constant 0 : i32
    %c0_i32_0 = arith.constant 0 : i32
    %c0_i32_1 = arith.constant 0 : i32
    return %c0_i32, %c0_i32_0 : i32, i32
  }
  func.func @transform_3(%arg0: i32) -> (i32, i32) {
    %c0_i32 = arith.constant 0 : i32
    %c0_i32_0 = arith.constant 0 : i32
    %c0_i32_1 = arith.constant 0 : i32
    return %c0_i32, %c0_i32_0 : i32, i32
  }
  func.func @transform_4(%arg0: i32) -> (i32, i32) {
    %c0_i32 = arith.constant 0 : i32
    %c0_i32_0 = arith.constant 0 : i32
    %c0_i32_1 = arith.constant 0 : i32
    return %c0_i32, %c0_i32_0 : i32, i32
  }
  func.func @transform_5(%arg0: i32) -> (i32, i32) {
    %c0_i32 = arith.constant 0 : i32
    %c0_i32_0 = arith.constant 0 : i32
    %c0_i32_1 = arith.constant 0 : i32
    return %c0_i32, %c0_i32_0 : i32, i32
  }
  func.func @transform_6(%arg0: i32) -> (i32, i32) {
    %c0_i32 = arith.constant 0 : i32
    %c0_i32_0 = arith.constant 0 : i32
    %c0_i32_1 = arith.constant 0 : i32
    return %c0_i32, %c0_i32_0 : i32, i32
  }
  func.func @transform_7(%arg0: i32) -> (i32, i32) {
    %c0_i32 = arith.constant 0 : i32
    %c0_i32_0 = arith.constant 0 : i32
    return %c0_i32, %arg0 : i32, i32
  }
  func.func @transform_8(%arg0: i32) -> (i32, i32) {
    %c0_i32 = arith.constant 0 : i32
    %c0_i32_0 = arith.constant 0 : i32
    %c0_i32_1 = arith.constant 0 : i32
    return %c0_i32, %c0_i32_0 : i32, i32
  }
  func.func @transform_9(%arg0: i32) -> (i32, i32) {
    %c0_i32 = arith.constant 0 : i32
    %c0_i32_0 = arith.constant 0 : i32
    return %c0_i32, %arg0 : i32, i32
  }
}

module attributes {stable_mosaic.version = 11 : i64} {
  func.func @_conv_skip_kernel(%arg0: i32, %arg1: memref<8x138xf32, #tpu.memory_space<vmem>>, %arg2: memref<8x72xbf16, #tpu.memory_space<vmem>>, %arg3: memref<8x1xf32, #tpu.memory_space<vmem>>, %arg4: memref<8x128xf32, #tpu.memory_space<vmem>>, %arg5: memref<1x128xbf16, #tpu.memory_space<vmem>>, %arg6: memref<8x128xf32, #tpu.memory_space<vmem>>) attributes {dimension_semantics = [#tpu.dimension_semantics<parallel>], iteration_bounds = array<i64: 1>, scalar_prefetch = 0 : i64, scratch_operands = 0 : i64, tpu.core_type = #tpu.core_type<tc>, window_params = [{pipeline_mode = #tpu.pipeline_mode<synchronous>, transform_indices = @transform_0, window_bounds = array<i64: 8, 138>}, {pipeline_mode = #tpu.pipeline_mode<synchronous>, transform_indices = @transform_1, window_bounds = array<i64: 8, 72>}, {pipeline_mode = #tpu.pipeline_mode<synchronous>, transform_indices = @transform_2, window_bounds = array<i64: 8, 1>}, {transform_indices = @transform_3, window_bounds = array<i64: 8, 128>}, {transform_indices = @transform_4, window_bounds = array<i64: 1, 128>}, {transform_indices = @transform_5, window_bounds = array<i64: 8, 128>}]} {
    %c0 = arith.constant 0 : index
    %c0_0 = arith.constant 0 : index
    %0 = vector.load %arg1[%c0, %c0_0] : memref<8x138xf32, #tpu.memory_space<vmem>>, vector<8x128xf32>
    %c0_1 = arith.constant 0 : index
    %c1 = arith.constant 1 : index
    %1 = vector.load %arg1[%c0_1, %c1] : memref<8x138xf32, #tpu.memory_space<vmem>>, vector<8x128xf32>
    %c0_2 = arith.constant 0 : index
    %c2 = arith.constant 2 : index
    %2 = vector.load %arg1[%c0_2, %c2] : memref<8x138xf32, #tpu.memory_space<vmem>>, vector<8x128xf32>
    %c0_3 = arith.constant 0 : index
    %c4 = arith.constant 4 : index
    %3 = vector.load %arg1[%c0_3, %c4] : memref<8x138xf32, #tpu.memory_space<vmem>>, vector<8x128xf32>
    %c0_4 = arith.constant 0 : index
    %c5 = arith.constant 5 : index
    %4 = vector.load %arg1[%c0_4, %c5] : memref<8x138xf32, #tpu.memory_space<vmem>>, vector<8x128xf32>
    %c0_5 = arith.constant 0 : index
    %c6 = arith.constant 6 : index
    %5 = vector.load %arg1[%c0_5, %c6] : memref<8x138xf32, #tpu.memory_space<vmem>>, vector<8x128xf32>
    %c0_6 = arith.constant 0 : index
    %c8 = arith.constant 8 : index
    %6 = vector.load %arg1[%c0_6, %c8] : memref<8x138xf32, #tpu.memory_space<vmem>>, vector<8x128xf32>
    %c0_7 = arith.constant 0 : index
    %c9 = arith.constant 9 : index
    %7 = vector.load %arg1[%c0_7, %c9] : memref<8x138xf32, #tpu.memory_space<vmem>>, vector<8x128xf32>
    %c0_8 = arith.constant 0 : index
    %c10 = arith.constant 10 : index
    %8 = vector.load %arg1[%c0_8, %c10] : memref<8x138xf32, #tpu.memory_space<vmem>>, vector<8x128xf32>
    %9 = tpu.concatenate %0, %1, %2, %3, %4, %5, %6, %7, %8 in 0 : vector<8x128xf32>, vector<8x128xf32>, vector<8x128xf32>, vector<8x128xf32>, vector<8x128xf32>, vector<8x128xf32>, vector<8x128xf32>, vector<8x128xf32>, vector<8x128xf32> -> vector<72x128xf32>
    %c0_9 = arith.constant 0 : index
    %c0_10 = arith.constant 0 : index
    %10 = vector.load %arg2[%c0_9, %c0_10] : memref<8x72xbf16, #tpu.memory_space<vmem>>, vector<8x72xbf16>
    %11 = arith.truncf %9 : vector<72x128xf32> to vector<72x128xbf16>
    %cst = arith.constant dense<0.000000e+00> : vector<8x128xf32>
    %12 = tpu.matmul %10, %11, %cst {dimension_numbers = #tpu.dot_dimension_numbers<[1], [0], [0], [1], [0, 0, 1, 1], [], []>} : vector<8x72xbf16>, vector<72x128xbf16>, vector<8x128xf32> -> vector<8x128xf32>
    %c0_11 = arith.constant 0 : index
    %c0_12 = arith.constant 0 : index
    %13 = vector.load %arg3[%c0_11, %c0_12] : memref<8x1xf32, #tpu.memory_space<vmem>>, vector<8x1xf32>
    %14 = vector.broadcast %13 : vector<8x1xf32> to vector<8x128xf32>
    %15 = arith.addf %12, %14 : vector<8x128xf32>
    %c0_13 = arith.constant 0 : index
    %c0_14 = arith.constant 0 : index
    %16 = vector.load %arg4[%c0_13, %c0_14] : memref<8x128xf32, #tpu.memory_space<vmem>>, vector<8x128xf32>
    %17 = arith.addf %15, %16 : vector<8x128xf32>
    %c0_15 = arith.constant 0 : index
    %c0_16 = arith.constant 0 : index
    %18 = vector.load %arg5[%c0_15, %c0_16] : memref<1x128xbf16, #tpu.memory_space<vmem>>, vector<1x128xbf16>
    %19 = arith.extf %18 : vector<1x128xbf16> to vector<1x128xf32>
    %20 = vector.broadcast %19 : vector<1x128xf32> to vector<8x128xf32>
    %21 = arith.mulf %17, %20 : vector<8x128xf32>
    %c0_17 = arith.constant 0 : index
    %c0_18 = arith.constant 0 : index
    %22 = vector.load %arg6[%c0_17, %c0_18] : memref<8x128xf32, #tpu.memory_space<vmem>>, vector<8x128xf32>
    tpu.vector_store %arg6[%c0_17, %c0_18], %21 {strides = array<i32>} : memref<8x128xf32, #tpu.memory_space<vmem>>, vector<8x128xf32>,
    return
  }
  func.func @transform_0(%arg0: i32) -> (i32, i32) {
    %c0_i32 = arith.constant 0 : i32
    %c0_i32_0 = arith.constant 0 : i32
    %c0_i32_1 = arith.constant 0 : i32
    return %c0_i32, %c0_i32_0 : i32, i32
  }
  func.func @transform_1(%arg0: i32) -> (i32, i32) {
    %c0_i32 = arith.constant 0 : i32
    %c0_i32_0 = arith.constant 0 : i32
    %c0_i32_1 = arith.constant 0 : i32
    return %c0_i32, %c0_i32_0 : i32, i32
  }
  func.func @transform_2(%arg0: i32) -> (i32, i32) {
    %c0_i32 = arith.constant 0 : i32
    %c0_i32_0 = arith.constant 0 : i32
    %c0_i32_1 = arith.constant 0 : i32
    return %c0_i32, %c0_i32_0 : i32, i32
  }
  func.func @transform_3(%arg0: i32) -> (i32, i32) {
    %c0_i32 = arith.constant 0 : i32
    %c0_i32_0 = arith.constant 0 : i32
    return %c0_i32, %arg0 : i32, i32
  }
  func.func @transform_4(%arg0: i32) -> (i32, i32) {
    %c0_i32 = arith.constant 0 : i32
    %c0_i32_0 = arith.constant 0 : i32
    return %c0_i32, %arg0 : i32, i32
  }
  func.func @transform_5(%arg0: i32) -> (i32, i32) {
    %c0_i32 = arith.constant 0 : i32
    %c0_i32_0 = arith.constant 0 : i32
    return %c0_i32, %arg0 : i32, i32
  }
}

module attributes {stable_mosaic.version = 11 : i64} {
  func.func @_resblock_kernel(%arg0: i32, %arg1: memref<72x136xf32, #tpu.memory_space<vmem>>, %arg2: memref<8x72xbf16, #tpu.memory_space<vmem>>, %arg3: memref<8x1xf32, #tpu.memory_space<vmem>>, %arg4: memref<8x72xbf16, #tpu.memory_space<vmem>>, %arg5: memref<8x1xf32, #tpu.memory_space<vmem>>, %arg6: memref<8x8xbf16, #tpu.memory_space<vmem>>, %arg7: memref<8x1xf32, #tpu.memory_space<vmem>>, %arg8: memref<8x128xf32, #tpu.memory_space<vmem>>, %arg9: memref<1x136xbf16, #tpu.memory_space<vmem>>, %arg10: memref<8x128xf32, #tpu.memory_space<vmem>>, %arg11: memref<8x136xf32, #tpu.memory_space<vmem>>) attributes {dimension_semantics = [#tpu.dimension_semantics<parallel>], iteration_bounds = array<i64: 1>, scalar_prefetch = 0 : i64, scratch_operands = 1 : i64, tpu.core_type = #tpu.core_type<tc>, window_params = [{pipeline_mode = #tpu.pipeline_mode<synchronous>, transform_indices = @transform_0, window_bounds = array<i64: 72, 136>}, {pipeline_mode = #tpu.pipeline_mode<synchronous>, transform_indices = @transform_1, window_bounds = array<i64: 8, 72>}, {pipeline_mode = #tpu.pipeline_mode<synchronous>, transform_indices = @transform_2, window_bounds = array<i64: 8, 1>}, {pipeline_mode = #tpu.pipeline_mode<synchronous>, transform_indices = @transform_3, window_bounds = array<i64: 8, 72>}, {pipeline_mode = #tpu.pipeline_mode<synchronous>, transform_indices = @transform_4, window_bounds = array<i64: 8, 1>}, {pipeline_mode = #tpu.pipeline_mode<synchronous>, transform_indices = @transform_5, window_bounds = array<i64: 8, 8>}, {pipeline_mode = #tpu.pipeline_mode<synchronous>, transform_indices = @transform_6, window_bounds = array<i64: 8, 1>}, {transform_indices = @transform_7, window_bounds = array<i64: 8, 128>}, {pipeline_mode = #tpu.pipeline_mode<synchronous>, transform_indices = @transform_8, window_bounds = array<i64: 1, 136>}, {transform_indices = @transform_9, window_bounds = array<i64: 8, 128>}]} {
    %c0 = arith.constant 0 : index
    %c0_0 = arith.constant 0 : index
    %0 = vector.load %arg1[%c0, %c0_0] : memref<72x136xf32, #tpu.memory_space<vmem>>, vector<72x136xf32>
    %c0_1 = arith.constant 0 : index
    %c0_2 = arith.constant 0 : index
    %1 = vector.load %arg2[%c0_1, %c0_2] : memref<8x72xbf16, #tpu.memory_space<vmem>>, vector<8x72xbf16>
    %2 = arith.truncf %0 : vector<72x136xf32> to vector<72x136xbf16>
    %cst = arith.constant dense<0.000000e+00> : vector<8x136xf32>
    %3 = tpu.matmul %1, %2, %cst {dimension_numbers = #tpu.dot_dimension_numbers<[1], [0], [0], [1], [0, 0, 1, 1], [], []>} : vector<8x72xbf16>, vector<72x136xbf16>, vector<8x136xf32> -> vector<8x136xf32>
    %c0_3 = arith.constant 0 : index
    %c0_4 = arith.constant 0 : index
    %4 = vector.load %arg3[%c0_3, %c0_4] : memref<8x1xf32, #tpu.memory_space<vmem>>, vector<8x1xf32>
    %5 = vector.broadcast %4 : vector<8x1xf32> to vector<8x136xf32>
    %6 = arith.addf %3, %5 : vector<8x136xf32>
    %cst_5 = arith.constant 0.000000e+00 : f32
    %7 = vector.broadcast %cst_5 : f32 to vector<8x136xf32>
    %8 = arith.maximumf %6, %7 : vector<8x136xf32>
    %c0_6 = arith.constant 0 : index
    %c0_7 = arith.constant 0 : index
    %9 = vector.load %arg9[%c0_6, %c0_7] : memref<1x136xbf16, #tpu.memory_space<vmem>>, vector<1x136xbf16>
    %10 = arith.extf %9 : vector<1x136xbf16> to vector<1x136xf32>
    %11 = vector.broadcast %10 : vector<1x136xf32> to vector<8x136xf32>
    %12 = arith.mulf %8, %11 : vector<8x136xf32>
    %c0_8 = arith.constant 0 : index
    %c0_9 = arith.constant 0 : index
    %13 = vector.load %arg11[%c0_8, %c0_9] : memref<8x136xf32, #tpu.memory_space<vmem>>, vector<8x136xf32>
    tpu.vector_store %arg11[%c0_8, %c0_9], %12 {strides = array<i32>} : memref<8x136xf32, #tpu.memory_space<vmem>>, vector<8x136xf32>,
    %c0_10 = arith.constant 0 : index
    %c0_11 = arith.constant 0 : index
    %14 = vector.load %arg11[%c0_10, %c0_11] : memref<8x136xf32, #tpu.memory_space<vmem>>, vector<8x128xf32>
    %c0_12 = arith.constant 0 : index
    %c1 = arith.constant 1 : index
    %15 = vector.load %arg11[%c0_12, %c1] : memref<8x136xf32, #tpu.memory_space<vmem>>, vector<8x128xf32>
    %c0_13 = arith.constant 0 : index
    %c2 = arith.constant 2 : index
    %16 = vector.load %arg11[%c0_13, %c2] : memref<8x136xf32, #tpu.memory_space<vmem>>, vector<8x128xf32>
    %c0_14 = arith.constant 0 : index
    %c3 = arith.constant 3 : index
    %17 = vector.load %arg11[%c0_14, %c3] : memref<8x136xf32, #tpu.memory_space<vmem>>, vector<8x128xf32>
    %c0_15 = arith.constant 0 : index
    %c4 = arith.constant 4 : index
    %18 = vector.load %arg11[%c0_15, %c4] : memref<8x136xf32, #tpu.memory_space<vmem>>, vector<8x128xf32>
    %c0_16 = arith.constant 0 : index
    %c5 = arith.constant 5 : index
    %19 = vector.load %arg11[%c0_16, %c5] : memref<8x136xf32, #tpu.memory_space<vmem>>, vector<8x128xf32>
    %c0_17 = arith.constant 0 : index
    %c6 = arith.constant 6 : index
    %20 = vector.load %arg11[%c0_17, %c6] : memref<8x136xf32, #tpu.memory_space<vmem>>, vector<8x128xf32>
    %c0_18 = arith.constant 0 : index
    %c7 = arith.constant 7 : index
    %21 = vector.load %arg11[%c0_18, %c7] : memref<8x136xf32, #tpu.memory_space<vmem>>, vector<8x128xf32>
    %c0_19 = arith.constant 0 : index
    %c8 = arith.constant 8 : index
    %22 = vector.load %arg11[%c0_19, %c8] : memref<8x136xf32, #tpu.memory_space<vmem>>, vector<8x128xf32>
    %23 = tpu.concatenate %14, %15, %16, %17, %18, %19, %20, %21, %22 in 0 : vector<8x128xf32>, vector<8x128xf32>, vector<8x128xf32>, vector<8x128xf32>, vector<8x128xf32>, vector<8x128xf32>, vector<8x128xf32>, vector<8x128xf32>, vector<8x128xf32> -> vector<72x128xf32>
    %c0_20 = arith.constant 0 : index
    %c0_21 = arith.constant 0 : index
    %24 = vector.load %arg4[%c0_20, %c0_21] : memref<8x72xbf16, #tpu.memory_space<vmem>>, vector<8x72xbf16>
    %25 = arith.truncf %23 : vector<72x128xf32> to vector<72x128xbf16>
    %cst_22 = arith.constant dense<0.000000e+00> : vector<8x128xf32>
    %26 = tpu.matmul %24, %25, %cst_22 {dimension_numbers = #tpu.dot_dimension_numbers<[1], [0], [0], [1], [0, 0, 1, 1], [], []>} : vector<8x72xbf16>, vector<72x128xbf16>, vector<8x128xf32> -> vector<8x128xf32>
    %c0_23 = arith.constant 0 : index
    %c0_24 = arith.constant 0 : index
    %27 = vector.load %arg5[%c0_23, %c0_24] : memref<8x1xf32, #tpu.memory_space<vmem>>, vector<8x1xf32>
    %28 = vector.broadcast %27 : vector<8x1xf32> to vector<8x128xf32>
    %29 = arith.addf %26, %28 : vector<8x128xf32>
    %c0_25 = arith.constant 0 : index
    %c0_26 = arith.constant 0 : index
    %30 = vector.load %arg8[%c0_25, %c0_26] : memref<8x128xf32, #tpu.memory_space<vmem>>, vector<8x128xf32>
    %c0_27 = arith.constant 0 : index
    %c0_28 = arith.constant 0 : index
    %31 = vector.load %arg6[%c0_27, %c0_28] : memref<8x8xbf16, #tpu.memory_space<vmem>>, vector<8x8xbf16>
    %32 = arith.truncf %30 : vector<8x128xf32> to vector<8x128xbf16>
    %cst_29 = arith.constant dense<0.000000e+00> : vector<8x128xf32>
    %33 = tpu.matmul %31, %32, %cst_29 {dimension_numbers = #tpu.dot_dimension_numbers<[1], [0], [0], [1], [0, 0, 1, 1], [], []>} : vector<8x8xbf16>, vector<8x128xbf16>, vector<8x128xf32> -> vector<8x128xf32>
    %34 = arith.addf %29, %33 : vector<8x128xf32>
    %c0_30 = arith.constant 0 : index
    %c0_31 = arith.constant 0 : index
    %35 = vector.load %arg7[%c0_30, %c0_31] : memref<8x1xf32, #tpu.memory_space<vmem>>, vector<8x1xf32>
    %36 = vector.broadcast %35 : vector<8x1xf32> to vector<8x128xf32>
    %37 = arith.addf %34, %36 : vector<8x128xf32>
    %c0_32 = arith.constant 0 : index
    %c4_33 = arith.constant 4 : index
    %38 = vector.load %arg9[%c0_32, %c4_33] : memref<1x136xbf16, #tpu.memory_space<vmem>>, vector<1x128xbf16>
    %39 = arith.extf %38 : vector<1x128xbf16> to vector<1x128xf32>
    %40 = vector.broadcast %39 : vector<1x128xf32> to vector<8x128xf32>
    %41 = arith.mulf %37, %40 : vector<8x128xf32>
    %c0_34 = arith.constant 0 : index
    %c0_35 = arith.constant 0 : index
    %42 = vector.load %arg10[%c0_34, %c0_35] : memref<8x128xf32, #tpu.memory_space<vmem>>, vector<8x128xf32>
    tpu.vector_store %arg10[%c0_34, %c0_35], %41 {strides = array<i32>} : memref<8x128xf32, #tpu.memory_space<vmem>>, vector<8x128xf32>,
    return
  }
  func.func @transform_0(%arg0: i32) -> (i32, i32) {
    %c0_i32 = arith.constant 0 : i32
    %c0_i32_0 = arith.constant 0 : i32
    %c0_i32_1 = arith.constant 0 : i32
    return %c0_i32, %c0_i32_0 : i32, i32
  }
  func.func @transform_1(%arg0: i32) -> (i32, i32) {
    %c0_i32 = arith.constant 0 : i32
    %c0_i32_0 = arith.constant 0 : i32
    %c0_i32_1 = arith.constant 0 : i32
    return %c0_i32, %c0_i32_0 : i32, i32
  }
  func.func @transform_2(%arg0: i32) -> (i32, i32) {
    %c0_i32 = arith.constant 0 : i32
    %c0_i32_0 = arith.constant 0 : i32
    %c0_i32_1 = arith.constant 0 : i32
    return %c0_i32, %c0_i32_0 : i32, i32
  }
  func.func @transform_3(%arg0: i32) -> (i32, i32) {
    %c0_i32 = arith.constant 0 : i32
    %c0_i32_0 = arith.constant 0 : i32
    %c0_i32_1 = arith.constant 0 : i32
    return %c0_i32, %c0_i32_0 : i32, i32
  }
  func.func @transform_4(%arg0: i32) -> (i32, i32) {
    %c0_i32 = arith.constant 0 : i32
    %c0_i32_0 = arith.constant 0 : i32
    %c0_i32_1 = arith.constant 0 : i32
    return %c0_i32, %c0_i32_0 : i32, i32
  }
  func.func @transform_5(%arg0: i32) -> (i32, i32) {
    %c0_i32 = arith.constant 0 : i32
    %c0_i32_0 = arith.constant 0 : i32
    %c0_i32_1 = arith.constant 0 : i32
    return %c0_i32, %c0_i32_0 : i32, i32
  }
  func.func @transform_6(%arg0: i32) -> (i32, i32) {
    %c0_i32 = arith.constant 0 : i32
    %c0_i32_0 = arith.constant 0 : i32
    %c0_i32_1 = arith.constant 0 : i32
    return %c0_i32, %c0_i32_0 : i32, i32
  }
  func.func @transform_7(%arg0: i32) -> (i32, i32) {
    %c0_i32 = arith.constant 0 : i32
    %c0_i32_0 = arith.constant 0 : i32
    return %c0_i32, %arg0 : i32, i32
  }
  func.func @transform_8(%arg0: i32) -> (i32, i32) {
    %c0_i32 = arith.constant 0 : i32
    %c0_i32_0 = arith.constant 0 : i32
    %c0_i32_1 = arith.constant 0 : i32
    return %c0_i32, %c0_i32_0 : i32, i32
  }
  func.func @transform_9(%arg0: i32) -> (i32, i32) {
    %c0_i32 = arith.constant 0 : i32
    %c0_i32_0 = arith.constant 0 : i32
    return %c0_i32, %arg0 : i32, i32
  }
}

module attributes {stable_mosaic.version = 11 : i64} {
  func.func @_resblock_kernel(%arg0: i32, %arg1: memref<16x844xf32, #tpu.memory_space<vmem>>, %arg2: memref<8x144xbf16, #tpu.memory_space<vmem>>, %arg3: memref<8x1xf32, #tpu.memory_space<vmem>>, %arg4: memref<8x72xbf16, #tpu.memory_space<vmem>>, %arg5: memref<8x1xf32, #tpu.memory_space<vmem>>, %arg6: memref<8x16xbf16, #tpu.memory_space<vmem>>, %arg7: memref<8x1xf32, #tpu.memory_space<vmem>>, %arg8: memref<16x768xf32, #tpu.memory_space<vmem>>, %arg9: memref<1x806xbf16, #tpu.memory_space<vmem>>, %arg10: memref<8x768xf32, #tpu.memory_space<vmem>>, %arg11: memref<8x806xf32, #tpu.memory_space<vmem>>) attributes {dimension_semantics = [#tpu.dimension_semantics<parallel>], iteration_bounds = array<i64: 1>, scalar_prefetch = 0 : i64, scratch_operands = 1 : i64, tpu.core_type = #tpu.core_type<tc>, window_params = [{pipeline_mode = #tpu.pipeline_mode<synchronous>, transform_indices = @transform_0, window_bounds = array<i64: 16, 844>}, {pipeline_mode = #tpu.pipeline_mode<synchronous>, transform_indices = @transform_1, window_bounds = array<i64: 8, 144>}, {pipeline_mode = #tpu.pipeline_mode<synchronous>, transform_indices = @transform_2, window_bounds = array<i64: 8, 1>}, {pipeline_mode = #tpu.pipeline_mode<synchronous>, transform_indices = @transform_3, window_bounds = array<i64: 8, 72>}, {pipeline_mode = #tpu.pipeline_mode<synchronous>, transform_indices = @transform_4, window_bounds = array<i64: 8, 1>}, {pipeline_mode = #tpu.pipeline_mode<synchronous>, transform_indices = @transform_5, window_bounds = array<i64: 8, 16>}, {pipeline_mode = #tpu.pipeline_mode<synchronous>, transform_indices = @transform_6, window_bounds = array<i64: 8, 1>}, {transform_indices = @transform_7, window_bounds = array<i64: 16, 768>}, {pipeline_mode = #tpu.pipeline_mode<synchronous>, transform_indices = @transform_8, window_bounds = array<i64: 1, 806>}, {transform_indices = @transform_9, window_bounds = array<i64: 8, 768>}]} {
    %c0 = arith.constant 0 : index
    %c0_0 = arith.constant 0 : index
    %0 = vector.load %arg1[%c0, %c0_0] : memref<16x844xf32, #tpu.memory_space<vmem>>, vector<16x806xf32>
    %c0_1 = arith.constant 0 : index
    %c1 = arith.constant 1 : index
    %1 = vector.load %arg1[%c0_1, %c1] : memref<16x844xf32, #tpu.memory_space<vmem>>, vector<16x806xf32>
    %c0_2 = arith.constant 0 : index
    %c2 = arith.constant 2 : index
    %2 = vector.load %arg1[%c0_2, %c2] : memref<16x844xf32, #tpu.memory_space<vmem>>, vector<16x806xf32>
    %c0_3 = arith.constant 0 : index
    %c18 = arith.constant 18 : index
    %3 = vector.load %arg1[%c0_3, %c18] : memref<16x844xf32, #tpu.memory_space<vmem>>, vector<16x806xf32>
    %c0_4 = arith.constant 0 : index
    %c19 = arith.constant 19 : index
    %4 = vector.load %arg1[%c0_4, %c19] : memref<16x844xf32, #tpu.memory_space<vmem>>, vector<16x806xf32>
    %c0_5 = arith.constant 0 : index
    %c20 = arith.constant 20 : index
    %5 = vector.load %arg1[%c0_5, %c20] : memref<16x844xf32, #tpu.memory_space<vmem>>, vector<16x806xf32>
    %c0_6 = arith.constant 0 : index
    %c36 = arith.constant 36 : index
    %6 = vector.load %arg1[%c0_6, %c36] : memref<16x844xf32, #tpu.memory_space<vmem>>, vector<16x806xf32>
    %c0_7 = arith.constant 0 : index
    %c37 = arith.constant 37 : index
    %7 = vector.load %arg1[%c0_7, %c37] : memref<16x844xf32, #tpu.memory_space<vmem>>, vector<16x806xf32>
    %c0_8 = arith.constant 0 : index
    %c38 = arith.constant 38 : index
    %8 = vector.load %arg1[%c0_8, %c38] : memref<16x844xf32, #tpu.memory_space<vmem>>, vector<16x806xf32>
    %9 = tpu.concatenate %0, %1, %2, %3, %4, %5, %6, %7, %8 in 0 : vector<16x806xf32>, vector<16x806xf32>, vector<16x806xf32>, vector<16x806xf32>, vector<16x806xf32>, vector<16x806xf32>, vector<16x806xf32>, vector<16x806xf32>, vector<16x806xf32> -> vector<144x806xf32>
    %c0_9 = arith.constant 0 : index
    %c0_10 = arith.constant 0 : index
    %10 = vector.load %arg2[%c0_9, %c0_10] : memref<8x144xbf16, #tpu.memory_space<vmem>>, vector<8x144xbf16>
    %11 = arith.truncf %9 : vector<144x806xf32> to vector<144x806xbf16>
    %cst = arith.constant dense<0.000000e+00> : vector<8x806xf32>
    %12 = tpu.matmul %10, %11, %cst {dimension_numbers = #tpu.dot_dimension_numbers<[1], [0], [0], [1], [0, 0, 1, 1], [], []>} : vector<8x144xbf16>, vector<144x806xbf16>, vector<8x806xf32> -> vector<8x806xf32>
    %c0_11 = arith.constant 0 : index
    %c0_12 = arith.constant 0 : index
    %13 = vector.load %arg3[%c0_11, %c0_12] : memref<8x1xf32, #tpu.memory_space<vmem>>, vector<8x1xf32>
    %14 = vector.broadcast %13 : vector<8x1xf32> to vector<8x806xf32>
    %15 = arith.addf %12, %14 : vector<8x806xf32>
    %cst_13 = arith.constant 0.000000e+00 : f32
    %16 = vector.broadcast %cst_13 : f32 to vector<8x806xf32>
    %17 = arith.maximumf %15, %16 : vector<8x806xf32>
    %c0_14 = arith.constant 0 : index
    %c0_15 = arith.constant 0 : index
    %18 = vector.load %arg9[%c0_14, %c0_15] : memref<1x806xbf16, #tpu.memory_space<vmem>>, vector<1x806xbf16>
    %19 = arith.extf %18 : vector<1x806xbf16> to vector<1x806xf32>
    %20 = vector.broadcast %19 : vector<1x806xf32> to vector<8x806xf32>
    %21 = arith.mulf %17, %20 : vector<8x806xf32>
    %c0_16 = arith.constant 0 : index
    %c0_17 = arith.constant 0 : index
    %22 = vector.load %arg11[%c0_16, %c0_17] : memref<8x806xf32, #tpu.memory_space<vmem>>, vector<8x806xf32>
    tpu.vector_store %arg11[%c0_16, %c0_17], %21 {strides = array<i32>} : memref<8x806xf32, #tpu.memory_space<vmem>>, vector<8x806xf32>,
    %c0_18 = arith.constant 0 : index
    %c0_19 = arith.constant 0 : index
    %23 = vector.load %arg11[%c0_18, %c0_19] : memref<8x806xf32, #tpu.memory_space<vmem>>, vector<8x768xf32>
    %c0_20 = arith.constant 0 : index
    %c1_21 = arith.constant 1 : index
    %24 = vector.load %arg11[%c0_20, %c1_21] : memref<8x806xf32, #tpu.memory_space<vmem>>, vector<8x768xf32>
    %c0_22 = arith.constant 0 : index
    %c2_23 = arith.constant 2 : index
    %25 = vector.load %arg11[%c0_22, %c2_23] : memref<8x806xf32, #tpu.memory_space<vmem>>, vector<8x768xf32>
    %c0_24 = arith.constant 0 : index
    %c18_25 = arith.constant 18 : index
    %26 = vector.load %arg11[%c0_24, %c18_25] : memref<8x806xf32, #tpu.memory_space<vmem>>, vector<8x768xf32>
    %c0_26 = arith.constant 0 : index
    %c19_27 = arith.constant 19 : index
    %27 = vector.load %arg11[%c0_26, %c19_27] : memref<8x806xf32, #tpu.memory_space<vmem>>, vector<8x768xf32>
    %c0_28 = arith.constant 0 : index
    %c20_29 = arith.constant 20 : index
    %28 = vector.load %arg11[%c0_28, %c20_29] : memref<8x806xf32, #tpu.memory_space<vmem>>, vector<8x768xf32>
    %c0_30 = arith.constant 0 : index
    %c36_31 = arith.constant 36 : index
    %29 = vector.load %arg11[%c0_30, %c36_31] : memref<8x806xf32, #tpu.memory_space<vmem>>, vector<8x768xf32>
    %c0_32 = arith.constant 0 : index
    %c37_33 = arith.constant 37 : index
    %30 = vector.load %arg11[%c0_32, %c37_33] : memref<8x806xf32, #tpu.memory_space<vmem>>, vector<8x768xf32>
    %c0_34 = arith.constant 0 : index
    %c38_35 = arith.constant 38 : index
    %31 = vector.load %arg11[%c0_34, %c38_35] : memref<8x806xf32, #tpu.memory_space<vmem>>, vector<8x768xf32>
    %32 = tpu.concatenate %23, %24, %25, %26, %27, %28, %29, %30, %31 in 0 : vector<8x768xf32>, vector<8x768xf32>, vector<8x768xf32>, vector<8x768xf32>, vector<8x768xf32>, vector<8x768xf32>, vector<8x768xf32>, vector<8x768xf32>, vector<8x768xf32> -> vector<72x768xf32>
    %c0_36 = arith.constant 0 : index
    %c0_37 = arith.constant 0 : index
    %33 = vector.load %arg4[%c0_36, %c0_37] : memref<8x72xbf16, #tpu.memory_space<vmem>>, vector<8x72xbf16>
    %34 = arith.truncf %32 : vector<72x768xf32> to vector<72x768xbf16>
    %cst_38 = arith.constant dense<0.000000e+00> : vector<8x768xf32>
    %35 = tpu.matmul %33, %34, %cst_38 {dimension_numbers = #tpu.dot_dimension_numbers<[1], [0], [0], [1], [0, 0, 1, 1], [], []>} : vector<8x72xbf16>, vector<72x768xbf16>, vector<8x768xf32> -> vector<8x768xf32>
    %c0_39 = arith.constant 0 : index
    %c0_40 = arith.constant 0 : index
    %36 = vector.load %arg5[%c0_39, %c0_40] : memref<8x1xf32, #tpu.memory_space<vmem>>, vector<8x1xf32>
    %37 = vector.broadcast %36 : vector<8x1xf32> to vector<8x768xf32>
    %38 = arith.addf %35, %37 : vector<8x768xf32>
    %c0_41 = arith.constant 0 : index
    %c0_42 = arith.constant 0 : index
    %39 = vector.load %arg8[%c0_41, %c0_42] : memref<16x768xf32, #tpu.memory_space<vmem>>, vector<16x768xf32>
    %c0_43 = arith.constant 0 : index
    %c0_44 = arith.constant 0 : index
    %40 = vector.load %arg6[%c0_43, %c0_44] : memref<8x16xbf16, #tpu.memory_space<vmem>>, vector<8x16xbf16>
    %41 = arith.truncf %39 : vector<16x768xf32> to vector<16x768xbf16>
    %cst_45 = arith.constant dense<0.000000e+00> : vector<8x768xf32>
    %42 = tpu.matmul %40, %41, %cst_45 {dimension_numbers = #tpu.dot_dimension_numbers<[1], [0], [0], [1], [0, 0, 1, 1], [], []>} : vector<8x16xbf16>, vector<16x768xbf16>, vector<8x768xf32> -> vector<8x768xf32>
    %43 = arith.addf %38, %42 : vector<8x768xf32>
    %c0_46 = arith.constant 0 : index
    %c0_47 = arith.constant 0 : index
    %44 = vector.load %arg7[%c0_46, %c0_47] : memref<8x1xf32, #tpu.memory_space<vmem>>, vector<8x1xf32>
    %45 = vector.broadcast %44 : vector<8x1xf32> to vector<8x768xf32>
    %46 = arith.addf %43, %45 : vector<8x768xf32>
    %c0_48 = arith.constant 0 : index
    %c19_49 = arith.constant 19 : index
    %47 = vector.load %arg9[%c0_48, %c19_49] : memref<1x806xbf16, #tpu.memory_space<vmem>>, vector<1x768xbf16>
    %48 = arith.extf %47 : vector<1x768xbf16> to vector<1x768xf32>
    %49 = vector.broadcast %48 : vector<1x768xf32> to vector<8x768xf32>
    %50 = arith.mulf %46, %49 : vector<8x768xf32>
    %c0_50 = arith.constant 0 : index
    %c0_51 = arith.constant 0 : index
    %51 = vector.load %arg10[%c0_50, %c0_51] : memref<8x768xf32, #tpu.memory_space<vmem>>, vector<8x768xf32>
    tpu.vector_store %arg10[%c0_50, %c0_51], %50 {strides = array<i32>} : memref<8x768xf32, #tpu.memory_space<vmem>>, vector<8x768xf32>,
    return
  }
  func.func @transform_0(%arg0: i32) -> (i32, i32) {
    %c0_i32 = arith.constant 0 : i32
    %c0_i32_0 = arith.constant 0 : i32
    %c0_i32_1 = arith.constant 0 : i32
    return %c0_i32, %c0_i32_0 : i32, i32
  }
  func.func @transform_1(%arg0: i32) -> (i32, i32) {
    %c0_i32 = arith.constant 0 : i32
    %c0_i32_0 = arith.constant 0 : i32
    %c0_i32_1 = arith.constant 0 : i32
    return %c0_i32, %c0_i32_0 : i32, i32
  }
  func.func @transform_2(%arg0: i32) -> (i32, i32) {
    %c0_i32 = arith.constant 0 : i32
    %c0_i32_0 = arith.constant 0 : i32
    %c0_i32_1 = arith.constant 0 : i32
    return %c0_i32, %c0_i32_0 : i32, i32
  }
  func.func @transform_3(%arg0: i32) -> (i32, i32) {
    %c0_i32 = arith.constant 0 : i32
    %c0_i32_0 = arith.constant 0 : i32
    %c0_i32_1 = arith.constant 0 : i32
    return %c0_i32, %c0_i32_0 : i32, i32
  }
  func.func @transform_4(%arg0: i32) -> (i32, i32) {
    %c0_i32 = arith.constant 0 : i32
    %c0_i32_0 = arith.constant 0 : i32
    %c0_i32_1 = arith.constant 0 : i32
    return %c0_i32, %c0_i32_0 : i32, i32
  }
  func.func @transform_5(%arg0: i32) -> (i32, i32) {
    %c0_i32 = arith.constant 0 : i32
    %c0_i32_0 = arith.constant 0 : i32
    %c0_i32_1 = arith.constant 0 : i32
    return %c0_i32, %c0_i32_0 : i32, i32
  }
  func.func @transform_6(%arg0: i32) -> (i32, i32) {
    %c0_i32 = arith.constant 0 : i32
    %c0_i32_0 = arith.constant 0 : i32
    %c0_i32_1 = arith.constant 0 : i32
    return %c0_i32, %c0_i32_0 : i32, i32
  }
  func.func @transform_7(%arg0: i32) -> (i32, i32) {
    %c0_i32 = arith.constant 0 : i32
    %c0_i32_0 = arith.constant 0 : i32
    return %c0_i32, %arg0 : i32, i32
  }
  func.func @transform_8(%arg0: i32) -> (i32, i32) {
    %c0_i32 = arith.constant 0 : i32
    %c0_i32_0 = arith.constant 0 : i32
    %c0_i32_1 = arith.constant 0 : i32
    return %c0_i32, %c0_i32_0 : i32, i32
  }
  func.func @transform_9(%arg0: i32) -> (i32, i32) {
    %c0_i32 = arith.constant 0 : i32
    %c0_i32_0 = arith.constant 0 : i32
    return %c0_i32, %arg0 : i32, i32
  }
}

</mosaic_0001>

<llo_original>
// kernel: meblock_forward.18
$region0: #{meblock_forward.18}
  #allocation0 [shape = 'u32[]', space=smem, size = 0x4, offset = 0x4, fixed_abs, tag = 'smem constant byte address 0x4 - core index']
  #allocation1 [shape = 'u32[144,128]{1,0:T(1,128)}', space=vmem, size = 0x12000, scoped, tag = 'internal scratch']
  %s0 = inlined_call_operand.vmem [shape: f32[8,278], index: 0, kind: input, shape index: {}]
  %s1 = inlined_call_operand.vmem [shape: bf16[8,72], index: 1, kind: input, shape index: {}]
  %s2 = inlined_call_operand.vmem [shape: f32[8,1], index: 2, kind: input, shape index: {}]
  %s3 = inlined_call_operand.vmem [shape: f32[8,256], index: 3, kind: input, shape index: {}]
  %s4 = inlined_call_operand.vmem [shape: bf16[1,256], index: 4, kind: input, shape index: {}]
  %s5 = inlined_call_operand.vmem [shape: f32[8,256], index: 5, kind: output, shape index: {}]
  %s6 = sld [smem:[#allocation0]]
  $region30: #{meblock_forward.18} parent=0
    _
  %s8 = ssub.s32 1, %s6
  %s9 = scalar_select 0, %s8, %s6
  // Predicated region
  $region2: #{meblock_forward.18} parent=0 // pred_check
    _
  $region3: #{meblock_forward.18} parent=0 // pred_check_branch
    %11 = sbr.rel (0) target = $region5
  $region4: #{meblock_forward.18} parent=0 // pred_region
    _
  $region5: #{meblock_forward.18} parent=0 // pred_fallthru
    _
  // Predicated region
  $region6: #{meblock_forward.18} parent=0 // pred_check
    _
  $region7: #{meblock_forward.18} parent=0 // pred_check_branch
    %13 = sbr.rel (0) target = $region9
  $region8: #{meblock_forward.18} parent=0 // pred_region
    _
  $region9: #{meblock_forward.18} parent=0 // pred_fallthru
    _
  // Predicated region
  $region10: #{meblock_forward.18} parent=0 // pred_check
    _
  $region11: #{meblock_forward.18} parent=0 // pred_check_branch
    %15 = sbr.rel (0) target = $region13
  $region12: #{meblock_forward.18} parent=0 // pred_region
    _
  $region13: #{meblock_forward.18} parent=0 // pred_fallthru
    _
  // Predicated region
  $region14: #{meblock_forward.18} parent=0 // pred_check
    _
  $region15: #{meblock_forward.18} parent=0 // pred_check_branch
    %17 = sbr.rel (0) target = $region17
  $region16: #{meblock_forward.18} parent=0 // pred_region
    _
  $region17: #{meblock_forward.18} parent=0 // pred_fallthru
    _
  // Predicated region
  $region18: #{meblock_forward.18} parent=0 // pred_check
    _
  $region19: #{meblock_forward.18} parent=0 // pred_check_branch
    %19 = sbr.rel (0) target = $region21
  $region20: #{meblock_forward.18} parent=0 // pred_region
    _
  $region21: #{meblock_forward.18} parent=0 // pred_fallthru
    _
  %v21 = vld [vmem:[%s0] sm:$0xff]
  %v22 = vld [vmem:[%s0 + $0x8] sm:$0xff]
  %v23 = vld [vmem:[%s0 + $0x10] sm:$0xff]
  %27 = vrot.lane.b32.xlu0 %v21, 127
  %v28 = vpop.permute.xlu0 %27
  %29 = vrot.lane.b32.xlu0 %v22, 127
  %v30 = vpop.permute.xlu0 %29
  %31 = vrot.lane.b32.xlu0 %v23, 127
  %v32 = vpop.permute.xlu0 %31
  %vm33 = vcmask 1039360
  %v34 = vsel %vm33, %v28, %v30
  %v35 = vsel %vm33, %v30, %v32
  %38 = vrot.lane.b32.xlu0 %v21, 126
  %v39 = vpop.permute.xlu0 %38
  %40 = vrot.lane.b32.xlu0 %v22, 126
  %v41 = vpop.permute.xlu0 %40
  %42 = vrot.lane.b32.xlu0 %v23, 126
  %v43 = vpop.permute.xlu0 %42
  %vm44 = vcmask 1031168
  %v45 = vsel %vm44, %v39, %v41
  %v46 = vsel %vm44, %v41, %v43
  %49 = vrot.lane.b32.xlu0 %v21, 118
  %v50 = vpop.permute.xlu0 %49
  %51 = vrot.lane.b32.xlu0 %v22, 118
  %v52 = vpop.permute.xlu0 %51
  %53 = vrot.lane.b32.xlu0 %v23, 118
  %v54 = vpop.permute.xlu0 %53
  %vm55 = vcmask 965632
  %v56 = vsel %vm55, %v50, %v52
  %v57 = vsel %vm55, %v52, %v54
  %60 = vrot.lane.b32.xlu0 %v21, 117
  %v61 = vpop.permute.xlu0 %60
  %62 = vrot.lane.b32.xlu0 %v22, 117
  %v63 = vpop.permute.xlu0 %62
  %64 = vrot.lane.b32.xlu0 %v23, 117
  %v65 = vpop.permute.xlu0 %64
  %vm66 = vcmask 957440
  %v67 = vsel %vm66, %v61, %v63
  %v68 = vsel %vm66, %v63, %v65
  %71 = vrot.lane.b32.xlu0 %v21, 116
  %v72 = vpop.permute.xlu0 %71
  %73 = vrot.lane.b32.xlu0 %v22, 116
  %v74 = vpop.permute.xlu0 %73
  %75 = vrot.lane.b32.xlu0 %v23, 116
  %v76 = vpop.permute.xlu0 %75
  %vm77 = vcmask 949248
  %v78 = vsel %vm77, %v72, %v74
  %v79 = vsel %vm77, %v74, %v76
  %82 = vrot.lane.b32.xlu0 %v21, 108
  %v83 = vpop.permute.xlu0 %82
  %84 = vrot.lane.b32.xlu0 %v22, 108
  %v85 = vpop.permute.xlu0 %84
  %86 = vrot.lane.b32.xlu0 %v23, 108
  %v87 = vpop.permute.xlu0 %86
  %vm88 = vcmask 883712
  %v89 = vsel %vm88, %v83, %v85
  %v90 = vsel %vm88, %v85, %v87
  %93 = vrot.lane.b32.xlu0 %v21, 107
  %v94 = vpop.permute.xlu0 %93
  %95 = vrot.lane.b32.xlu0 %v22, 107
  %v96 = vpop.permute.xlu0 %95
  %97 = vrot.lane.b32.xlu0 %v23, 107
  %v98 = vpop.permute.xlu0 %97
  %vm99 = vcmask 875520
  %v100 = vsel %vm99, %v94, %v96
  %v101 = vsel %vm99, %v96, %v98
  %104 = vrot.lane.b32.xlu0 %v21, 106
  %v105 = vpop.permute.xlu0 %104
  %106 = vrot.lane.b32.xlu0 %v22, 106
  %v107 = vpop.permute.xlu0 %106
  %108 = vrot.lane.b32.xlu0 %v23, 106
  %v109 = vpop.permute.xlu0 %108
  %vm110 = vcmask 867328
  %v111 = vsel %vm110, %v105, %v107
  %v112 = vsel %vm110, %v107, %v109
  %v115 = vld [vmem:[%s1] sm:$0xf]
  %v116 = vpack.c.bf16 %v34, %v21
  %v117 = vpack.c.bf16 %v35, %v22
  %v118 = vpack.c.bf16 %v56, %v45
  %v119 = vpack.c.bf16 %v57, %v46
  %v120 = vpack.c.bf16 %v78, %v67
  %v121 = vpack.c.bf16 %v79, %v68
  %v122 = vpack.c.bf16 %v100, %v89
  %v123 = vpack.c.bf16 %v101, %v90
  %v124 = vpack.c.bf16 %v111, %v111
  %v125 = vpack.c.bf16 %v112, %v112
  %v126 = vld [vmem:[%s2] sm:$0xff]
  %128 = vset.pattern.permute.xlu0 0
  %129 = vperm.xlu0 %128, %v126
  %v130 = vpop.permute.xlu0 %129
  %vm132 = vcmask 588800
  %v134 = vsel %vm132, %v115, 0
  %vm136 = vcmask 1043456
  %v138 = vsel %vm136, %v124, 0
  %v141 = vsel %vm136, %v125, 0
  %143 = vmatprep.subr.bf16.mxu0 %v117
  %144 = vmatpush1.bf16.msra.mxu0 %v116
  %145 = vmatprep.subr.bf16.mxu0 %v119
  %146 = vmatpush1.bf16.msra.mxu0 %v118
  %147 = vmatprep.subr.bf16.mxu0 %v121
  %148 = vmatpush1.bf16.msra.mxu0 %v120
  %149 = vmatprep.subr.bf16.mxu0 %v123
  %150 = vmatpush1.bf16.msra.mxu0 %v122
  %151 = vmatprep.subr.bf16.mxu0 %v141
  %152 = vmatpush1.bf16.msra.mxu0 %v138
  %153 = vmatprep.subr.bf16.mxu0 0
  %154 = vmatpush1.bf16.msra.mxu0 0
  %155 = vmatprep.subr.bf16.mxu0 0
  %156 = vmatpush1.bf16.msra.mxu0 0
  %157 = vmatprep.subr.bf16.mxu0 0
  %158 = vmatpush1.bf16.msra.mxu0 0
  %159 = vmatprep.subr.bf16.mxu0 0
  %160 = vmatpush1.bf16.msra.mxu0 0
  %161 = vmatprep.subr.bf16.mxu0 0
  %162 = vmatpush1.bf16.msra.mxu0 0
  %163 = vmatprep.subr.bf16.mxu0 0
  %164 = vmatpush1.bf16.msra.mxu0 0
  %165 = vmatprep.subr.bf16.mxu0 0
  %166 = vmatpush1.bf16.msra.mxu0 0
  %167 = vmatprep.subr.bf16.mxu0 0
  %168 = vmatpush1.bf16.msra.mxu0 0
  %169 = vmatprep.subr.bf16.mxu0 0
  %170 = vmatpush1.bf16.msra.mxu0 0
  %171 = vmatprep.subr.bf16.mxu0 0
  %172 = vmatpush1.bf16.msra.mxu0 0
  %173 = vmatprep.subr.bf16.mxu0 0
  %174 = vmatpush1.bf16.msra.mxu0 0
  %175 = vmatprep.mubr.bf16.mxu0 0
  %176 = vmatmul.mubr.bf16.gmra.mrb[0].mxu0 %v134
  %v177 = vpop.f32.mrb[0].mxu0
  %v178 = vadd.f32 %v130, %v177
  %v179 = vpop.f32.mrb[0].mxu0
  %v180 = vadd.f32 %v130, %v179
  %v181 = vpop.f32.mrb[0].mxu0
  %v182 = vpop.f32.mrb[0].mxu0
  %183 = vdwg.mxu0
  %v184 = vld [vmem:[%s3] sm:$0xff]
  %v185 = vld [vmem:[%s3 + $0x8] sm:$0xff]
  %v186 = vadd.f32 %v178, %v184
  %v187 = vadd.f32 %v180, %v185
  %v188 = vld [vmem:[%s4] sm:$0x3]
  %v189 = vunpack.c.l.bf16 %v188
  %v191 = vlaneseq
  %v192 = vshrl.u32 %v191, 7
  %v193 = vsub.s32 0, %v192
  %v194 = vrot.slane %v189, %v193
  %v195 = vlaneseq
  %v196 = vshrl.u32 %v195, 7
  %v197 = vsub.s32 2, %v196
  %v198 = vrot.slane %v189, %v197
  %v201 = vlaneseq
  %v202 = vshrl.u32 %v201, 7
  %v203 = vsub.s32 0, %v202
  %v204 = vrot.slane %v194, %v203
  %v205 = vlaneseq
  %v206 = vshrl.u32 %v205, 7
  %v207 = vsub.s32 0, %v206
  %v208 = vrot.slane %v198, %v207
  %v209 = vmul.f32 %v186, %v204
  %v210 = vmul.f32 %v187, %v208
  %211 = vst [vmem:[%s5] sm:$0xff] %v209
  %212 = vst [vmem:[%s5 + $0x8] sm:$0xff] %v210
  // Predicated region
  $region22: #{meblock_forward.18} parent=0 // pred_check
    _
  $region23: #{meblock_forward.18} parent=0 // pred_check_branch
    %214 = sbr.rel (0) target = $region25
  $region24: #{meblock_forward.18} parent=0 // pred_region
    _
  $region25: #{meblock_forward.18} parent=0 // pred_fallthru
    _
  // Predicated region
  $region26: #{meblock_forward.18} parent=0 // pred_check
    _
  $region27: #{meblock_forward.18} parent=0 // pred_check_branch
    %216 = sbr.rel (0) target = $region29
  $region28: #{meblock_forward.18} parent=0 // pred_region
    _
  $region29: #{meblock_forward.18} parent=0 // pred_fallthru
    _

// kernel: meblock_forward.16
$region0: #{meblock_forward.16}
  #allocation0 [shape = 'u32[]', space=smem, size = 0x4, offset = 0x4, fixed_abs, tag = 'smem constant byte address 0x4 - core index']
  #allocation1 [shape = 'u32[144,128]{1,0:T(1,128)}', space=vmem, size = 0x12000, scoped, tag = 'internal scratch']
  #allocation2 [shape = 'f32[8,278]{1,0:T(8,128)}', space=vmem, size = 0x3000, scoped, tag = 'scratch operand']
  %s0 = inlined_call_operand.vmem [shape: f32[8,300], index: 0, kind: input, shape index: {}]
  %s1 = inlined_call_operand.vmem [shape: bf16[8,72], index: 1, kind: input, shape index: {}]
  %s2 = inlined_call_operand.vmem [shape: f32[8,1], index: 2, kind: input, shape index: {}]
  %s3 = inlined_call_operand.vmem [shape: bf16[8,72], index: 3, kind: input, shape index: {}]
  %s4 = inlined_call_operand.vmem [shape: f32[8,1], index: 4, kind: input, shape index: {}]
  %s5 = inlined_call_operand.vmem [shape: f32[8,256], index: 5, kind: input, shape index: {}]
  %s6 = inlined_call_operand.vmem [shape: bf16[1,278], index: 6, kind: input, shape index: {}]
  %s7 = inlined_call_operand.vmem [shape: f32[8,256], index: 7, kind: output, shape index: {}]
  %s8 = sld [smem:[#allocation0]]
  $region38: #{meblock_forward.16} parent=0
    _
  %s10 = ssub.s32 1, %s8
  %s11 = scalar_select 0, %s10, %s8
  // Predicated region
  $region2: #{meblock_forward.16} parent=0 // pred_check
    _
  $region3: #{meblock_forward.16} parent=0 // pred_check_branch
    %13 = sbr.rel (0) target = $region5
  $region4: #{meblock_forward.16} parent=0 // pred_region
    _
  $region5: #{meblock_forward.16} parent=0 // pred_fallthru
    _
  // Predicated region
  $region6: #{meblock_forward.16} parent=0 // pred_check
    _
  $region7: #{meblock_forward.16} parent=0 // pred_check_branch
    %15 = sbr.rel (0) target = $region9
  $region8: #{meblock_forward.16} parent=0 // pred_region
    _
  $region9: #{meblock_forward.16} parent=0 // pred_fallthru
    _
  // Predicated region
  $region10: #{meblock_forward.16} parent=0 // pred_check
    _
  $region11: #{meblock_forward.16} parent=0 // pred_check_branch
    %17 = sbr.rel (0) target = $region13
  $region12: #{meblock_forward.16} parent=0 // pred_region
    _
  $region13: #{meblock_forward.16} parent=0 // pred_fallthru
    _
  // Predicated region
  $region14: #{meblock_forward.16} parent=0 // pred_check
    _
  $region15: #{meblock_forward.16} parent=0 // pred_check_branch
    %19 = sbr.rel (0) target = $region17
  $region16: #{meblock_forward.16} parent=0 // pred_region
    _
  $region17: #{meblock_forward.16} parent=0 // pred_fallthru
    _
  // Predicated region
  $region18: #{meblock_forward.16} parent=0 // pred_check
    _
  $region19: #{meblock_forward.16} parent=0 // pred_check_branch
    %21 = sbr.rel (0) target = $region21
  $region20: #{meblock_forward.16} parent=0 // pred_region
    _
  $region21: #{meblock_forward.16} parent=0 // pred_fallthru
    _
  // Predicated region
  $region22: #{meblock_forward.16} parent=0 // pred_check
    _
  $region23: #{meblock_forward.16} parent=0 // pred_check_branch
    %23 = sbr.rel (0) target = $region25
  $region24: #{meblock_forward.16} parent=0 // pred_region
    _
  $region25: #{meblock_forward.16} parent=0 // pred_fallthru
    _
  // Predicated region
  $region26: #{meblock_forward.16} parent=0 // pred_check
    _
  $region27: #{meblock_forward.16} parent=0 // pred_check_branch
    %25 = sbr.rel (0) target = $region29
  $region28: #{meblock_forward.16} parent=0 // pred_region
    _
  $region29: #{meblock_forward.16} parent=0 // pred_fallthru
    _
  %v27 = vld [vmem:[%s0] sm:$0xff]
  %v28 = vld [vmem:[%s0 + $0x8] sm:$0xff]
  %v29 = vld [vmem:[%s0 + $0x10] sm:$0xff]
  %33 = vrot.lane.b32.xlu0 %v27, 127
  %v34 = vpop.permute.xlu0 %33
  %35 = vrot.lane.b32.xlu0 %v28, 127
  %v36 = vpop.permute.xlu0 %35
  %37 = vrot.lane.b32.xlu0 %v29, 127
  %v38 = vpop.permute.xlu0 %37
  %vm39 = vcmask 1039360
  %v40 = vsel %vm39, %v34, %v36
  %v41 = vsel %vm39, %v36, %v38
  %45 = vrot.lane.b32.xlu0 %v27, 126
  %v46 = vpop.permute.xlu0 %45
  %47 = vrot.lane.b32.xlu0 %v28, 126
  %v48 = vpop.permute.xlu0 %47
  %49 = vrot.lane.b32.xlu0 %v29, 126
  %v50 = vpop.permute.xlu0 %49
  %vm51 = vcmask 1031168
  %v52 = vsel %vm51, %v46, %v48
  %v53 = vsel %vm51, %v48, %v50
  %57 = vrot.lane.b32.xlu0 %v27, 118
  %v58 = vpop.permute.xlu0 %57
  %59 = vrot.lane.b32.xlu0 %v28, 118
  %v60 = vpop.permute.xlu0 %59
  %61 = vrot.lane.b32.xlu0 %v29, 118
  %v62 = vpop.permute.xlu0 %61
  %vm63 = vcmask 965632
  %v64 = vsel %vm63, %v58, %v60
  %v65 = vsel %vm63, %v60, %v62
  %69 = vrot.lane.b32.xlu0 %v27, 117
  %v70 = vpop.permute.xlu0 %69
  %71 = vrot.lane.b32.xlu0 %v28, 117
  %v72 = vpop.permute.xlu0 %71
  %73 = vrot.lane.b32.xlu0 %v29, 117
  %v74 = vpop.permute.xlu0 %73
  %vm75 = vcmask 957440
  %v76 = vsel %vm75, %v70, %v72
  %v77 = vsel %vm75, %v72, %v74
  %81 = vrot.lane.b32.xlu0 %v27, 116
  %v82 = vpop.permute.xlu0 %81
  %83 = vrot.lane.b32.xlu0 %v28, 116
  %v84 = vpop.permute.xlu0 %83
  %85 = vrot.lane.b32.xlu0 %v29, 116
  %v86 = vpop.permute.xlu0 %85
  %vm87 = vcmask 949248
  %v88 = vsel %vm87, %v82, %v84
  %v89 = vsel %vm87, %v84, %v86
  %93 = vrot.lane.b32.xlu0 %v27, 108
  %v94 = vpop.permute.xlu0 %93
  %95 = vrot.lane.b32.xlu0 %v28, 108
  %v96 = vpop.permute.xlu0 %95
  %97 = vrot.lane.b32.xlu0 %v29, 108
  %v98 = vpop.permute.xlu0 %97
  %vm99 = vcmask 883712
  %v100 = vsel %vm99, %v94, %v96
  %v101 = vsel %vm99, %v96, %v98
  %105 = vrot.lane.b32.xlu0 %v27, 107
  %v106 = vpop.permute.xlu0 %105
  %107 = vrot.lane.b32.xlu0 %v28, 107
  %v108 = vpop.permute.xlu0 %107
  %109 = vrot.lane.b32.xlu0 %v29, 107
  %v110 = vpop.permute.xlu0 %109
  %vm111 = vcmask 875520
  %v112 = vsel %vm111, %v106, %v108
  %v113 = vsel %vm111, %v108, %v110
  %117 = vrot.lane.b32.xlu0 %v27, 106
  %v118 = vpop.permute.xlu0 %117
  %119 = vrot.lane.b32.xlu0 %v28, 106
  %v120 = vpop.permute.xlu0 %119
  %121 = vrot.lane.b32.xlu0 %v29, 106
  %v122 = vpop.permute.xlu0 %121
  %vm123 = vcmask 867328
  %v124 = vsel %vm123, %v118, %v120
  %v125 = vsel %vm123, %v120, %v122
  %v129 = vld [vmem:[%s1] sm:$0xf]
  %v130 = vpack.c.bf16 %v40, %v27
  %v131 = vpack.c.bf16 %v41, %v28
  %v132 = vpack.c.bf16 %v38, %v29
  %v133 = vpack.c.bf16 %v64, %v52
  %v134 = vpack.c.bf16 %v65, %v53
  %v135 = vpack.c.bf16 %v62, %v50
  %v136 = vpack.c.bf16 %v88, %v76
  %v137 = vpack.c.bf16 %v89, %v77
  %v138 = vpack.c.bf16 %v86, %v74
  %v139 = vpack.c.bf16 %v112, %v100
  %v140 = vpack.c.bf16 %v113, %v101
  %v141 = vpack.c.bf16 %v110, %v98
  %v142 = vpack.c.bf16 %v124, %v124
  %v143 = vpack.c.bf16 %v125, %v125
  %v144 = vpack.c.bf16 %v122, %v122
  %v145 = vld [vmem:[%s2] sm:$0xff]
  %147 = vset.pattern.permute.xlu0 0
  %148 = vperm.xlu0 %147, %v145
  %v149 = vpop.permute.xlu0 %148
  %vm151 = vcmask 588800
  %v153 = vsel %vm151, %v129, 0
  %vm155 = vcmask 1043456
  %v157 = vsel %vm155, %v142, 0
  %v160 = vsel %vm155, %v143, 0
  %v163 = vsel %vm155, %v144, 0
  %165 = vmatprep.subr.bf16.mxu0 %v131
  %166 = vmatpush1.bf16.msra.mxu0 %v130
  %167 = vmatprep.subr.bf16.mxu0 %v134
  %168 = vmatpush1.bf16.msra.mxu0 %v133
  %169 = vmatprep.subr.bf16.mxu0 %v137
  %170 = vmatpush1.bf16.msra.mxu0 %v136
  %171 = vmatprep.subr.bf16.mxu0 %v140
  %172 = vmatpush1.bf16.msra.mxu0 %v139
  %173 = vmatprep.subr.bf16.mxu0 %v160
  %174 = vmatpush1.bf16.msra.mxu0 %v157
  %175 = vmatprep.subr.bf16.mxu0 0
  %176 = vmatpush1.bf16.msra.mxu0 0
  %177 = vmatprep.subr.bf16.mxu0 0
  %178 = vmatpush1.bf16.msra.mxu0 0
  %179 = vmatprep.subr.bf16.mxu0 0
  %180 = vmatpush1.bf16.msra.mxu0 0
  %181 = vmatprep.subr.bf16.mxu0 0
  %182 = vmatpush1.bf16.msra.mxu0 0
  %183 = vmatprep.subr.bf16.mxu0 0
  %184 = vmatpush1.bf16.msra.mxu0 0
  %185 = vmatprep.subr.bf16.mxu0 0
  %186 = vmatpush1.bf16.msra.mxu0 0
  %187 = vmatprep.subr.bf16.mxu0 0
  %188 = vmatpush1.bf16.msra.mxu0 0
  %189 = vmatprep.subr.bf16.mxu0 0
  %190 = vmatpush1.bf16.msra.mxu0 0
  %191 = vmatprep.subr.bf16.mxu0 0
  %192 = vmatpush1.bf16.msra.mxu0 0
  %193 = vmatprep.subr.bf16.mxu0 0
  %194 = vmatpush1.bf16.msra.mxu0 0
  %195 = vmatprep.subr.bf16.mxu0 0
  %196 = vmatpush1.bf16.msra.mxu0 0
  %197 = vmatprep.mubr.bf16.mxu0 0
  %198 = vmatmul.mubr.bf16.gmra.mrb[0].mxu0 %v153
  %v199 = vpop.f32.mrb[0].mxu0
  %v200 = vadd.f32 %v149, %v199
  %v201 = vpop.f32.mrb[0].mxu0
  %v202 = vadd.f32 %v149, %v201
  %v203 = vpop.f32.mrb[0].mxu0
  %v204 = vpop.f32.mrb[0].mxu0
  %205 = vdwg.mxu0
  %206 = vmatprep.subr.bf16.mxu0 0
  %207 = vmatpush1.bf16.msra.mxu0 %v132
  %208 = vmatprep.subr.bf16.mxu0 0
  %209 = vmatpush1.bf16.msra.mxu0 %v135
  %210 = vmatprep.subr.bf16.mxu0 0
  %211 = vmatpush1.bf16.msra.mxu0 %v138
  %212 = vmatprep.subr.bf16.mxu0 0
  %213 = vmatpush1.bf16.msra.mxu0 %v141
  %214 = vmatprep.subr.bf16.mxu0 0
  %215 = vmatpush1.bf16.msra.mxu0 %v163
  %216 = vmatprep.subr.bf16.mxu0 0
  %217 = vmatpush1.bf16.msra.mxu0 0
  %218 = vmatprep.subr.bf16.mxu0 0
  %219 = vmatpush1.bf16.msra.mxu0 0
  %220 = vmatprep.subr.bf16.mxu0 0
  %221 = vmatpush1.bf16.msra.mxu0 0
  %222 = vmatprep.subr.bf16.mxu0 0
  %223 = vmatpush1.bf16.msra.mxu0 0
  %224 = vmatprep.subr.bf16.mxu0 0
  %225 = vmatpush1.bf16.msra.mxu0 0
  %226 = vmatprep.subr.bf16.mxu0 0
  %227 = vmatpush1.bf16.msra.mxu0 0
  %228 = vmatprep.subr.bf16.mxu0 0
  %229 = vmatpush1.bf16.msra.mxu0 0
  %230 = vmatprep.subr.bf16.mxu0 0
  %231 = vmatpush1.bf16.msra.mxu0 0
  %232 = vmatprep.subr.bf16.mxu0 0
  %233 = vmatpush1.bf16.msra.mxu0 0
  %234 = vmatprep.subr.bf16.mxu0 0
  %235 = vmatpush1.bf16.msra.mxu0 0
  %236 = vmatprep.subr.bf16.mxu0 0
  %237 = vmatpush1.bf16.msra.mxu0 0
  %238 = vmatprep.mubr.bf16.mxu0 0
  %239 = vmatmul.mubr.bf16.gmra.mrb[0].mxu0 %v153
  %v240 = vpop.f32.mrb[0].mxu0
  %v241 = vadd.f32 %v149, %v240
  %v242 = vpop.f32.mrb[0].mxu0
  %v243 = vpop.f32.mrb[0].mxu0
  %v244 = vpop.f32.mrb[0].mxu0
  %245 = vdwg.mxu0
  %v246 = vmax.f32 %v200, 0.0
  %v247 = vmax.f32 %v202, 0.0
  %v248 = vmax.f32 %v241, 0.0
  %v249 = vld [vmem:[%s6] sm:$0x7]
  %v250 = vunpack.c.l.bf16 %v249
  %v252 = vlaneseq
  %v253 = vshrl.u32 %v252, 7
  %v254 = vsub.s32 0, %v253
  %v255 = vrot.slane %v250, %v254
  %v256 = vlaneseq
  %v257 = vshrl.u32 %v256, 7
  %v258 = vsub.s32 2, %v257
  %v259 = vrot.slane %v250, %v258
  %v260 = vlaneseq
  %v261 = vshrl.u32 %v260, 7
  %v262 = vsub.s32 4, %v261
  %v263 = vrot.slane %v250, %v262
  %v267 = vlaneseq
  %v268 = vshrl.u32 %v267, 7
  %v269 = vsub.s32 0, %v268
  %v270 = vrot.slane %v255, %v269
  %v271 = vlaneseq
  %v272 = vshrl.u32 %v271, 7
  %v273 = vsub.s32 0, %v272
  %v274 = vrot.slane %v259, %v273
  %v275 = vlaneseq
  %v276 = vshrl.u32 %v275, 7
  %v277 = vsub.s32 0, %v276
  %v278 = vrot.slane %v263, %v277
  %v279 = vmul.f32 %v246, %v270
  %v280 = vmul.f32 %v247, %v274
  %v281 = vmul.f32 %v248, %v278
  %282 = vst [vmem:[#allocation2] sm:$0xff] %v279
  %283 = vst [vmem:[#allocation2 + $0x8] sm:$0xff] %v280
  %vm284 = vcmask 179200
  %285 = vst.msk [vmem:[#allocation2 + $0x10] sm:$0xff] %vm284, %v281
  %v286 = vld [vmem:[#allocation2] sm:$0xff]
  %v287 = vld [vmem:[#allocation2 + $0x8] sm:$0xff]
  %v288 = vld [vmem:[#allocation2 + $0x10] sm:$0xff]
  %292 = vrot.lane.b32.xlu0 %v286, 127
  %v293 = vpop.permute.xlu0 %292
  %294 = vrot.lane.b32.xlu0 %v287, 127
  %v295 = vpop.permute.xlu0 %294
  %296 = vrot.lane.b32.xlu0 %v288, 127
  %v297 = vpop.permute.xlu0 %296
  %v298 = vsel %vm39, %v293, %v295
  %v299 = vsel %vm39, %v295, %v297
  %302 = vrot.lane.b32.xlu0 %v286, 126
  %v303 = vpop.permute.xlu0 %302
  %304 = vrot.lane.b32.xlu0 %v287, 126
  %v305 = vpop.permute.xlu0 %304
  %306 = vrot.lane.b32.xlu0 %v288, 126
  %v307 = vpop.permute.xlu0 %306
  %v308 = vsel %vm51, %v303, %v305
  %v309 = vsel %vm51, %v305, %v307
  %312 = vrot.lane.b32.xlu0 %v286, 118
  %v313 = vpop.permute.xlu0 %312
  %314 = vrot.lane.b32.xlu0 %v287, 118
  %v315 = vpop.permute.xlu0 %314
  %316 = vrot.lane.b32.xlu0 %v288, 118
  %v317 = vpop.permute.xlu0 %316
  %v318 = vsel %vm63, %v313, %v315
  %v319 = vsel %vm63, %v315, %v317
  %322 = vrot.lane.b32.xlu0 %v286, 117
  %v323 = vpop.permute.xlu0 %322
  %324 = vrot.lane.b32.xlu0 %v287, 117
  %v325 = vpop.permute.xlu0 %324
  %326 = vrot.lane.b32.xlu0 %v288, 117
  %v327 = vpop.permute.xlu0 %326
  %v328 = vsel %vm75, %v323, %v325
  %v329 = vsel %vm75, %v325, %v327
  %332 = vrot.lane.b32.xlu0 %v286, 116
  %v333 = vpop.permute.xlu0 %332
  %334 = vrot.lane.b32.xlu0 %v287, 116
  %v335 = vpop.permute.xlu0 %334
  %336 = vrot.lane.b32.xlu0 %v288, 116
  %v337 = vpop.permute.xlu0 %336
  %v338 = vsel %vm87, %v333, %v335
  %v339 = vsel %vm87, %v335, %v337
  %342 = vrot.lane.b32.xlu0 %v286, 108
  %v343 = vpop.permute.xlu0 %342
  %344 = vrot.lane.b32.xlu0 %v287, 108
  %v345 = vpop.permute.xlu0 %344
  %346 = vrot.lane.b32.xlu0 %v288, 108
  %v347 = vpop.permute.xlu0 %346
  %v348 = vsel %vm99, %v343, %v345
  %v349 = vsel %vm99, %v345, %v347
  %352 = vrot.lane.b32.xlu0 %v286, 107
  %v353 = vpop.permute.xlu0 %352
  %354 = vrot.lane.b32.xlu0 %v287, 107
  %v355 = vpop.permute.xlu0 %354
  %356 = vrot.lane.b32.xlu0 %v288, 107
  %v357 = vpop.permute.xlu0 %356
  %v358 = vsel %vm111, %v353, %v355
  %v359 = vsel %vm111, %v355, %v357
  %362 = vrot.lane.b32.xlu0 %v286, 106
  %v363 = vpop.permute.xlu0 %362
  %364 = vrot.lane.b32.xlu0 %v287, 106
  %v365 = vpop.permute.xlu0 %364
  %366 = vrot.lane.b32.xlu0 %v288, 106
  %v367 = vpop.permute.xlu0 %366
  %v368 = vsel %vm123, %v363, %v365
  %v369 = vsel %vm123, %v365, %v367
  %v372 = vld [vmem:[%s3] sm:$0xf]
  %v373 = vpack.c.bf16 %v298, %v286
  %v374 = vpack.c.bf16 %v299, %v287
  %v375 = vpack.c.bf16 %v318, %v308
  %v376 = vpack.c.bf16 %v319, %v309
  %v377 = vpack.c.bf16 %v338, %v328
  %v378 = vpack.c.bf16 %v339, %v329
  %v379 = vpack.c.bf16 %v358, %v348
  %v380 = vpack.c.bf16 %v359, %v349
  %v381 = vpack.c.bf16 %v368, %v368
  %v382 = vpack.c.bf16 %v369, %v369
  %v383 = vld [vmem:[%s4] sm:$0xff]
  %385 = vset.pattern.permute.xlu0 0
  %386 = vperm.xlu0 %385, %v383
  %v387 = vpop.permute.xlu0 %386
  %v390 = vsel %vm151, %v372, 0
  %v393 = vsel %vm155, %v381, 0
  %v396 = vsel %vm155, %v382, 0
  %398 = vmatprep.subr.bf16.mxu0 %v374
  %399 = vmatpush1.bf16.msra.mxu0 %v373
  %400 = vmatprep.subr.bf16.mxu0 %v376
  %401 = vmatpush1.bf16.msra.mxu0 %v375
  %402 = vmatprep.subr.bf16.mxu0 %v378
  %403 = vmatpush1.bf16.msra.mxu0 %v377
  %404 = vmatprep.subr.bf16.mxu0 %v380
  %405 = vmatpush1.bf16.msra.mxu0 %v379
  %406 = vmatprep.subr.bf16.mxu0 %v396
  %407 = vmatpush1.bf16.msra.mxu0 %v393
  %408 = vmatprep.subr.bf16.mxu0 0
  %409 = vmatpush1.bf16.msra.mxu0 0
  %410 = vmatprep.subr.bf16.mxu0 0
  %411 = vmatpush1.bf16.msra.mxu0 0
  %412 = vmatprep.subr.bf16.mxu0 0
  %413 = vmatpush1.bf16.msra.mxu0 0
  %414 = vmatprep.subr.bf16.mxu0 0
  %415 = vmatpush1.bf16.msra.mxu0 0
  %416 = vmatprep.subr.bf16.mxu0 0
  %417 = vmatpush1.bf16.msra.mxu0 0
  %418 = vmatprep.subr.bf16.mxu0 0
  %419 = vmatpush1.bf16.msra.mxu0 0
  %420 = vmatprep.subr.bf16.mxu0 0
  %421 = vmatpush1.bf16.msra.mxu0 0
  %422 = vmatprep.subr.bf16.mxu0 0
  %423 = vmatpush1.bf16.msra.mxu0 0
  %424 = vmatprep.subr.bf16.mxu0 0
  %425 = vmatpush1.bf16.msra.mxu0 0
  %426 = vmatprep.subr.bf16.mxu0 0
  %427 = vmatpush1.bf16.msra.mxu0 0
  %428 = vmatprep.subr.bf16.mxu0 0
  %429 = vmatpush1.bf16.msra.mxu0 0
  %430 = vmatprep.mubr.bf16.mxu0 0
  %431 = vmatmul.mubr.bf16.gmra.mrb[0].mxu0 %v390
  %v432 = vpop.f32.mrb[0].mxu0
  %v433 = vadd.f32 %v387, %v432
  %v434 = vpop.f32.mrb[0].mxu0
  %v435 = vadd.f32 %v387, %v434
  %v436 = vpop.f32.mrb[0].mxu0
  %v437 = vpop.f32.mrb[0].mxu0
  %438 = vdwg.mxu0
  %v439 = vld [vmem:[%s5] sm:$0xff]
  %v440 = vld [vmem:[%s5 + $0x8] sm:$0xff]
  %v441 = vadd.f32 %v433, %v439
  %v442 = vadd.f32 %v435, %v440
  %v443 = vld [vmem:[%s6] sm:$0x7]
  %v444 = vunpack.c.l.bf16 %v443
  %v446 = vlaneseq
  %v447 = vshrl.u32 %v446, 7
  %v448 = vsub.s32 0, %v447
  %v449 = vrot.slane %v444, %v448
  %v450 = vlaneseq
  %v451 = vshrl.u32 %v450, 7
  %v452 = vsub.s32 2, %v451
  %v453 = vrot.slane %v444, %v452
  %v454 = vlaneseq
  %v455 = vshrl.u32 %v454, 7
  %v456 = vsub.s32 4, %v455
  %v457 = vrot.slane %v444, %v456
  %v461 = vlaneseq
  %v462 = vshrl.u32 %v461, 7
  %v463 = vsub.s32 0, %v462
  %v464 = vrot.slane %v449, %v463
  %v465 = vlaneseq
  %v466 = vshrl.u32 %v465, 7
  %v467 = vsub.s32 0, %v466
  %v468 = vrot.slane %v453, %v467
  %v469 = vlaneseq
  %v470 = vshrl.u32 %v469, 7
  %v471 = vsub.s32 0, %v470
  %v472 = vrot.slane %v457, %v471
  %476 = vrot.lane.b32.xlu0 %v464, 117
  %v477 = vpop.permute.xlu0 %476
  %478 = vrot.lane.b32.xlu0 %v468, 117
  %v479 = vpop.permute.xlu0 %478
  %480 = vrot.lane.b32.xlu0 %v472, 117
  %v481 = vpop.permute.xlu0 %480
  %v482 = vsel %vm75, %v477, %v479
  %v483 = vsel %vm75, %v479, %v481
  %v486 = vmul.f32 %v441, %v482
  %v487 = vmul.f32 %v442, %v483
  %488 = vst [vmem:[%s7] sm:$0xff] %v486
  %489 = vst [vmem:[%s7 + $0x8] sm:$0xff] %v487
  // Predicated region
  $region30: #{meblock_forward.16} parent=0 // pred_check
    _
  $region31: #{meblock_forward.16} parent=0 // pred_check_branch
    %491 = sbr.rel (0) target = $region33
  $region32: #{meblock_forward.16} parent=0 // pred_region
    _
  $region33: #{meblock_forward.16} parent=0 // pred_fallthru
    _
  // Predicated region
  $region34: #{meblock_forward.16} parent=0 // pred_check
    _
  $region35: #{meblock_forward.16} parent=0 // pred_check_branch
    %493 = sbr.rel (0) target = $region37
  $region36: #{meblock_forward.16} parent=0 // pred_region
    _
  $region37: #{meblock_forward.16} parent=0 // pred_fallthru
    _

// kernel: meblock_forward.15
$region0: #{meblock_forward.15}
  #allocation0 [shape = 'u32[]', space=smem, size = 0x4, offset = 0x4, fixed_abs, tag = 'smem constant byte address 0x4 - core index']
  #allocation1 [shape = 'u32[144,128]{1,0:T(1,128)}', space=vmem, size = 0x12000, scoped, tag = 'internal scratch']
  #allocation2 [shape = 'f32[8,278]{1,0:T(8,128)}', space=vmem, size = 0x3000, scoped, tag = 'scratch operand']
  %s0 = inlined_call_operand.vmem [shape: f32[72,278], index: 0, kind: input, shape index: {}]
  %s1 = inlined_call_operand.vmem [shape: bf16[8,72], index: 1, kind: input, shape index: {}]
  %s2 = inlined_call_operand.vmem [shape: f32[8,1], index: 2, kind: input, shape index: {}]
  %s3 = inlined_call_operand.vmem [shape: bf16[8,72], index: 3, kind: input, shape index: {}]
  %s4 = inlined_call_operand.vmem [shape: f32[8,1], index: 4, kind: input, shape index: {}]
  %s5 = inlined_call_operand.vmem [shape: bf16[8,8], index: 5, kind: input, shape index: {}]
  %s6 = inlined_call_operand.vmem [shape: f32[8,1], index: 6, kind: input, shape index: {}]
  %s7 = inlined_call_operand.vmem [shape: f32[8,256], index: 7, kind: input, shape index: {}]
  %s8 = inlined_call_operand.vmem [shape: bf16[1,278], index: 8, kind: input, shape index: {}]
  %s9 = inlined_call_operand.vmem [shape: f32[8,256], index: 9, kind: output, shape index: {}]
  %s10 = sld [smem:[#allocation0]]
  $region46: #{meblock_forward.15} parent=0
    _
  %s12 = ssub.s32 1, %s10
  %s13 = scalar_select 0, %s12, %s10
  // Predicated region
  $region2: #{meblock_forward.15} parent=0 // pred_check
    _
  $region3: #{meblock_forward.15} parent=0 // pred_check_branch
    %15 = sbr.rel (0) target = $region5
  $region4: #{meblock_forward.15} parent=0 // pred_region
    _
  $region5: #{meblock_forward.15} parent=0 // pred_fallthru
    _
  // Predicated region
  $region6: #{meblock_forward.15} parent=0 // pred_check
    _
  $region7: #{meblock_forward.15} parent=0 // pred_check_branch
    %17 = sbr.rel (0) target = $region9
  $region8: #{meblock_forward.15} parent=0 // pred_region
    _
  $region9: #{meblock_forward.15} parent=0 // pred_fallthru
    _
  // Predicated region
  $region10: #{meblock_forward.15} parent=0 // pred_check
    _
  $region11: #{meblock_forward.15} parent=0 // pred_check_branch
    %19 = sbr.rel (0) target = $region13
  $region12: #{meblock_forward.15} parent=0 // pred_region
    _
  $region13: #{meblock_forward.15} parent=0 // pred_fallthru
    _
  // Predicated region
  $region14: #{meblock_forward.15} parent=0 // pred_check
    _
  $region15: #{meblock_forward.15} parent=0 // pred_check_branch
    %21 = sbr.rel (0) target = $region17
  $region16: #{meblock_forward.15} parent=0 // pred_region
    _
  $region17: #{meblock_forward.15} parent=0 // pred_fallthru
    _
  // Predicated region
  $region18: #{meblock_forward.15} parent=0 // pred_check
    _
  $region19: #{meblock_forward.15} parent=0 // pred_check_branch
    %23 = sbr.rel (0) target = $region21
  $region20: #{meblock_forward.15} parent=0 // pred_region
    _
  $region21: #{meblock_forward.15} parent=0 // pred_fallthru
    _
  // Predicated region
  $region22: #{meblock_forward.15} parent=0 // pred_check
    _
  $region23: #{meblock_forward.15} parent=0 // pred_check_branch
    %25 = sbr.rel (0) target = $region25
  $region24: #{meblock_forward.15} parent=0 // pred_region
    _
  $region25: #{meblock_forward.15} parent=0 // pred_fallthru
    _
  // Predicated region
  $region26: #{meblock_forward.15} parent=0 // pred_check
    _
  $region27: #{meblock_forward.15} parent=0 // pred_check_branch
    %27 = sbr.rel (0) target = $region29
  $region28: #{meblock_forward.15} parent=0 // pred_region
    _
  $region29: #{meblock_forward.15} parent=0 // pred_fallthru
    _
  // Predicated region
  $region30: #{meblock_forward.15} parent=0 // pred_check
    _
  $region31: #{meblock_forward.15} parent=0 // pred_check_branch
    %29 = sbr.rel (0) target = $region33
  $region32: #{meblock_forward.15} parent=0 // pred_region
    _
  $region33: #{meblock_forward.15} parent=0 // pred_fallthru
    _
  // Predicated region
  $region34: #{meblock_forward.15} parent=0 // pred_check
    _
  $region35: #{meblock_forward.15} parent=0 // pred_check_branch
    %31 = sbr.rel (0) target = $region37
  $region36: #{meblock_forward.15} parent=0 // pred_region
    _
  $region37: #{meblock_forward.15} parent=0 // pred_fallthru
    _
  %v33 = vld [vmem:[%s0] sm:$0xff]
  %v34 = vld [vmem:[%s0 + $0x8] sm:$0xff]
  %v35 = vld [vmem:[%s0 + $0x10] sm:$0xff]
  %v36 = vld [vmem:[%s0 + $0x18] sm:$0xff]
  %v37 = vld [vmem:[%s0 + $0x20] sm:$0xff]
  %v38 = vld [vmem:[%s0 + $0x28] sm:$0xff]
  %v39 = vld [vmem:[%s0 + $0x30] sm:$0xff]
  %v40 = vld [vmem:[%s0 + $0x38] sm:$0xff]
  %v41 = vld [vmem:[%s0 + $0x40] sm:$0xff]
  %v42 = vld [vmem:[%s0 + $0x48] sm:$0xff]
  %v43 = vld [vmem:[%s0 + $0x50] sm:$0xff]
  %v44 = vld [vmem:[%s0 + $0x58] sm:$0xff]
  %v45 = vld [vmem:[%s0 + $0x60] sm:$0xff]
  %v46 = vld [vmem:[%s0 + $0x68] sm:$0xff]
  %v47 = vld [vmem:[%s0 + $0x70] sm:$0xff]
  %v48 = vld [vmem:[%s0 + $0x78] sm:$0xff]
  %v49 = vld [vmem:[%s0 + $0x80] sm:$0xff]
  %v50 = vld [vmem:[%s0 + $0x88] sm:$0xff]
  %v51 = vld [vmem:[%s0 + $0x90] sm:$0xff]
  %v52 = vld [vmem:[%s0 + $0x98] sm:$0xff]
  %v53 = vld [vmem:[%s0 + $0xa0] sm:$0xff]
  %v54 = vld [vmem:[%s0 + $0xa8] sm:$0xff]
  %v55 = vld [vmem:[%s0 + $0xb0] sm:$0xff]
  %v56 = vld [vmem:[%s0 + $0xb8] sm:$0xff]
  %v57 = vld [vmem:[%s0 + $0xc0] sm:$0xff]
  %v58 = vld [vmem:[%s0 + $0xc8] sm:$0xff]
  %v59 = vld [vmem:[%s0 + $0xd0] sm:$0xff]
  %v60 = vld [vmem:[%s1] sm:$0xf]
  %v61 = vpack.c.bf16 %v36, %v33
  %v62 = vpack.c.bf16 %v37, %v34
  %v63 = vpack.c.bf16 %v38, %v35
  %v64 = vpack.c.bf16 %v42, %v39
  %v65 = vpack.c.bf16 %v43, %v40
  %v66 = vpack.c.bf16 %v44, %v41
  %v67 = vpack.c.bf16 %v48, %v45
  %v68 = vpack.c.bf16 %v49, %v46
  %v69 = vpack.c.bf16 %v50, %v47
  %v70 = vpack.c.bf16 %v54, %v51
  %v71 = vpack.c.bf16 %v55, %v52
  %v72 = vpack.c.bf16 %v56, %v53
  %v73 = vpack.c.bf16 %v57, %v57
  %v74 = vpack.c.bf16 %v58, %v58
  %v75 = vpack.c.bf16 %v59, %v59
  %v76 = vld [vmem:[%s2] sm:$0xff]
  %78 = vset.pattern.permute.xlu0 0
  %79 = vperm.xlu0 %78, %v76
  %v80 = vpop.permute.xlu0 %79
  %vm82 = vcmask 588800
  %v84 = vsel %vm82, %v60, 0
  %vm86 = vcmask 1043456
  %v88 = vsel %vm86, %v73, 0
  %v91 = vsel %vm86, %v74, 0
  %v94 = vsel %vm86, %v75, 0
  %96 = vmatprep.subr.bf16.mxu0 %v62
  %97 = vmatpush1.bf16.msra.mxu0 %v61
  %98 = vmatprep.subr.bf16.mxu0 %v65
  %99 = vmatpush1.bf16.msra.mxu0 %v64
  %100 = vmatprep.subr.bf16.mxu0 %v68
  %101 = vmatpush1.bf16.msra.mxu0 %v67
  %102 = vmatprep.subr.bf16.mxu0 %v71
  %103 = vmatpush1.bf16.msra.mxu0 %v70
  %104 = vmatprep.subr.bf16.mxu0 %v91
  %105 = vmatpush1.bf16.msra.mxu0 %v88
  %106 = vmatprep.subr.bf16.mxu0 0
  %107 = vmatpush1.bf16.msra.mxu0 0
  %108 = vmatprep.subr.bf16.mxu0 0
  %109 = vmatpush1.bf16.msra.mxu0 0
  %110 = vmatprep.subr.bf16.mxu0 0
  %111 = vmatpush1.bf16.msra.mxu0 0
  %112 = vmatprep.subr.bf16.mxu0 0
  %113 = vmatpush1.bf16.msra.mxu0 0
  %114 = vmatprep.subr.bf16.mxu0 0
  %115 = vmatpush1.bf16.msra.mxu0 0
  %116 = vmatprep.subr.bf16.mxu0 0
  %117 = vmatpush1.bf16.msra.mxu0 0
  %118 = vmatprep.subr.bf16.mxu0 0
  %119 = vmatpush1.bf16.msra.mxu0 0
  %120 = vmatprep.subr.bf16.mxu0 0
  %121 = vmatpush1.bf16.msra.mxu0 0
  %122 = vmatprep.subr.bf16.mxu0 0
  %123 = vmatpush1.bf16.msra.mxu0 0
  %124 = vmatprep.subr.bf16.mxu0 0
  %125 = vmatpush1.bf16.msra.mxu0 0
  %126 = vmatprep.subr.bf16.mxu0 0
  %127 = vmatpush1.bf16.msra.mxu0 0
  %128 = vmatprep.mubr.bf16.mxu0 0
  %129 = vmatmul.mubr.bf16.gmra.mrb[0].mxu0 %v84
  %v130 = vpop.f32.mrb[0].mxu0
  %v131 = vadd.f32 %v80, %v130
  %v132 = vpop.f32.mrb[0].mxu0
  %v133 = vadd.f32 %v80, %v132
  %v134 = vpop.f32.mrb[0].mxu0
  %v135 = vpop.f32.mrb[0].mxu0
  %136 = vdwg.mxu0
  %137 = vmatprep.subr.bf16.mxu0 0
  %138 = vmatpush1.bf16.msra.mxu0 %v63
  %139 = vmatprep.subr.bf16.mxu0 0
  %140 = vmatpush1.bf16.msra.mxu0 %v66
  %141 = vmatprep.subr.bf16.mxu0 0
  %142 = vmatpush1.bf16.msra.mxu0 %v69
  %143 = vmatprep.subr.bf16.mxu0 0
  %144 = vmatpush1.bf16.msra.mxu0 %v72
  %145 = vmatprep.subr.bf16.mxu0 0
  %146 = vmatpush1.bf16.msra.mxu0 %v94
  %147 = vmatprep.subr.bf16.mxu0 0
  %148 = vmatpush1.bf16.msra.mxu0 0
  %149 = vmatprep.subr.bf16.mxu0 0
  %150 = vmatpush1.bf16.msra.mxu0 0
  %151 = vmatprep.subr.bf16.mxu0 0
  %152 = vmatpush1.bf16.msra.mxu0 0
  %153 = vmatprep.subr.bf16.mxu0 0
  %154 = vmatpush1.bf16.msra.mxu0 0
  %155 = vmatprep.subr.bf16.mxu0 0
  %156 = vmatpush1.bf16.msra.mxu0 0
  %157 = vmatprep.subr.bf16.mxu0 0
  %158 = vmatpush1.bf16.msra.mxu0 0
  %159 = vmatprep.subr.bf16.mxu0 0
  %160 = vmatpush1.bf16.msra.mxu0 0
  %161 = vmatprep.subr.bf16.mxu0 0
  %162 = vmatpush1.bf16.msra.mxu0 0
  %163 = vmatprep.subr.bf16.mxu0 0
  %164 = vmatpush1.bf16.msra.mxu0 0
  %165 = vmatprep.subr.bf16.mxu0 0
  %166 = vmatpush1.bf16.msra.mxu0 0
  %167 = vmatprep.subr.bf16.mxu0 0
  %168 = vmatpush1.bf16.msra.mxu0 0
  %169 = vmatprep.mubr.bf16.mxu0 0
  %170 = vmatmul.mubr.bf16.gmra.mrb[0].mxu0 %v84
  %v171 = vpop.f32.mrb[0].mxu0
  %v172 = vadd.f32 %v80, %v171
  %v173 = vpop.f32.mrb[0].mxu0
  %v174 = vpop.f32.mrb[0].mxu0
  %v175 = vpop.f32.mrb[0].mxu0
  %176 = vdwg.mxu0
  %v177 = vmax.f32 %v131, 0.0
  %v178 = vmax.f32 %v133, 0.0
  %v179 = vmax.f32 %v172, 0.0
  %v180 = vld [vmem:[%s8] sm:$0x7]
  %v181 = vunpack.c.l.bf16 %v180
  %v183 = vlaneseq
  %v184 = vshrl.u32 %v183, 7
  %v185 = vsub.s32 0, %v184
  %v186 = vrot.slane %v181, %v185
  %v187 = vlaneseq
  %v188 = vshrl.u32 %v187, 7
  %v189 = vsub.s32 2, %v188
  %v190 = vrot.slane %v181, %v189
  %v191 = vlaneseq
  %v192 = vshrl.u32 %v191, 7
  %v193 = vsub.s32 4, %v192
  %v194 = vrot.slane %v181, %v193
  %v198 = vlaneseq
  %v199 = vshrl.u32 %v198, 7
  %v200 = vsub.s32 0, %v199
  %v201 = vrot.slane %v186, %v200
  %v202 = vlaneseq
  %v203 = vshrl.u32 %v202, 7
  %v204 = vsub.s32 0, %v203
  %v205 = vrot.slane %v190, %v204
  %v206 = vlaneseq
  %v207 = vshrl.u32 %v206, 7
  %v208 = vsub.s32 0, %v207
  %v209 = vrot.slane %v194, %v208
  %v210 = vmul.f32 %v177, %v201
  %v211 = vmul.f32 %v178, %v205
  %v212 = vmul.f32 %v179, %v209
  %213 = vst [vmem:[#allocation2] sm:$0xff] %v210
  %214 = vst [vmem:[#allocation2 + $0x8] sm:$0xff] %v211
  %vm215 = vcmask 179200
  %216 = vst.msk [vmem:[#allocation2 + $0x10] sm:$0xff] %vm215, %v212
  %v217 = vld [vmem:[#allocation2] sm:$0xff]
  %v218 = vld [vmem:[#allocation2 + $0x8] sm:$0xff]
  %v219 = vld [vmem:[#allocation2 + $0x10] sm:$0xff]
  %223 = vrot.lane.b32.xlu0 %v217, 127
  %v224 = vpop.permute.xlu0 %223
  %225 = vrot.lane.b32.xlu0 %v218, 127
  %v226 = vpop.permute.xlu0 %225
  %227 = vrot.lane.b32.xlu0 %v219, 127
  %v228 = vpop.permute.xlu0 %227
  %vm229 = vcmask 1039360
  %v230 = vsel %vm229, %v224, %v226
  %v231 = vsel %vm229, %v226, %v228
  %234 = vrot.lane.b32.xlu0 %v217, 126
  %v235 = vpop.permute.xlu0 %234
  %236 = vrot.lane.b32.xlu0 %v218, 126
  %v237 = vpop.permute.xlu0 %236
  %238 = vrot.lane.b32.xlu0 %v219, 126
  %v239 = vpop.permute.xlu0 %238
  %vm240 = vcmask 1031168
  %v241 = vsel %vm240, %v235, %v237
  %v242 = vsel %vm240, %v237, %v239
  %245 = vrot.lane.b32.xlu0 %v217, 118
  %v246 = vpop.permute.xlu0 %245
  %247 = vrot.lane.b32.xlu0 %v218, 118
  %v248 = vpop.permute.xlu0 %247
  %249 = vrot.lane.b32.xlu0 %v219, 118
  %v250 = vpop.permute.xlu0 %249
  %vm251 = vcmask 965632
  %v252 = vsel %vm251, %v246, %v248
  %v253 = vsel %vm251, %v248, %v250
  %256 = vrot.lane.b32.xlu0 %v217, 117
  %v257 = vpop.permute.xlu0 %256
  %258 = vrot.lane.b32.xlu0 %v218, 117
  %v259 = vpop.permute.xlu0 %258
  %260 = vrot.lane.b32.xlu0 %v219, 117
  %v261 = vpop.permute.xlu0 %260
  %vm262 = vcmask 957440
  %v263 = vsel %vm262, %v257, %v259
  %v264 = vsel %vm262, %v259, %v261
  %267 = vrot.lane.b32.xlu0 %v217, 116
  %v268 = vpop.permute.xlu0 %267
  %269 = vrot.lane.b32.xlu0 %v218, 116
  %v270 = vpop.permute.xlu0 %269
  %271 = vrot.lane.b32.xlu0 %v219, 116
  %v272 = vpop.permute.xlu0 %271
  %vm273 = vcmask 949248
  %v274 = vsel %vm273, %v268, %v270
  %v275 = vsel %vm273, %v270, %v272
  %278 = vrot.lane.b32.xlu0 %v217, 108
  %v279 = vpop.permute.xlu0 %278
  %280 = vrot.lane.b32.xlu0 %v218, 108
  %v281 = vpop.permute.xlu0 %280
  %282 = vrot.lane.b32.xlu0 %v219, 108
  %v283 = vpop.permute.xlu0 %282
  %vm284 = vcmask 883712
  %v285 = vsel %vm284, %v279, %v281
  %v286 = vsel %vm284, %v281, %v283
  %289 = vrot.lane.b32.xlu0 %v217, 107
  %v290 = vpop.permute.xlu0 %289
  %291 = vrot.lane.b32.xlu0 %v218, 107
  %v292 = vpop.permute.xlu0 %291
  %293 = vrot.lane.b32.xlu0 %v219, 107
  %v294 = vpop.permute.xlu0 %293
  %vm295 = vcmask 875520
  %v296 = vsel %vm295, %v290, %v292
  %v297 = vsel %vm295, %v292, %v294
  %300 = vrot.lane.b32.xlu0 %v217, 106
  %v301 = vpop.permute.xlu0 %300
  %302 = vrot.lane.b32.xlu0 %v218, 106
  %v303 = vpop.permute.xlu0 %302
  %304 = vrot.lane.b32.xlu0 %v219, 106
  %v305 = vpop.permute.xlu0 %304
  %vm306 = vcmask 867328
  %v307 = vsel %vm306, %v301, %v303
  %v308 = vsel %vm306, %v303, %v305
  %v311 = vld [vmem:[%s3] sm:$0xf]
  %v312 = vpack.c.bf16 %v230, %v217
  %v313 = vpack.c.bf16 %v231, %v218
  %v314 = vpack.c.bf16 %v252, %v241
  %v315 = vpack.c.bf16 %v253, %v242
  %v316 = vpack.c.bf16 %v274, %v263
  %v317 = vpack.c.bf16 %v275, %v264
  %v318 = vpack.c.bf16 %v296, %v285
  %v319 = vpack.c.bf16 %v297, %v286
  %v320 = vpack.c.bf16 %v307, %v307
  %v321 = vpack.c.bf16 %v308, %v308
  %v322 = vld [vmem:[%s4] sm:$0xff]
  %324 = vset.pattern.permute.xlu0 0
  %325 = vperm.xlu0 %324, %v322
  %v326 = vpop.permute.xlu0 %325
  %v329 = vsel %vm82, %v311, 0
  %v332 = vsel %vm86, %v320, 0
  %v335 = vsel %vm86, %v321, 0
  %337 = vmatprep.subr.bf16.mxu0 %v313
  %338 = vmatpush1.bf16.msra.mxu0 %v312
  %339 = vmatprep.subr.bf16.mxu0 %v315
  %340 = vmatpush1.bf16.msra.mxu0 %v314
  %341 = vmatprep.subr.bf16.mxu0 %v317
  %342 = vmatpush1.bf16.msra.mxu0 %v316
  %343 = vmatprep.subr.bf16.mxu0 %v319
  %344 = vmatpush1.bf16.msra.mxu0 %v318
  %345 = vmatprep.subr.bf16.mxu0 %v335
  %346 = vmatpush1.bf16.msra.mxu0 %v332
  %347 = vmatprep.subr.bf16.mxu0 0
  %348 = vmatpush1.bf16.msra.mxu0 0
  %349 = vmatprep.subr.bf16.mxu0 0
  %350 = vmatpush1.bf16.msra.mxu0 0
  %351 = vmatprep.subr.bf16.mxu0 0
  %352 = vmatpush1.bf16.msra.mxu0 0
  %353 = vmatprep.subr.bf16.mxu0 0
  %354 = vmatpush1.bf16.msra.mxu0 0
  %355 = vmatprep.subr.bf16.mxu0 0
  %356 = vmatpush1.bf16.msra.mxu0 0
  %357 = vmatprep.subr.bf16.mxu0 0
  %358 = vmatpush1.bf16.msra.mxu0 0
  %359 = vmatprep.subr.bf16.mxu0 0
  %360 = vmatpush1.bf16.msra.mxu0 0
  %361 = vmatprep.subr.bf16.mxu0 0
  %362 = vmatpush1.bf16.msra.mxu0 0
  %363 = vmatprep.subr.bf16.mxu0 0
  %364 = vmatpush1.bf16.msra.mxu0 0
  %365 = vmatprep.subr.bf16.mxu0 0
  %366 = vmatpush1.bf16.msra.mxu0 0
  %367 = vmatprep.subr.bf16.mxu0 0
  %368 = vmatpush1.bf16.msra.mxu0 0
  %369 = vmatprep.mubr.bf16.mxu0 0
  %370 = vmatmul.mubr.bf16.gmra.mrb[0].mxu0 %v329
  %v371 = vpop.f32.mrb[0].mxu0
  %v372 = vadd.f32 %v326, %v371
  %v373 = vpop.f32.mrb[0].mxu0
  %v374 = vadd.f32 %v326, %v373
  %v375 = vpop.f32.mrb[0].mxu0
  %v376 = vpop.f32.mrb[0].mxu0
  %377 = vdwg.mxu0
  %v378 = vld [vmem:[%s7] sm:$0xff]
  %v379 = vld [vmem:[%s7 + $0x8] sm:$0xff]
  %v380 = vld [vmem:[%s5] sm:$0xf]
  %v381 = vpack.c.bf16 %v378, %v378
  %v382 = vpack.c.bf16 %v379, %v379
  %vm383 = vcmask 64512
  %v385 = vsel %vm383, %v380, 0
  %v388 = vsel %vm86, %v381, 0
  %v391 = vsel %vm86, %v382, 0
  %393 = vmatprep.subr.bf16.mxu0 %v391
  %394 = vmatpush1.bf16.msra.mxu0 %v388
  %395 = vmatprep.subr.bf16.mxu0 0
  %396 = vmatpush1.bf16.msra.mxu0 0
  %397 = vmatprep.subr.bf16.mxu0 0
  %398 = vmatpush1.bf16.msra.mxu0 0
  %399 = vmatprep.subr.bf16.mxu0 0
  %400 = vmatpush1.bf16.msra.mxu0 0
  %401 = vmatprep.subr.bf16.mxu0 0
  %402 = vmatpush1.bf16.msra.mxu0 0
  %403 = vmatprep.subr.bf16.mxu0 0
  %404 = vmatpush1.bf16.msra.mxu0 0
  %405 = vmatprep.subr.bf16.mxu0 0
  %406 = vmatpush1.bf16.msra.mxu0 0
  %407 = vmatprep.subr.bf16.mxu0 0
  %408 = vmatpush1.bf16.msra.mxu0 0
  %409 = vmatprep.subr.bf16.mxu0 0
  %410 = vmatpush1.bf16.msra.mxu0 0
  %411 = vmatprep.subr.bf16.mxu0 0
  %412 = vmatpush1.bf16.msra.mxu0 0
  %413 = vmatprep.subr.bf16.mxu0 0
  %414 = vmatpush1.bf16.msra.mxu0 0
  %415 = vmatprep.subr.bf16.mxu0 0
  %416 = vmatpush1.bf16.msra.mxu0 0
  %417 = vmatprep.subr.bf16.mxu0 0
  %418 = vmatpush1.bf16.msra.mxu0 0
  %419 = vmatprep.subr.bf16.mxu0 0
  %420 = vmatpush1.bf16.msra.mxu0 0
  %421 = vmatprep.subr.bf16.mxu0 0
  %422 = vmatpush1.bf16.msra.mxu0 0
  %423 = vmatprep.subr.bf16.mxu0 0
  %424 = vmatpush1.bf16.msra.mxu0 0
  %425 = vmatprep.mubr.bf16.mxu0 0
  %426 = vmatmul.mubr.bf16.gmra.mrb[0].mxu0 %v385
  %v427 = vpop.f32.mrb[0].mxu0
  %v428 = vadd.f32 0.0, %v427
  %v429 = vpop.f32.mrb[0].mxu0
  %v430 = vadd.f32 0.0, %v429
  %v431 = vpop.f32.mrb[0].mxu0
  %v432 = vpop.f32.mrb[0].mxu0
  %433 = vdwg.mxu0
  %v434 = vadd.f32 %v372, %v428
  %v435 = vadd.f32 %v374, %v430
  %v436 = vld [vmem:[%s6] sm:$0xff]
  %438 = vset.pattern.permute.xlu0 0
  %439 = vperm.xlu0 %438, %v436
  %v440 = vpop.permute.xlu0 %439
  %v442 = vadd.f32 %v434, %v440
  %v443 = vadd.f32 %v435, %v440
  %v444 = vld [vmem:[%s8] sm:$0x7]
  %v445 = vunpack.c.l.bf16 %v444
  %v447 = vlaneseq
  %v448 = vshrl.u32 %v447, 7
  %v449 = vsub.s32 0, %v448
  %v450 = vrot.slane %v445, %v449
  %v451 = vlaneseq
  %v452 = vshrl.u32 %v451, 7
  %v453 = vsub.s32 2, %v452
  %v454 = vrot.slane %v445, %v453
  %v455 = vlaneseq
  %v456 = vshrl.u32 %v455, 7
  %v457 = vsub.s32 4, %v456
  %v458 = vrot.slane %v445, %v457
  %v462 = vlaneseq
  %v463 = vshrl.u32 %v462, 7
  %v464 = vsub.s32 0, %v463
  %v465 = vrot.slane %v450, %v464
  %v466 = vlaneseq
  %v467 = vshrl.u32 %v466, 7
  %v468 = vsub.s32 0, %v467
  %v469 = vrot.slane %v454, %v468
  %v470 = vlaneseq
  %v471 = vshrl.u32 %v470, 7
  %v472 = vsub.s32 0, %v471
  %v473 = vrot.slane %v458, %v472
  %477 = vrot.lane.b32.xlu0 %v465, 117
  %v478 = vpop.permute.xlu0 %477
  %479 = vrot.lane.b32.xlu0 %v469, 117
  %v480 = vpop.permute.xlu0 %479
  %481 = vrot.lane.b32.xlu0 %v473, 117
  %v482 = vpop.permute.xlu0 %481
  %v483 = vsel %vm262, %v478, %v480
  %v484 = vsel %vm262, %v480, %v482
  %v487 = vmul.f32 %v442, %v483
  %v488 = vmul.f32 %v443, %v484
  %489 = vst [vmem:[%s9] sm:$0xff] %v487
  %490 = vst [vmem:[%s9 + $0x8] sm:$0xff] %v488
  // Predicated region
  $region38: #{meblock_forward.15} parent=0 // pred_check
    _
  $region39: #{meblock_forward.15} parent=0 // pred_check_branch
    %492 = sbr.rel (0) target = $region41
  $region40: #{meblock_forward.15} parent=0 // pred_region
    _
  $region41: #{meblock_forward.15} parent=0 // pred_fallthru
    _
  // Predicated region
  $region42: #{meblock_forward.15} parent=0 // pred_check
    _
  $region43: #{meblock_forward.15} parent=0 // pred_check_branch
    %494 = sbr.rel (0) target = $region45
  $region44: #{meblock_forward.15} parent=0 // pred_region
    _
  $region45: #{meblock_forward.15} parent=0 // pred_fallthru
    _

// kernel: meblock_forward.11
$region0: #{meblock_forward.11}
  #allocation0 [shape = 'u32[]', space=smem, size = 0x4, offset = 0x4, fixed_abs, tag = 'smem constant byte address 0x4 - core index']
  #allocation1 [shape = 'u32[144,128]{1,0:T(1,128)}', space=vmem, size = 0x12000, scoped, tag = 'internal scratch']
  #allocation2 [shape = 'f32[8,138]{1,0:T(8,128)}', space=vmem, size = 0x2000, scoped, tag = 'scratch operand']
  %s0 = inlined_call_operand.vmem [shape: f32[8,148], index: 0, kind: input, shape index: {}]
  %s1 = inlined_call_operand.vmem [shape: bf16[8,72], index: 1, kind: input, shape index: {}]
  %s2 = inlined_call_operand.vmem [shape: f32[8,1], index: 2, kind: input, shape index: {}]
  %s3 = inlined_call_operand.vmem [shape: bf16[8,72], index: 3, kind: input, shape index: {}]
  %s4 = inlined_call_operand.vmem [shape: f32[8,1], index: 4, kind: input, shape index: {}]
  %s5 = inlined_call_operand.vmem [shape: f32[8,128], index: 5, kind: input, shape index: {}]
  %s6 = inlined_call_operand.vmem [shape: bf16[1,138], index: 6, kind: input, shape index: {}]
  %s7 = inlined_call_operand.vmem [shape: f32[8,128], index: 7, kind: output, shape index: {}]
  %s8 = sld [smem:[#allocation0]]
  $region38: #{meblock_forward.11} parent=0
    _
  %s10 = ssub.s32 1, %s8
  %s11 = scalar_select 0, %s10, %s8
  // Predicated region
  $region2: #{meblock_forward.11} parent=0 // pred_check
    _
  $region3: #{meblock_forward.11} parent=0 // pred_check_branch
    %13 = sbr.rel (0) target = $region5
  $region4: #{meblock_forward.11} parent=0 // pred_region
    _
  $region5: #{meblock_forward.11} parent=0 // pred_fallthru
    _
  // Predicated region
  $region6: #{meblock_forward.11} parent=0 // pred_check
    _
  $region7: #{meblock_forward.11} parent=0 // pred_check_branch
    %15 = sbr.rel (0) target = $region9
  $region8: #{meblock_forward.11} parent=0 // pred_region
    _
  $region9: #{meblock_forward.11} parent=0 // pred_fallthru
    _
  // Predicated region
  $region10: #{meblock_forward.11} parent=0 // pred_check
    _
  $region11: #{meblock_forward.11} parent=0 // pred_check_branch
    %17 = sbr.rel (0) target = $region13
  $region12: #{meblock_forward.11} parent=0 // pred_region
    _
  $region13: #{meblock_forward.11} parent=0 // pred_fallthru
    _
  // Predicated region
  $region14: #{meblock_forward.11} parent=0 // pred_check
    _
  $region15: #{meblock_forward.11} parent=0 // pred_check_branch
    %19 = sbr.rel (0) target = $region17
  $region16: #{meblock_forward.11} parent=0 // pred_region
    _
  $region17: #{meblock_forward.11} parent=0 // pred_fallthru
    _
  // Predicated region
  $region18: #{meblock_forward.11} parent=0 // pred_check
    _
  $region19: #{meblock_forward.11} parent=0 // pred_check_branch
    %21 = sbr.rel (0) target = $region21
  $region20: #{meblock_forward.11} parent=0 // pred_region
    _
  $region21: #{meblock_forward.11} parent=0 // pred_fallthru
    _
  // Predicated region
  $region22: #{meblock_forward.11} parent=0 // pred_check
    _
  $region23: #{meblock_forward.11} parent=0 // pred_check_branch
    %23 = sbr.rel (0) target = $region25
  $region24: #{meblock_forward.11} parent=0 // pred_region
    _
  $region25: #{meblock_forward.11} parent=0 // pred_fallthru
    _
  // Predicated region
  $region26: #{meblock_forward.11} parent=0 // pred_check
    _
  $region27: #{meblock_forward.11} parent=0 // pred_check_branch
    %25 = sbr.rel (0) target = $region29
  $region28: #{meblock_forward.11} parent=0 // pred_region
    _
  $region29: #{meblock_forward.11} parent=0 // pred_fallthru
    _
  %v27 = vld [vmem:[%s0] sm:$0xff]
  %v28 = vld [vmem:[%s0 + $0x8] sm:$0xff]
  %31 = vrot.lane.b32.xlu0 %v27, 127
  %v32 = vpop.permute.xlu0 %31
  %33 = vrot.lane.b32.xlu0 %v28, 127
  %v34 = vpop.permute.xlu0 %33
  %vm35 = vcmask 1039360
  %v36 = vsel %vm35, %v32, %v34
  %39 = vrot.lane.b32.xlu0 %v27, 126
  %v40 = vpop.permute.xlu0 %39
  %41 = vrot.lane.b32.xlu0 %v28, 126
  %v42 = vpop.permute.xlu0 %41
  %vm43 = vcmask 1031168
  %v44 = vsel %vm43, %v40, %v42
  %47 = vrot.lane.b32.xlu0 %v27, 124
  %v48 = vpop.permute.xlu0 %47
  %49 = vrot.lane.b32.xlu0 %v28, 124
  %v50 = vpop.permute.xlu0 %49
  %vm51 = vcmask 1014784
  %v52 = vsel %vm51, %v48, %v50
  %55 = vrot.lane.b32.xlu0 %v27, 123
  %v56 = vpop.permute.xlu0 %55
  %57 = vrot.lane.b32.xlu0 %v28, 123
  %v58 = vpop.permute.xlu0 %57
  %vm59 = vcmask 1006592
  %v60 = vsel %vm59, %v56, %v58
  %63 = vrot.lane.b32.xlu0 %v27, 122
  %v64 = vpop.permute.xlu0 %63
  %65 = vrot.lane.b32.xlu0 %v28, 122
  %v66 = vpop.permute.xlu0 %65
  %vm67 = vcmask 998400
  %v68 = vsel %vm67, %v64, %v66
  %71 = vrot.lane.b32.xlu0 %v27, 120
  %v72 = vpop.permute.xlu0 %71
  %73 = vrot.lane.b32.xlu0 %v28, 120
  %v74 = vpop.permute.xlu0 %73
  %vm75 = vcmask 982016
  %v76 = vsel %vm75, %v72, %v74
  %79 = vrot.lane.b32.xlu0 %v27, 119
  %v80 = vpop.permute.xlu0 %79
  %81 = vrot.lane.b32.xlu0 %v28, 119
  %v82 = vpop.permute.xlu0 %81
  %vm83 = vcmask 973824
  %v84 = vsel %vm83, %v80, %v82
  %87 = vrot.lane.b32.xlu0 %v27, 118
  %v88 = vpop.permute.xlu0 %87
  %89 = vrot.lane.b32.xlu0 %v28, 118
  %v90 = vpop.permute.xlu0 %89
  %vm91 = vcmask 965632
  %v92 = vsel %vm91, %v88, %v90
  %v95 = vld [vmem:[%s1] sm:$0xf]
  %v96 = vpack.c.bf16 %v36, %v27
  %v97 = vpack.c.bf16 %v34, %v28
  %v98 = vpack.c.bf16 %v52, %v44
  %v99 = vpack.c.bf16 %v50, %v42
  %v100 = vpack.c.bf16 %v68, %v60
  %v101 = vpack.c.bf16 %v66, %v58
  %v102 = vpack.c.bf16 %v84, %v76
  %v103 = vpack.c.bf16 %v82, %v74
  %v104 = vpack.c.bf16 %v92, %v92
  %v105 = vpack.c.bf16 %v90, %v90
  %v106 = vld [vmem:[%s2] sm:$0xff]
  %108 = vset.pattern.permute.xlu0 0
  %109 = vperm.xlu0 %108, %v106
  %v110 = vpop.permute.xlu0 %109
  %vm112 = vcmask 588800
  %v114 = vsel %vm112, %v95, 0
  %vm116 = vcmask 1043456
  %v118 = vsel %vm116, %v104, 0
  %v121 = vsel %vm116, %v105, 0
  %123 = vmatprep.subr.bf16.mxu0 %v97
  %124 = vmatpush1.bf16.msra.mxu0 %v96
  %125 = vmatprep.subr.bf16.mxu0 %v99
  %126 = vmatpush1.bf16.msra.mxu0 %v98
  %127 = vmatprep.subr.bf16.mxu0 %v101
  %128 = vmatpush1.bf16.msra.mxu0 %v100
  %129 = vmatprep.subr.bf16.mxu0 %v103
  %130 = vmatpush1.bf16.msra.mxu0 %v102
  %131 = vmatprep.subr.bf16.mxu0 %v121
  %132 = vmatpush1.bf16.msra.mxu0 %v118
  %133 = vmatprep.subr.bf16.mxu0 0
  %134 = vmatpush1.bf16.msra.mxu0 0
  %135 = vmatprep.subr.bf16.mxu0 0
  %136 = vmatpush1.bf16.msra.mxu0 0
  %137 = vmatprep.subr.bf16.mxu0 0
  %138 = vmatpush1.bf16.msra.mxu0 0
  %139 = vmatprep.subr.bf16.mxu0 0
  %140 = vmatpush1.bf16.msra.mxu0 0
  %141 = vmatprep.subr.bf16.mxu0 0
  %142 = vmatpush1.bf16.msra.mxu0 0
  %143 = vmatprep.subr.bf16.mxu0 0
  %144 = vmatpush1.bf16.msra.mxu0 0
  %145 = vmatprep.subr.bf16.mxu0 0
  %146 = vmatpush1.bf16.msra.mxu0 0
  %147 = vmatprep.subr.bf16.mxu0 0
  %148 = vmatpush1.bf16.msra.mxu0 0
  %149 = vmatprep.subr.bf16.mxu0 0
  %150 = vmatpush1.bf16.msra.mxu0 0
  %151 = vmatprep.subr.bf16.mxu0 0
  %152 = vmatpush1.bf16.msra.mxu0 0
  %153 = vmatprep.subr.bf16.mxu0 0
  %154 = vmatpush1.bf16.msra.mxu0 0
  %155 = vmatprep.mubr.bf16.mxu0 0
  %156 = vmatmul.mubr.bf16.gmra.mrb[0].mxu0 %v114
  %v157 = vpop.f32.mrb[0].mxu0
  %v158 = vadd.f32 %v110, %v157
  %v159 = vpop.f32.mrb[0].mxu0
  %v160 = vadd.f32 %v110, %v159
  %v161 = vpop.f32.mrb[0].mxu0
  %v162 = vpop.f32.mrb[0].mxu0
  %163 = vdwg.mxu0
  %v164 = vmax.f32 %v158, 0.0
  %v165 = vmax.f32 %v160, 0.0
  %v166 = vld [vmem:[%s6] sm:$0x3]
  %v167 = vunpack.c.l.bf16 %v166
  %v169 = vlaneseq
  %v170 = vshrl.u32 %v169, 7
  %v171 = vsub.s32 0, %v170
  %v172 = vrot.slane %v167, %v171
  %v173 = vlaneseq
  %v174 = vshrl.u32 %v173, 7
  %v175 = vsub.s32 2, %v174
  %v176 = vrot.slane %v167, %v175
  %v179 = vlaneseq
  %v180 = vshrl.u32 %v179, 7
  %v181 = vsub.s32 0, %v180
  %v182 = vrot.slane %v172, %v181
  %v183 = vlaneseq
  %v184 = vshrl.u32 %v183, 7
  %v185 = vsub.s32 0, %v184
  %v186 = vrot.slane %v176, %v185
  %v187 = vmul.f32 %v164, %v182
  %v188 = vmul.f32 %v165, %v186
  %189 = vst [vmem:[#allocation2] sm:$0xff] %v187
  %vm190 = vcmask 80896
  %191 = vst.msk [vmem:[#allocation2 + $0x8] sm:$0xff] %vm190, %v188
  %v192 = vld [vmem:[#allocation2] sm:$0xff]
  %v193 = vld [vmem:[#allocation2 + $0x8] sm:$0xff]
  %196 = vrot.lane.b32.xlu0 %v192, 127
  %v197 = vpop.permute.xlu0 %196
  %198 = vrot.lane.b32.xlu0 %v193, 127
  %v199 = vpop.permute.xlu0 %198
  %v200 = vsel %vm35, %v197, %v199
  %202 = vrot.lane.b32.xlu0 %v192, 126
  %v203 = vpop.permute.xlu0 %202
  %204 = vrot.lane.b32.xlu0 %v193, 126
  %v205 = vpop.permute.xlu0 %204
  %v206 = vsel %vm43, %v203, %v205
  %208 = vrot.lane.b32.xlu0 %v192, 124
  %v209 = vpop.permute.xlu0 %208
  %210 = vrot.lane.b32.xlu0 %v193, 124
  %v211 = vpop.permute.xlu0 %210
  %v212 = vsel %vm51, %v209, %v211
  %214 = vrot.lane.b32.xlu0 %v192, 123
  %v215 = vpop.permute.xlu0 %214
  %216 = vrot.lane.b32.xlu0 %v193, 123
  %v217 = vpop.permute.xlu0 %216
  %v218 = vsel %vm59, %v215, %v217
  %220 = vrot.lane.b32.xlu0 %v192, 122
  %v221 = vpop.permute.xlu0 %220
  %222 = vrot.lane.b32.xlu0 %v193, 122
  %v223 = vpop.permute.xlu0 %222
  %v224 = vsel %vm67, %v221, %v223
  %226 = vrot.lane.b32.xlu0 %v192, 120
  %v227 = vpop.permute.xlu0 %226
  %228 = vrot.lane.b32.xlu0 %v193, 120
  %v229 = vpop.permute.xlu0 %228
  %v230 = vsel %vm75, %v227, %v229
  %232 = vrot.lane.b32.xlu0 %v192, 119
  %v233 = vpop.permute.xlu0 %232
  %234 = vrot.lane.b32.xlu0 %v193, 119
  %v235 = vpop.permute.xlu0 %234
  %v236 = vsel %vm83, %v233, %v235
  %238 = vrot.lane.b32.xlu0 %v192, 118
  %v239 = vpop.permute.xlu0 %238
  %240 = vrot.lane.b32.xlu0 %v193, 118
  %v241 = vpop.permute.xlu0 %240
  %v242 = vsel %vm91, %v239, %v241
  %v244 = vld [vmem:[%s3] sm:$0xf]
  %v245 = vpack.c.bf16 %v200, %v192
  %v246 = vpack.c.bf16 %v212, %v206
  %v247 = vpack.c.bf16 %v224, %v218
  %v248 = vpack.c.bf16 %v236, %v230
  %v249 = vpack.c.bf16 %v242, %v242
  %v250 = vld [vmem:[%s4] sm:$0xff]
  %252 = vset.pattern.permute.xlu0 0
  %253 = vperm.xlu0 %252, %v250
  %v254 = vpop.permute.xlu0 %253
  %v257 = vsel %vm112, %v244, 0
  %v260 = vsel %vm116, %v249, 0
  %262 = vmatprep.subr.bf16.mxu0 0
  %263 = vmatpush1.bf16.msra.mxu0 %v245
  %264 = vmatprep.subr.bf16.mxu0 0
  %265 = vmatpush1.bf16.msra.mxu0 %v246
  %266 = vmatprep.subr.bf16.mxu0 0
  %267 = vmatpush1.bf16.msra.mxu0 %v247
  %268 = vmatprep.subr.bf16.mxu0 0
  %269 = vmatpush1.bf16.msra.mxu0 %v248
  %270 = vmatprep.subr.bf16.mxu0 0
  %271 = vmatpush1.bf16.msra.mxu0 %v260
  %272 = vmatprep.subr.bf16.mxu0 0
  %273 = vmatpush1.bf16.msra.mxu0 0
  %274 = vmatprep.subr.bf16.mxu0 0
  %275 = vmatpush1.bf16.msra.mxu0 0
  %276 = vmatprep.subr.bf16.mxu0 0
  %277 = vmatpush1.bf16.msra.mxu0 0
  %278 = vmatprep.subr.bf16.mxu0 0
  %279 = vmatpush1.bf16.msra.mxu0 0
  %280 = vmatprep.subr.bf16.mxu0 0
  %281 = vmatpush1.bf16.msra.mxu0 0
  %282 = vmatprep.subr.bf16.mxu0 0
  %283 = vmatpush1.bf16.msra.mxu0 0
  %284 = vmatprep.subr.bf16.mxu0 0
  %285 = vmatpush1.bf16.msra.mxu0 0
  %286 = vmatprep.subr.bf16.mxu0 0
  %287 = vmatpush1.bf16.msra.mxu0 0
  %288 = vmatprep.subr.bf16.mxu0 0
  %289 = vmatpush1.bf16.msra.mxu0 0
  %290 = vmatprep.subr.bf16.mxu0 0
  %291 = vmatpush1.bf16.msra.mxu0 0
  %292 = vmatprep.subr.bf16.mxu0 0
  %293 = vmatpush1.bf16.msra.mxu0 0
  %294 = vmatprep.mubr.bf16.mxu0 0
  %295 = vmatmul.mubr.bf16.gmra.mrb[0].mxu0 %v257
  %v296 = vpop.f32.mrb[0].mxu0
  %v297 = vadd.f32 %v254, %v296
  %v298 = vpop.f32.mrb[0].mxu0
  %v299 = vpop.f32.mrb[0].mxu0
  %v300 = vpop.f32.mrb[0].mxu0
  %301 = vdwg.mxu0
  %v302 = vld [vmem:[%s5] sm:$0xff]
  %v303 = vadd.f32 %v297, %v302
  %v304 = vld [vmem:[%s6] sm:$0x3]
  %v305 = vunpack.c.l.bf16 %v304
  %v307 = vlaneseq
  %v308 = vshrl.u32 %v307, 7
  %v309 = vsub.s32 0, %v308
  %v310 = vrot.slane %v305, %v309
  %v311 = vlaneseq
  %v312 = vshrl.u32 %v311, 7
  %v313 = vsub.s32 2, %v312
  %v314 = vrot.slane %v305, %v313
  %v317 = vlaneseq
  %v318 = vshrl.u32 %v317, 7
  %v319 = vsub.s32 0, %v318
  %v320 = vrot.slane %v310, %v319
  %v321 = vlaneseq
  %v322 = vshrl.u32 %v321, 7
  %v323 = vsub.s32 0, %v322
  %v324 = vrot.slane %v314, %v323
  %327 = vrot.lane.b32.xlu0 %v320, 123
  %v328 = vpop.permute.xlu0 %327
  %329 = vrot.lane.b32.xlu0 %v324, 123
  %v330 = vpop.permute.xlu0 %329
  %v331 = vsel %vm59, %v328, %v330
  %v333 = vmul.f32 %v303, %v331
  %334 = vst [vmem:[%s7] sm:$0xff] %v333
  // Predicated region
  $region30: #{meblock_forward.11} parent=0 // pred_check
    _
  $region31: #{meblock_forward.11} parent=0 // pred_check_branch
    %336 = sbr.rel (0) target = $region33
  $region32: #{meblock_forward.11} parent=0 // pred_region
    _
  $region33: #{meblock_forward.11} parent=0 // pred_fallthru
    _
  // Predicated region
  $region34: #{meblock_forward.11} parent=0 // pred_check
    _
  $region35: #{meblock_forward.11} parent=0 // pred_check_branch
    %338 = sbr.rel (0) target = $region37
  $region36: #{meblock_forward.11} parent=0 // pred_region
    _
  $region37: #{meblock_forward.11} parent=0 // pred_fallthru
    _

// kernel: meblock_forward.13
$region0: #{meblock_forward.13}
  #allocation0 [shape = 'u32[]', space=smem, size = 0x4, offset = 0x4, fixed_abs, tag = 'smem constant byte address 0x4 - core index']
  #allocation1 [shape = 'u32[144,128]{1,0:T(1,128)}', space=vmem, size = 0x12000, scoped, tag = 'internal scratch']
  %s0 = inlined_call_operand.vmem [shape: f32[8,138], index: 0, kind: input, shape index: {}]
  %s1 = inlined_call_operand.vmem [shape: bf16[8,72], index: 1, kind: input, shape index: {}]
  %s2 = inlined_call_operand.vmem [shape: f32[8,1], index: 2, kind: input, shape index: {}]
  %s3 = inlined_call_operand.vmem [shape: f32[8,128], index: 3, kind: input, shape index: {}]
  %s4 = inlined_call_operand.vmem [shape: bf16[1,128], index: 4, kind: input, shape index: {}]
  %s5 = inlined_call_operand.vmem [shape: f32[8,128], index: 5, kind: output, shape index: {}]
  %s6 = sld [smem:[#allocation0]]
  $region30: #{meblock_forward.13} parent=0
    _
  %s8 = ssub.s32 1, %s6
  %s9 = scalar_select 0, %s8, %s6
  // Predicated region
  $region2: #{meblock_forward.13} parent=0 // pred_check
    _
  $region3: #{meblock_forward.13} parent=0 // pred_check_branch
    %11 = sbr.rel (0) target = $region5
  $region4: #{meblock_forward.13} parent=0 // pred_region
    _
  $region5: #{meblock_forward.13} parent=0 // pred_fallthru
    _
  // Predicated region
  $region6: #{meblock_forward.13} parent=0 // pred_check
    _
  $region7: #{meblock_forward.13} parent=0 // pred_check_branch
    %13 = sbr.rel (0) target = $region9
  $region8: #{meblock_forward.13} parent=0 // pred_region
    _
  $region9: #{meblock_forward.13} parent=0 // pred_fallthru
    _
  // Predicated region
  $region10: #{meblock_forward.13} parent=0 // pred_check
    _
  $region11: #{meblock_forward.13} parent=0 // pred_check_branch
    %15 = sbr.rel (0) target = $region13
  $region12: #{meblock_forward.13} parent=0 // pred_region
    _
  $region13: #{meblock_forward.13} parent=0 // pred_fallthru
    _
  // Predicated region
  $region14: #{meblock_forward.13} parent=0 // pred_check
    _
  $region15: #{meblock_forward.13} parent=0 // pred_check_branch
    %17 = sbr.rel (0) target = $region17
  $region16: #{meblock_forward.13} parent=0 // pred_region
    _
  $region17: #{meblock_forward.13} parent=0 // pred_fallthru
    _
  // Predicated region
  $region18: #{meblock_forward.13} parent=0 // pred_check
    _
  $region19: #{meblock_forward.13} parent=0 // pred_check_branch
    %19 = sbr.rel (0) target = $region21
  $region20: #{meblock_forward.13} parent=0 // pred_region
    _
  $region21: #{meblock_forward.13} parent=0 // pred_fallthru
    _
  %v21 = vld [vmem:[%s0] sm:$0xff]
  %v22 = vld [vmem:[%s0 + $0x8] sm:$0xff]
  %25 = vrot.lane.b32.xlu0 %v21, 127
  %v26 = vpop.permute.xlu0 %25
  %27 = vrot.lane.b32.xlu0 %v22, 127
  %v28 = vpop.permute.xlu0 %27
  %vm29 = vcmask 1039360
  %v30 = vsel %vm29, %v26, %v28
  %32 = vrot.lane.b32.xlu0 %v21, 126
  %v33 = vpop.permute.xlu0 %32
  %34 = vrot.lane.b32.xlu0 %v22, 126
  %v35 = vpop.permute.xlu0 %34
  %vm36 = vcmask 1031168
  %v37 = vsel %vm36, %v33, %v35
  %39 = vrot.lane.b32.xlu0 %v21, 124
  %v40 = vpop.permute.xlu0 %39
  %41 = vrot.lane.b32.xlu0 %v22, 124
  %v42 = vpop.permute.xlu0 %41
  %vm43 = vcmask 1014784
  %v44 = vsel %vm43, %v40, %v42
  %46 = vrot.lane.b32.xlu0 %v21, 123
  %v47 = vpop.permute.xlu0 %46
  %48 = vrot.lane.b32.xlu0 %v22, 123
  %v49 = vpop.permute.xlu0 %48
  %vm50 = vcmask 1006592
  %v51 = vsel %vm50, %v47, %v49
  %53 = vrot.lane.b32.xlu0 %v21, 122
  %v54 = vpop.permute.xlu0 %53
  %55 = vrot.lane.b32.xlu0 %v22, 122
  %v56 = vpop.permute.xlu0 %55
  %vm57 = vcmask 998400
  %v58 = vsel %vm57, %v54, %v56
  %60 = vrot.lane.b32.xlu0 %v21, 120
  %v61 = vpop.permute.xlu0 %60
  %62 = vrot.lane.b32.xlu0 %v22, 120
  %v63 = vpop.permute.xlu0 %62
  %vm64 = vcmask 982016
  %v65 = vsel %vm64, %v61, %v63
  %67 = vrot.lane.b32.xlu0 %v21, 119
  %v68 = vpop.permute.xlu0 %67
  %69 = vrot.lane.b32.xlu0 %v22, 119
  %v70 = vpop.permute.xlu0 %69
  %vm71 = vcmask 973824
  %v72 = vsel %vm71, %v68, %v70
  %74 = vrot.lane.b32.xlu0 %v21, 118
  %v75 = vpop.permute.xlu0 %74
  %76 = vrot.lane.b32.xlu0 %v22, 118
  %v77 = vpop.permute.xlu0 %76
  %vm78 = vcmask 965632
  %v79 = vsel %vm78, %v75, %v77
  %v81 = vld [vmem:[%s1] sm:$0xf]
  %v82 = vpack.c.bf16 %v30, %v21
  %v83 = vpack.c.bf16 %v44, %v37
  %v84 = vpack.c.bf16 %v58, %v51
  %v85 = vpack.c.bf16 %v72, %v65
  %v86 = vpack.c.bf16 %v79, %v79
  %v87 = vld [vmem:[%s2] sm:$0xff]
  %89 = vset.pattern.permute.xlu0 0
  %90 = vperm.xlu0 %89, %v87
  %v91 = vpop.permute.xlu0 %90
  %vm93 = vcmask 588800
  %v95 = vsel %vm93, %v81, 0
  %vm97 = vcmask 1043456
  %v99 = vsel %vm97, %v86, 0
  %101 = vmatprep.subr.bf16.mxu0 0
  %102 = vmatpush1.bf16.msra.mxu0 %v82
  %103 = vmatprep.subr.bf16.mxu0 0
  %104 = vmatpush1.bf16.msra.mxu0 %v83
  %105 = vmatprep.subr.bf16.mxu0 0
  %106 = vmatpush1.bf16.msra.mxu0 %v84
  %107 = vmatprep.subr.bf16.mxu0 0
  %108 = vmatpush1.bf16.msra.mxu0 %v85
  %109 = vmatprep.subr.bf16.mxu0 0
  %110 = vmatpush1.bf16.msra.mxu0 %v99
  %111 = vmatprep.subr.bf16.mxu0 0
  %112 = vmatpush1.bf16.msra.mxu0 0
  %113 = vmatprep.subr.bf16.mxu0 0
  %114 = vmatpush1.bf16.msra.mxu0 0
  %115 = vmatprep.subr.bf16.mxu0 0
  %116 = vmatpush1.bf16.msra.mxu0 0
  %117 = vmatprep.subr.bf16.mxu0 0
  %118 = vmatpush1.bf16.msra.mxu0 0
  %119 = vmatprep.subr.bf16.mxu0 0
  %120 = vmatpush1.bf16.msra.mxu0 0
  %121 = vmatprep.subr.bf16.mxu0 0
  %122 = vmatpush1.bf16.msra.mxu0 0
  %123 = vmatprep.subr.bf16.mxu0 0
  %124 = vmatpush1.bf16.msra.mxu0 0
  %125 = vmatprep.subr.bf16.mxu0 0
  %126 = vmatpush1.bf16.msra.mxu0 0
  %127 = vmatprep.subr.bf16.mxu0 0
  %128 = vmatpush1.bf16.msra.mxu0 0
  %129 = vmatprep.subr.bf16.mxu0 0
  %130 = vmatpush1.bf16.msra.mxu0 0
  %131 = vmatprep.subr.bf16.mxu0 0
  %132 = vmatpush1.bf16.msra.mxu0 0
  %133 = vmatprep.mubr.bf16.mxu0 0
  %134 = vmatmul.mubr.bf16.gmra.mrb[0].mxu0 %v95
  %v135 = vpop.f32.mrb[0].mxu0
  %v136 = vadd.f32 %v91, %v135
  %v137 = vpop.f32.mrb[0].mxu0
  %v138 = vpop.f32.mrb[0].mxu0
  %v139 = vpop.f32.mrb[0].mxu0
  %140 = vdwg.mxu0
  %v141 = vld [vmem:[%s3] sm:$0xff]
  %v142 = vadd.f32 %v136, %v141
  %v143 = vld [vmem:[%s4] sm:$0x1]
  %v144 = vunpack.c.l.bf16 %v143
  %v145 = vlaneseq
  %v146 = vshrl.u32 %v145, 7
  %v147 = vsub.s32 0, %v146
  %v148 = vrot.slane %v144, %v147
  %v149 = vmul.f32 %v142, %v148
  %150 = vst [vmem:[%s5] sm:$0xff] %v149
  // Predicated region
  $region22: #{meblock_forward.13} parent=0 // pred_check
    _
  $region23: #{meblock_forward.13} parent=0 // pred_check_branch
    %152 = sbr.rel (0) target = $region25
  $region24: #{meblock_forward.13} parent=0 // pred_region
    _
  $region25: #{meblock_forward.13} parent=0 // pred_fallthru
    _
  // Predicated region
  $region26: #{meblock_forward.13} parent=0 // pred_check
    _
  $region27: #{meblock_forward.13} parent=0 // pred_check_branch
    %154 = sbr.rel (0) target = $region29
  $region28: #{meblock_forward.13} parent=0 // pred_region
    _
  $region29: #{meblock_forward.13} parent=0 // pred_fallthru
    _

// kernel: meblock_forward.10
$region0: #{meblock_forward.10}
  #allocation0 [shape = 'u32[]', space=smem, size = 0x4, offset = 0x4, fixed_abs, tag = 'smem constant byte address 0x4 - core index']
  #allocation1 [shape = 'u32[144,128]{1,0:T(1,128)}', space=vmem, size = 0x12000, scoped, tag = 'internal scratch']
  #allocation2 [shape = 'f32[8,138]{1,0:T(8,128)}', space=vmem, size = 0x2000, scoped, tag = 'scratch operand']
  %s0 = inlined_call_operand.vmem [shape: f32[72,138], index: 0, kind: input, shape index: {}]
  %s1 = inlined_call_operand.vmem [shape: bf16[8,72], index: 1, kind: input, shape index: {}]
  %s2 = inlined_call_operand.vmem [shape: f32[8,1], index: 2, kind: input, shape index: {}]
  %s3 = inlined_call_operand.vmem [shape: bf16[8,72], index: 3, kind: input, shape index: {}]
  %s4 = inlined_call_operand.vmem [shape: f32[8,1], index: 4, kind: input, shape index: {}]
  %s5 = inlined_call_operand.vmem [shape: bf16[8,8], index: 5, kind: input, shape index: {}]
  %s6 = inlined_call_operand.vmem [shape: f32[8,1], index: 6, kind: input, shape index: {}]
  %s7 = inlined_call_operand.vmem [shape: f32[8,128], index: 7, kind: input, shape index: {}]
  %s8 = inlined_call_operand.vmem [shape: bf16[1,138], index: 8, kind: input, shape index: {}]
  %s9 = inlined_call_operand.vmem [shape: f32[8,128], index: 9, kind: output, shape index: {}]
  %s10 = sld [smem:[#allocation0]]
  $region46: #{meblock_forward.10} parent=0
    _
  %s12 = ssub.s32 1, %s10
  %s13 = scalar_select 0, %s12, %s10
  // Predicated region
  $region2: #{meblock_forward.10} parent=0 // pred_check
    _
  $region3: #{meblock_forward.10} parent=0 // pred_check_branch
    %15 = sbr.rel (0) target = $region5
  $region4: #{meblock_forward.10} parent=0 // pred_region
    _
  $region5: #{meblock_forward.10} parent=0 // pred_fallthru
    _
  // Predicated region
  $region6: #{meblock_forward.10} parent=0 // pred_check
    _
  $region7: #{meblock_forward.10} parent=0 // pred_check_branch
    %17 = sbr.rel (0) target = $region9
  $region8: #{meblock_forward.10} parent=0 // pred_region
    _
  $region9: #{meblock_forward.10} parent=0 // pred_fallthru
    _
  // Predicated region
  $region10: #{meblock_forward.10} parent=0 // pred_check
    _
  $region11: #{meblock_forward.10} parent=0 // pred_check_branch
    %19 = sbr.rel (0) target = $region13
  $region12: #{meblock_forward.10} parent=0 // pred_region
    _
  $region13: #{meblock_forward.10} parent=0 // pred_fallthru
    _
  // Predicated region
  $region14: #{meblock_forward.10} parent=0 // pred_check
    _
  $region15: #{meblock_forward.10} parent=0 // pred_check_branch
    %21 = sbr.rel (0) target = $region17
  $region16: #{meblock_forward.10} parent=0 // pred_region
    _
  $region17: #{meblock_forward.10} parent=0 // pred_fallthru
    _
  // Predicated region
  $region18: #{meblock_forward.10} parent=0 // pred_check
    _
  $region19: #{meblock_forward.10} parent=0 // pred_check_branch
    %23 = sbr.rel (0) target = $region21
  $region20: #{meblock_forward.10} parent=0 // pred_region
    _
  $region21: #{meblock_forward.10} parent=0 // pred_fallthru
    _
  // Predicated region
  $region22: #{meblock_forward.10} parent=0 // pred_check
    _
  $region23: #{meblock_forward.10} parent=0 // pred_check_branch
    %25 = sbr.rel (0) target = $region25
  $region24: #{meblock_forward.10} parent=0 // pred_region
    _
  $region25: #{meblock_forward.10} parent=0 // pred_fallthru
    _
  // Predicated region
  $region26: #{meblock_forward.10} parent=0 // pred_check
    _
  $region27: #{meblock_forward.10} parent=0 // pred_check_branch
    %27 = sbr.rel (0) target = $region29
  $region28: #{meblock_forward.10} parent=0 // pred_region
    _
  $region29: #{meblock_forward.10} parent=0 // pred_fallthru
    _
  // Predicated region
  $region30: #{meblock_forward.10} parent=0 // pred_check
    _
  $region31: #{meblock_forward.10} parent=0 // pred_check_branch
    %29 = sbr.rel (0) target = $region33
  $region32: #{meblock_forward.10} parent=0 // pred_region
    _
  $region33: #{meblock_forward.10} parent=0 // pred_fallthru
    _
  // Predicated region
  $region34: #{meblock_forward.10} parent=0 // pred_check
    _
  $region35: #{meblock_forward.10} parent=0 // pred_check_branch
    %31 = sbr.rel (0) target = $region37
  $region36: #{meblock_forward.10} parent=0 // pred_region
    _
  $region37: #{meblock_forward.10} parent=0 // pred_fallthru
    _
  %v33 = vld [vmem:[%s0] sm:$0xff]
  %v34 = vld [vmem:[%s0 + $0x8] sm:$0xff]
  %v35 = vld [vmem:[%s0 + $0x10] sm:$0xff]
  %v36 = vld [vmem:[%s0 + $0x18] sm:$0xff]
  %v37 = vld [vmem:[%s0 + $0x20] sm:$0xff]
  %v38 = vld [vmem:[%s0 + $0x28] sm:$0xff]
  %v39 = vld [vmem:[%s0 + $0x30] sm:$0xff]
  %v40 = vld [vmem:[%s0 + $0x38] sm:$0xff]
  %v41 = vld [vmem:[%s0 + $0x40] sm:$0xff]
  %v42 = vld [vmem:[%s0 + $0x48] sm:$0xff]
  %v43 = vld [vmem:[%s0 + $0x50] sm:$0xff]
  %v44 = vld [vmem:[%s0 + $0x58] sm:$0xff]
  %v45 = vld [vmem:[%s0 + $0x60] sm:$0xff]
  %v46 = vld [vmem:[%s0 + $0x68] sm:$0xff]
  %v47 = vld [vmem:[%s0 + $0x70] sm:$0xff]
  %v48 = vld [vmem:[%s0 + $0x78] sm:$0xff]
  %v49 = vld [vmem:[%s0 + $0x80] sm:$0xff]
  %v50 = vld [vmem:[%s0 + $0x88] sm:$0xff]
  %v51 = vld [vmem:[%s1] sm:$0xf]
  %v52 = vpack.c.bf16 %v35, %v33
  %v53 = vpack.c.bf16 %v36, %v34
  %v54 = vpack.c.bf16 %v39, %v37
  %v55 = vpack.c.bf16 %v40, %v38
  %v56 = vpack.c.bf16 %v43, %v41
  %v57 = vpack.c.bf16 %v44, %v42
  %v58 = vpack.c.bf16 %v47, %v45
  %v59 = vpack.c.bf16 %v48, %v46
  %v60 = vpack.c.bf16 %v49, %v49
  %v61 = vpack.c.bf16 %v50, %v50
  %v62 = vld [vmem:[%s2] sm:$0xff]
  %64 = vset.pattern.permute.xlu0 0
  %65 = vperm.xlu0 %64, %v62
  %v66 = vpop.permute.xlu0 %65
  %vm68 = vcmask 588800
  %v70 = vsel %vm68, %v51, 0
  %vm72 = vcmask 1043456
  %v74 = vsel %vm72, %v60, 0
  %v77 = vsel %vm72, %v61, 0
  %79 = vmatprep.subr.bf16.mxu0 %v53
  %80 = vmatpush1.bf16.msra.mxu0 %v52
  %81 = vmatprep.subr.bf16.mxu0 %v55
  %82 = vmatpush1.bf16.msra.mxu0 %v54
  %83 = vmatprep.subr.bf16.mxu0 %v57
  %84 = vmatpush1.bf16.msra.mxu0 %v56
  %85 = vmatprep.subr.bf16.mxu0 %v59
  %86 = vmatpush1.bf16.msra.mxu0 %v58
  %87 = vmatprep.subr.bf16.mxu0 %v77
  %88 = vmatpush1.bf16.msra.mxu0 %v74
  %89 = vmatprep.subr.bf16.mxu0 0
  %90 = vmatpush1.bf16.msra.mxu0 0
  %91 = vmatprep.subr.bf16.mxu0 0
  %92 = vmatpush1.bf16.msra.mxu0 0
  %93 = vmatprep.subr.bf16.mxu0 0
  %94 = vmatpush1.bf16.msra.mxu0 0
  %95 = vmatprep.subr.bf16.mxu0 0
  %96 = vmatpush1.bf16.msra.mxu0 0
  %97 = vmatprep.subr.bf16.mxu0 0
  %98 = vmatpush1.bf16.msra.mxu0 0
  %99 = vmatprep.subr.bf16.mxu0 0
  %100 = vmatpush1.bf16.msra.mxu0 0
  %101 = vmatprep.subr.bf16.mxu0 0
  %102 = vmatpush1.bf16.msra.mxu0 0
  %103 = vmatprep.subr.bf16.mxu0 0
  %104 = vmatpush1.bf16.msra.mxu0 0
  %105 = vmatprep.subr.bf16.mxu0 0
  %106 = vmatpush1.bf16.msra.mxu0 0
  %107 = vmatprep.subr.bf16.mxu0 0
  %108 = vmatpush1.bf16.msra.mxu0 0
  %109 = vmatprep.subr.bf16.mxu0 0
  %110 = vmatpush1.bf16.msra.mxu0 0
  %111 = vmatprep.mubr.bf16.mxu0 0
  %112 = vmatmul.mubr.bf16.gmra.mrb[0].mxu0 %v70
  %v113 = vpop.f32.mrb[0].mxu0
  %v114 = vadd.f32 %v66, %v113
  %v115 = vpop.f32.mrb[0].mxu0
  %v116 = vadd.f32 %v66, %v115
  %v117 = vpop.f32.mrb[0].mxu0
  %v118 = vpop.f32.mrb[0].mxu0
  %119 = vdwg.mxu0
  %v120 = vmax.f32 %v114, 0.0
  %v121 = vmax.f32 %v116, 0.0
  %v122 = vld [vmem:[%s8] sm:$0x3]
  %v123 = vunpack.c.l.bf16 %v122
  %v125 = vlaneseq
  %v126 = vshrl.u32 %v125, 7
  %v127 = vsub.s32 0, %v126
  %v128 = vrot.slane %v123, %v127
  %v129 = vlaneseq
  %v130 = vshrl.u32 %v129, 7
  %v131 = vsub.s32 2, %v130
  %v132 = vrot.slane %v123, %v131
  %v135 = vlaneseq
  %v136 = vshrl.u32 %v135, 7
  %v137 = vsub.s32 0, %v136
  %v138 = vrot.slane %v128, %v137
  %v139 = vlaneseq
  %v140 = vshrl.u32 %v139, 7
  %v141 = vsub.s32 0, %v140
  %v142 = vrot.slane %v132, %v141
  %v143 = vmul.f32 %v120, %v138
  %v144 = vmul.f32 %v121, %v142
  %145 = vst [vmem:[#allocation2] sm:$0xff] %v143
  %vm146 = vcmask 80896
  %147 = vst.msk [vmem:[#allocation2 + $0x8] sm:$0xff] %vm146, %v144
  %v148 = vld [vmem:[#allocation2] sm:$0xff]
  %v149 = vld [vmem:[#allocation2 + $0x8] sm:$0xff]
  %152 = vrot.lane.b32.xlu0 %v148, 127
  %v153 = vpop.permute.xlu0 %152
  %154 = vrot.lane.b32.xlu0 %v149, 127
  %v155 = vpop.permute.xlu0 %154
  %vm156 = vcmask 1039360
  %v157 = vsel %vm156, %v153, %v155
  %159 = vrot.lane.b32.xlu0 %v148, 126
  %v160 = vpop.permute.xlu0 %159
  %161 = vrot.lane.b32.xlu0 %v149, 126
  %v162 = vpop.permute.xlu0 %161
  %vm163 = vcmask 1031168
  %v164 = vsel %vm163, %v160, %v162
  %166 = vrot.lane.b32.xlu0 %v148, 124
  %v167 = vpop.permute.xlu0 %166
  %168 = vrot.lane.b32.xlu0 %v149, 124
  %v169 = vpop.permute.xlu0 %168
  %vm170 = vcmask 1014784
  %v171 = vsel %vm170, %v167, %v169
  %173 = vrot.lane.b32.xlu0 %v148, 123
  %v174 = vpop.permute.xlu0 %173
  %175 = vrot.lane.b32.xlu0 %v149, 123
  %v176 = vpop.permute.xlu0 %175
  %vm177 = vcmask 1006592
  %v178 = vsel %vm177, %v174, %v176
  %180 = vrot.lane.b32.xlu0 %v148, 122
  %v181 = vpop.permute.xlu0 %180
  %182 = vrot.lane.b32.xlu0 %v149, 122
  %v183 = vpop.permute.xlu0 %182
  %vm184 = vcmask 998400
  %v185 = vsel %vm184, %v181, %v183
  %187 = vrot.lane.b32.xlu0 %v148, 120
  %v188 = vpop.permute.xlu0 %187
  %189 = vrot.lane.b32.xlu0 %v149, 120
  %v190 = vpop.permute.xlu0 %189
  %vm191 = vcmask 982016
  %v192 = vsel %vm191, %v188, %v190
  %194 = vrot.lane.b32.xlu0 %v148, 119
  %v195 = vpop.permute.xlu0 %194
  %196 = vrot.lane.b32.xlu0 %v149, 119
  %v197 = vpop.permute.xlu0 %196
  %vm198 = vcmask 973824
  %v199 = vsel %vm198, %v195, %v197
  %201 = vrot.lane.b32.xlu0 %v148, 118
  %v202 = vpop.permute.xlu0 %201
  %203 = vrot.lane.b32.xlu0 %v149, 118
  %v204 = vpop.permute.xlu0 %203
  %vm205 = vcmask 965632
  %v206 = vsel %vm205, %v202, %v204
  %v208 = vld [vmem:[%s3] sm:$0xf]
  %v209 = vpack.c.bf16 %v157, %v148
  %v210 = vpack.c.bf16 %v171, %v164
  %v211 = vpack.c.bf16 %v185, %v178
  %v212 = vpack.c.bf16 %v199, %v192
  %v213 = vpack.c.bf16 %v206, %v206
  %v214 = vld [vmem:[%s4] sm:$0xff]
  %216 = vset.pattern.permute.xlu0 0
  %217 = vperm.xlu0 %216, %v214
  %v218 = vpop.permute.xlu0 %217
  %v221 = vsel %vm68, %v208, 0
  %v224 = vsel %vm72, %v213, 0
  %226 = vmatprep.subr.bf16.mxu0 0
  %227 = vmatpush1.bf16.msra.mxu0 %v209
  %228 = vmatprep.subr.bf16.mxu0 0
  %229 = vmatpush1.bf16.msra.mxu0 %v210
  %230 = vmatprep.subr.bf16.mxu0 0
  %231 = vmatpush1.bf16.msra.mxu0 %v211
  %232 = vmatprep.subr.bf16.mxu0 0
  %233 = vmatpush1.bf16.msra.mxu0 %v212
  %234 = vmatprep.subr.bf16.mxu0 0
  %235 = vmatpush1.bf16.msra.mxu0 %v224
  %236 = vmatprep.subr.bf16.mxu0 0
  %237 = vmatpush1.bf16.msra.mxu0 0
  %238 = vmatprep.subr.bf16.mxu0 0
  %239 = vmatpush1.bf16.msra.mxu0 0
  %240 = vmatprep.subr.bf16.mxu0 0
  %241 = vmatpush1.bf16.msra.mxu0 0
  %242 = vmatprep.subr.bf16.mxu0 0
  %243 = vmatpush1.bf16.msra.mxu0 0
  %244 = vmatprep.subr.bf16.mxu0 0
  %245 = vmatpush1.bf16.msra.mxu0 0
  %246 = vmatprep.subr.bf16.mxu0 0
  %247 = vmatpush1.bf16.msra.mxu0 0
  %248 = vmatprep.subr.bf16.mxu0 0
  %249 = vmatpush1.bf16.msra.mxu0 0
  %250 = vmatprep.subr.bf16.mxu0 0
  %251 = vmatpush1.bf16.msra.mxu0 0
  %252 = vmatprep.subr.bf16.mxu0 0
  %253 = vmatpush1.bf16.msra.mxu0 0
  %254 = vmatprep.subr.bf16.mxu0 0
  %255 = vmatpush1.bf16.msra.mxu0 0
  %256 = vmatprep.subr.bf16.mxu0 0
  %257 = vmatpush1.bf16.msra.mxu0 0
  %258 = vmatprep.mubr.bf16.mxu0 0
  %259 = vmatmul.mubr.bf16.gmra.mrb[0].mxu0 %v221
  %v260 = vpop.f32.mrb[0].mxu0
  %v261 = vadd.f32 %v218, %v260
  %v262 = vpop.f32.mrb[0].mxu0
  %v263 = vpop.f32.mrb[0].mxu0
  %v264 = vpop.f32.mrb[0].mxu0
  %265 = vdwg.mxu0
  %v266 = vld [vmem:[%s7] sm:$0xff]
  %v267 = vld [vmem:[%s5] sm:$0xf]
  %v268 = vpack.c.bf16 %v266, %v266
  %vm269 = vcmask 64512
  %v271 = vsel %vm269, %v267, 0
  %v274 = vsel %vm72, %v268, 0
  %276 = vmatprep.subr.bf16.mxu0 0
  %277 = vmatpush1.bf16.msra.mxu0 %v274
  %278 = vmatprep.subr.bf16.mxu0 0
  %279 = vmatpush1.bf16.msra.mxu0 0
  %280 = vmatprep.subr.bf16.mxu0 0
  %281 = vmatpush1.bf16.msra.mxu0 0
  %282 = vmatprep.subr.bf16.mxu0 0
  %283 = vmatpush1.bf16.msra.mxu0 0
  %284 = vmatprep.subr.bf16.mxu0 0
  %285 = vmatpush1.bf16.msra.mxu0 0
  %286 = vmatprep.subr.bf16.mxu0 0
  %287 = vmatpush1.bf16.msra.mxu0 0
  %288 = vmatprep.subr.bf16.mxu0 0
  %289 = vmatpush1.bf16.msra.mxu0 0
  %290 = vmatprep.subr.bf16.mxu0 0
  %291 = vmatpush1.bf16.msra.mxu0 0
  %292 = vmatprep.subr.bf16.mxu0 0
  %293 = vmatpush1.bf16.msra.mxu0 0
  %294 = vmatprep.subr.bf16.mxu0 0
  %295 = vmatpush1.bf16.msra.mxu0 0
  %296 = vmatprep.subr.bf16.mxu0 0
  %297 = vmatpush1.bf16.msra.mxu0 0
  %298 = vmatprep.subr.bf16.mxu0 0
  %299 = vmatpush1.bf16.msra.mxu0 0
  %300 = vmatprep.subr.bf16.mxu0 0
  %301 = vmatpush1.bf16.msra.mxu0 0
  %302 = vmatprep.subr.bf16.mxu0 0
  %303 = vmatpush1.bf16.msra.mxu0 0
  %304 = vmatprep.subr.bf16.mxu0 0
  %305 = vmatpush1.bf16.msra.mxu0 0
  %306 = vmatprep.subr.bf16.mxu0 0
  %307 = vmatpush1.bf16.msra.mxu0 0
  %308 = vmatprep.mubr.bf16.mxu0 0
  %309 = vmatmul.mubr.bf16.gmra.mrb[0].mxu0 %v271
  %v310 = vpop.f32.mrb[0].mxu0
  %v311 = vadd.f32 0.0, %v310
  %v312 = vpop.f32.mrb[0].mxu0
  %v313 = vpop.f32.mrb[0].mxu0
  %v314 = vpop.f32.mrb[0].mxu0
  %315 = vdwg.mxu0
  %v316 = vadd.f32 %v261, %v311
  %v317 = vld [vmem:[%s6] sm:$0xff]
  %319 = vset.pattern.permute.xlu0 0
  %320 = vperm.xlu0 %319, %v317
  %v321 = vpop.permute.xlu0 %320
  %v323 = vadd.f32 %v316, %v321
  %v324 = vld [vmem:[%s8] sm:$0x3]
  %v325 = vunpack.c.l.bf16 %v324
  %v327 = vlaneseq
  %v328 = vshrl.u32 %v327, 7
  %v329 = vsub.s32 0, %v328
  %v330 = vrot.slane %v325, %v329
  %v331 = vlaneseq
  %v332 = vshrl.u32 %v331, 7
  %v333 = vsub.s32 2, %v332
  %v334 = vrot.slane %v325, %v333
  %v337 = vlaneseq
  %v338 = vshrl.u32 %v337, 7
  %v339 = vsub.s32 0, %v338
  %v340 = vrot.slane %v330, %v339
  %v341 = vlaneseq
  %v342 = vshrl.u32 %v341, 7
  %v343 = vsub.s32 0, %v342
  %v344 = vrot.slane %v334, %v343
  %347 = vrot.lane.b32.xlu0 %v340, 123
  %v348 = vpop.permute.xlu0 %347
  %349 = vrot.lane.b32.xlu0 %v344, 123
  %v350 = vpop.permute.xlu0 %349
  %v351 = vsel %vm177, %v348, %v350
  %v353 = vmul.f32 %v323, %v351
  %354 = vst [vmem:[%s9] sm:$0xff] %v353
  // Predicated region
  $region38: #{meblock_forward.10} parent=0 // pred_check
    _
  $region39: #{meblock_forward.10} parent=0 // pred_check_branch
    %356 = sbr.rel (0) target = $region41
  $region40: #{meblock_forward.10} parent=0 // pred_region
    _
  $region41: #{meblock_forward.10} parent=0 // pred_fallthru
    _
  // Predicated region
  $region42: #{meblock_forward.10} parent=0 // pred_check
    _
  $region43: #{meblock_forward.10} parent=0 // pred_check_branch
    %358 = sbr.rel (0) target = $region45
  $region44: #{meblock_forward.10} parent=0 // pred_region
    _
  $region45: #{meblock_forward.10} parent=0 // pred_fallthru
    _

// kernel: meblock_forward.14
$region0: #{meblock_forward.14}
  #allocation0 [shape = 'u32[]', space=smem, size = 0x4, offset = 0x4, fixed_abs, tag = 'smem constant byte address 0x4 - core index']
  #allocation1 [shape = 'u32[144,128]{1,0:T(1,128)}', space=vmem, size = 0x12000, scoped, tag = 'internal scratch']
  #allocation2 [shape = 'f32[8,136]{1,0:T(8,128)}', space=vmem, size = 0x2000, scoped, tag = 'scratch operand']
  %s0 = inlined_call_operand.vmem [shape: f32[72,136], index: 0, kind: input, shape index: {}]
  %s1 = inlined_call_operand.vmem [shape: bf16[8,72], index: 1, kind: input, shape index: {}]
  %s2 = inlined_call_operand.vmem [shape: f32[8,1], index: 2, kind: input, shape index: {}]
  %s3 = inlined_call_operand.vmem [shape: bf16[8,72], index: 3, kind: input, shape index: {}]
  %s4 = inlined_call_operand.vmem [shape: f32[8,1], index: 4, kind: input, shape index: {}]
  %s5 = inlined_call_operand.vmem [shape: bf16[8,8], index: 5, kind: input, shape index: {}]
  %s6 = inlined_call_operand.vmem [shape: f32[8,1], index: 6, kind: input, shape index: {}]
  %s7 = inlined_call_operand.vmem [shape: f32[8,128], index: 7, kind: input, shape index: {}]
  %s8 = inlined_call_operand.vmem [shape: bf16[1,136], index: 8, kind: input, shape index: {}]
  %s9 = inlined_call_operand.vmem [shape: f32[8,128], index: 9, kind: output, shape index: {}]
  %s10 = sld [smem:[#allocation0]]
  $region46: #{meblock_forward.14} parent=0
    _
  %s12 = ssub.s32 1, %s10
  %s13 = scalar_select 0, %s12, %s10
  // Predicated region
  $region2: #{meblock_forward.14} parent=0 // pred_check
    _
  $region3: #{meblock_forward.14} parent=0 // pred_check_branch
    %15 = sbr.rel (0) target = $region5
  $region4: #{meblock_forward.14} parent=0 // pred_region
    _
  $region5: #{meblock_forward.14} parent=0 // pred_fallthru
    _
  // Predicated region
  $region6: #{meblock_forward.14} parent=0 // pred_check
    _
  $region7: #{meblock_forward.14} parent=0 // pred_check_branch
    %17 = sbr.rel (0) target = $region9
  $region8: #{meblock_forward.14} parent=0 // pred_region
    _
  $region9: #{meblock_forward.14} parent=0 // pred_fallthru
    _
  // Predicated region
  $region10: #{meblock_forward.14} parent=0 // pred_check
    _
  $region11: #{meblock_forward.14} parent=0 // pred_check_branch
    %19 = sbr.rel (0) target = $region13
  $region12: #{meblock_forward.14} parent=0 // pred_region
    _
  $region13: #{meblock_forward.14} parent=0 // pred_fallthru
    _
  // Predicated region
  $region14: #{meblock_forward.14} parent=0 // pred_check
    _
  $region15: #{meblock_forward.14} parent=0 // pred_check_branch
    %21 = sbr.rel (0) target = $region17
  $region16: #{meblock_forward.14} parent=0 // pred_region
    _
  $region17: #{meblock_forward.14} parent=0 // pred_fallthru
    _
  // Predicated region
  $region18: #{meblock_forward.14} parent=0 // pred_check
    _
  $region19: #{meblock_forward.14} parent=0 // pred_check_branch
    %23 = sbr.rel (0) target = $region21
  $region20: #{meblock_forward.14} parent=0 // pred_region
    _
  $region21: #{meblock_forward.14} parent=0 // pred_fallthru
    _
  // Predicated region
  $region22: #{meblock_forward.14} parent=0 // pred_check
    _
  $region23: #{meblock_forward.14} parent=0 // pred_check_branch
    %25 = sbr.rel (0) target = $region25
  $region24: #{meblock_forward.14} parent=0 // pred_region
    _
  $region25: #{meblock_forward.14} parent=0 // pred_fallthru
    _
  // Predicated region
  $region26: #{meblock_forward.14} parent=0 // pred_check
    _
  $region27: #{meblock_forward.14} parent=0 // pred_check_branch
    %27 = sbr.rel (0) target = $region29
  $region28: #{meblock_forward.14} parent=0 // pred_region
    _
  $region29: #{meblock_forward.14} parent=0 // pred_fallthru
    _
  // Predicated region
  $region30: #{meblock_forward.14} parent=0 // pred_check
    _
  $region31: #{meblock_forward.14} parent=0 // pred_check_branch
    %29 = sbr.rel (0) target = $region33
  $region32: #{meblock_forward.14} parent=0 // pred_region
    _
  $region33: #{meblock_forward.14} parent=0 // pred_fallthru
    _
  // Predicated region
  $region34: #{meblock_forward.14} parent=0 // pred_check
    _
  $region35: #{meblock_forward.14} parent=0 // pred_check_branch
    %31 = sbr.rel (0) target = $region37
  $region36: #{meblock_forward.14} parent=0 // pred_region
    _
  $region37: #{meblock_forward.14} parent=0 // pred_fallthru
    _
  %v33 = vld [vmem:[%s0] sm:$0xff]
  %v34 = vld [vmem:[%s0 + $0x8] sm:$0xff]
  %v35 = vld [vmem:[%s0 + $0x10] sm:$0xff]
  %v36 = vld [vmem:[%s0 + $0x18] sm:$0xff]
  %v37 = vld [vmem:[%s0 + $0x20] sm:$0xff]
  %v38 = vld [vmem:[%s0 + $0x28] sm:$0xff]
  %v39 = vld [vmem:[%s0 + $0x30] sm:$0xff]
  %v40 = vld [vmem:[%s0 + $0x38] sm:$0xff]
  %v41 = vld [vmem:[%s0 + $0x40] sm:$0xff]
  %v42 = vld [vmem:[%s0 + $0x48] sm:$0xff]
  %v43 = vld [vmem:[%s0 + $0x50] sm:$0xff]
  %v44 = vld [vmem:[%s0 + $0x58] sm:$0xff]
  %v45 = vld [vmem:[%s0 + $0x60] sm:$0xff]
  %v46 = vld [vmem:[%s0 + $0x68] sm:$0xff]
  %v47 = vld [vmem:[%s0 + $0x70] sm:$0xff]
  %v48 = vld [vmem:[%s0 + $0x78] sm:$0xff]
  %v49 = vld [vmem:[%s0 + $0x80] sm:$0xff]
  %v50 = vld [vmem:[%s0 + $0x88] sm:$0xff]
  %v51 = vld [vmem:[%s1] sm:$0xf]
  %v52 = vpack.c.bf16 %v35, %v33
  %v53 = vpack.c.bf16 %v36, %v34
  %v54 = vpack.c.bf16 %v39, %v37
  %v55 = vpack.c.bf16 %v40, %v38
  %v56 = vpack.c.bf16 %v43, %v41
  %v57 = vpack.c.bf16 %v44, %v42
  %v58 = vpack.c.bf16 %v47, %v45
  %v59 = vpack.c.bf16 %v48, %v46
  %v60 = vpack.c.bf16 %v49, %v49
  %v61 = vpack.c.bf16 %v50, %v50
  %v62 = vld [vmem:[%s2] sm:$0xff]
  %64 = vset.pattern.permute.xlu0 0
  %65 = vperm.xlu0 %64, %v62
  %v66 = vpop.permute.xlu0 %65
  %vm68 = vcmask 588800
  %v70 = vsel %vm68, %v51, 0
  %vm72 = vcmask 1043456
  %v74 = vsel %vm72, %v60, 0
  %v77 = vsel %vm72, %v61, 0
  %79 = vmatprep.subr.bf16.mxu0 %v53
  %80 = vmatpush1.bf16.msra.mxu0 %v52
  %81 = vmatprep.subr.bf16.mxu0 %v55
  %82 = vmatpush1.bf16.msra.mxu0 %v54
  %83 = vmatprep.subr.bf16.mxu0 %v57
  %84 = vmatpush1.bf16.msra.mxu0 %v56
  %85 = vmatprep.subr.bf16.mxu0 %v59
  %86 = vmatpush1.bf16.msra.mxu0 %v58
  %87 = vmatprep.subr.bf16.mxu0 %v77
  %88 = vmatpush1.bf16.msra.mxu0 %v74
  %89 = vmatprep.subr.bf16.mxu0 0
  %90 = vmatpush1.bf16.msra.mxu0 0
  %91 = vmatprep.subr.bf16.mxu0 0
  %92 = vmatpush1.bf16.msra.mxu0 0
  %93 = vmatprep.subr.bf16.mxu0 0
  %94 = vmatpush1.bf16.msra.mxu0 0
  %95 = vmatprep.subr.bf16.mxu0 0
  %96 = vmatpush1.bf16.msra.mxu0 0
  %97 = vmatprep.subr.bf16.mxu0 0
  %98 = vmatpush1.bf16.msra.mxu0 0
  %99 = vmatprep.subr.bf16.mxu0 0
  %100 = vmatpush1.bf16.msra.mxu0 0
  %101 = vmatprep.subr.bf16.mxu0 0
  %102 = vmatpush1.bf16.msra.mxu0 0
  %103 = vmatprep.subr.bf16.mxu0 0
  %104 = vmatpush1.bf16.msra.mxu0 0
  %105 = vmatprep.subr.bf16.mxu0 0
  %106 = vmatpush1.bf16.msra.mxu0 0
  %107 = vmatprep.subr.bf16.mxu0 0
  %108 = vmatpush1.bf16.msra.mxu0 0
  %109 = vmatprep.subr.bf16.mxu0 0
  %110 = vmatpush1.bf16.msra.mxu0 0
  %111 = vmatprep.mubr.bf16.mxu0 0
  %112 = vmatmul.mubr.bf16.gmra.mrb[0].mxu0 %v70
  %v113 = vpop.f32.mrb[0].mxu0
  %v114 = vadd.f32 %v66, %v113
  %v115 = vpop.f32.mrb[0].mxu0
  %v116 = vadd.f32 %v66, %v115
  %v117 = vpop.f32.mrb[0].mxu0
  %v118 = vpop.f32.mrb[0].mxu0
  %119 = vdwg.mxu0
  %v120 = vmax.f32 %v114, 0.0
  %v121 = vmax.f32 %v116, 0.0
  %v122 = vld [vmem:[%s8] sm:$0x3]
  %v123 = vunpack.c.l.bf16 %v122
  %v125 = vlaneseq
  %v126 = vshrl.u32 %v125, 7
  %v127 = vsub.s32 0, %v126
  %v128 = vrot.slane %v123, %v127
  %v129 = vlaneseq
  %v130 = vshrl.u32 %v129, 7
  %v131 = vsub.s32 2, %v130
  %v132 = vrot.slane %v123, %v131
  %v135 = vlaneseq
  %v136 = vshrl.u32 %v135, 7
  %v137 = vsub.s32 0, %v136
  %v138 = vrot.slane %v128, %v137
  %v139 = vlaneseq
  %v140 = vshrl.u32 %v139, 7
  %v141 = vsub.s32 0, %v140
  %v142 = vrot.slane %v132, %v141
  %v143 = vmul.f32 %v120, %v138
  %v144 = vmul.f32 %v121, %v142
  %145 = vst [vmem:[#allocation2] sm:$0xff] %v143
  %vm146 = vcmask 64512
  %147 = vst.msk [vmem:[#allocation2 + $0x8] sm:$0xff] %vm146, %v144
  %v148 = vld [vmem:[#allocation2] sm:$0xff]
  %v149 = vld [vmem:[#allocation2 + $0x8] sm:$0xff]
  %152 = vrot.lane.b32.xlu0 %v148, 127
  %v153 = vpop.permute.xlu0 %152
  %154 = vrot.lane.b32.xlu0 %v149, 127
  %v155 = vpop.permute.xlu0 %154
  %vm156 = vcmask 1039360
  %v157 = vsel %vm156, %v153, %v155
  %159 = vrot.lane.b32.xlu0 %v148, 126
  %v160 = vpop.permute.xlu0 %159
  %161 = vrot.lane.b32.xlu0 %v149, 126
  %v162 = vpop.permute.xlu0 %161
  %vm163 = vcmask 1031168
  %v164 = vsel %vm163, %v160, %v162
  %166 = vrot.lane.b32.xlu0 %v148, 125
  %v167 = vpop.permute.xlu0 %166
  %168 = vrot.lane.b32.xlu0 %v149, 125
  %v169 = vpop.permute.xlu0 %168
  %vm170 = vcmask 1022976
  %v171 = vsel %vm170, %v167, %v169
  %173 = vrot.lane.b32.xlu0 %v148, 124
  %v174 = vpop.permute.xlu0 %173
  %175 = vrot.lane.b32.xlu0 %v149, 124
  %v176 = vpop.permute.xlu0 %175
  %vm177 = vcmask 1014784
  %v178 = vsel %vm177, %v174, %v176
  %180 = vrot.lane.b32.xlu0 %v148, 123
  %v181 = vpop.permute.xlu0 %180
  %182 = vrot.lane.b32.xlu0 %v149, 123
  %v183 = vpop.permute.xlu0 %182
  %vm184 = vcmask 1006592
  %v185 = vsel %vm184, %v181, %v183
  %187 = vrot.lane.b32.xlu0 %v148, 122
  %v188 = vpop.permute.xlu0 %187
  %189 = vrot.lane.b32.xlu0 %v149, 122
  %v190 = vpop.permute.xlu0 %189
  %vm191 = vcmask 998400
  %v192 = vsel %vm191, %v188, %v190
  %194 = vrot.lane.b32.xlu0 %v148, 121
  %v195 = vpop.permute.xlu0 %194
  %196 = vrot.lane.b32.xlu0 %v149, 121
  %v197 = vpop.permute.xlu0 %196
  %vm198 = vcmask 990208
  %v199 = vsel %vm198, %v195, %v197
  %201 = vrot.lane.b32.xlu0 %v148, 120
  %v202 = vpop.permute.xlu0 %201
  %203 = vrot.lane.b32.xlu0 %v149, 120
  %v204 = vpop.permute.xlu0 %203
  %vm205 = vcmask 982016
  %v206 = vsel %vm205, %v202, %v204
  %v208 = vld [vmem:[%s3] sm:$0xf]
  %v209 = vpack.c.bf16 %v157, %v148
  %v210 = vpack.c.bf16 %v171, %v164
  %v211 = vpack.c.bf16 %v185, %v178
  %v212 = vpack.c.bf16 %v199, %v192
  %v213 = vpack.c.bf16 %v206, %v206
  %v214 = vld [vmem:[%s4] sm:$0xff]
  %216 = vset.pattern.permute.xlu0 0
  %217 = vperm.xlu0 %216, %v214
  %v218 = vpop.permute.xlu0 %217
  %v221 = vsel %vm68, %v208, 0
  %v224 = vsel %vm72, %v213, 0
  %226 = vmatprep.subr.bf16.mxu0 0
  %227 = vmatpush1.bf16.msra.mxu0 %v209
  %228 = vmatprep.subr.bf16.mxu0 0
  %229 = vmatpush1.bf16.msra.mxu0 %v210
  %230 = vmatprep.subr.bf16.mxu0 0
  %231 = vmatpush1.bf16.msra.mxu0 %v211
  %232 = vmatprep.subr.bf16.mxu0 0
  %233 = vmatpush1.bf16.msra.mxu0 %v212
  %234 = vmatprep.subr.bf16.mxu0 0
  %235 = vmatpush1.bf16.msra.mxu0 %v224
  %236 = vmatprep.subr.bf16.mxu0 0
  %237 = vmatpush1.bf16.msra.mxu0 0
  %238 = vmatprep.subr.bf16.mxu0 0
  %239 = vmatpush1.bf16.msra.mxu0 0
  %240 = vmatprep.subr.bf16.mxu0 0
  %241 = vmatpush1.bf16.msra.mxu0 0
  %242 = vmatprep.subr.bf16.mxu0 0
  %243 = vmatpush1.bf16.msra.mxu0 0
  %244 = vmatprep.subr.bf16.mxu0 0
  %245 = vmatpush1.bf16.msra.mxu0 0
  %246 = vmatprep.subr.bf16.mxu0 0
  %247 = vmatpush1.bf16.msra.mxu0 0
  %248 = vmatprep.subr.bf16.mxu0 0
  %249 = vmatpush1.bf16.msra.mxu0 0
  %250 = vmatprep.subr.bf16.mxu0 0
  %251 = vmatpush1.bf16.msra.mxu0 0
  %252 = vmatprep.subr.bf16.mxu0 0
  %253 = vmatpush1.bf16.msra.mxu0 0
  %254 = vmatprep.subr.bf16.mxu0 0
  %255 = vmatpush1.bf16.msra.mxu0 0
  %256 = vmatprep.subr.bf16.mxu0 0
  %257 = vmatpush1.bf16.msra.mxu0 0
  %258 = vmatprep.mubr.bf16.mxu0 0
  %259 = vmatmul.mubr.bf16.gmra.mrb[0].mxu0 %v221
  %v260 = vpop.f32.mrb[0].mxu0
  %v261 = vadd.f32 %v218, %v260
  %v262 = vpop.f32.mrb[0].mxu0
  %v263 = vpop.f32.mrb[0].mxu0
  %v264 = vpop.f32.mrb[0].mxu0
  %265 = vdwg.mxu0
  %v266 = vld [vmem:[%s7] sm:$0xff]
  %v267 = vld [vmem:[%s5] sm:$0xf]
  %v268 = vpack.c.bf16 %v266, %v266
  %v270 = vsel %vm146, %v267, 0
  %v273 = vsel %vm72, %v268, 0
  %275 = vmatprep.subr.bf16.mxu0 0
  %276 = vmatpush1.bf16.msra.mxu0 %v273
  %277 = vmatprep.subr.bf16.mxu0 0
  %278 = vmatpush1.bf16.msra.mxu0 0
  %279 = vmatprep.subr.bf16.mxu0 0
  %280 = vmatpush1.bf16.msra.mxu0 0
  %281 = vmatprep.subr.bf16.mxu0 0
  %282 = vmatpush1.bf16.msra.mxu0 0
  %283 = vmatprep.subr.bf16.mxu0 0
  %284 = vmatpush1.bf16.msra.mxu0 0
  %285 = vmatprep.subr.bf16.mxu0 0
  %286 = vmatpush1.bf16.msra.mxu0 0
  %287 = vmatprep.subr.bf16.mxu0 0
  %288 = vmatpush1.bf16.msra.mxu0 0
  %289 = vmatprep.subr.bf16.mxu0 0
  %290 = vmatpush1.bf16.msra.mxu0 0
  %291 = vmatprep.subr.bf16.mxu0 0
  %292 = vmatpush1.bf16.msra.mxu0 0
  %293 = vmatprep.subr.bf16.mxu0 0
  %294 = vmatpush1.bf16.msra.mxu0 0
  %295 = vmatprep.subr.bf16.mxu0 0
  %296 = vmatpush1.bf16.msra.mxu0 0
  %297 = vmatprep.subr.bf16.mxu0 0
  %298 = vmatpush1.bf16.msra.mxu0 0
  %299 = vmatprep.subr.bf16.mxu0 0
  %300 = vmatpush1.bf16.msra.mxu0 0
  %301 = vmatprep.subr.bf16.mxu0 0
  %302 = vmatpush1.bf16.msra.mxu0 0
  %303 = vmatprep.subr.bf16.mxu0 0
  %304 = vmatpush1.bf16.msra.mxu0 0
  %305 = vmatprep.subr.bf16.mxu0 0
  %306 = vmatpush1.bf16.msra.mxu0 0
  %307 = vmatprep.mubr.bf16.mxu0 0
  %308 = vmatmul.mubr.bf16.gmra.mrb[0].mxu0 %v270
  %v309 = vpop.f32.mrb[0].mxu0
  %v310 = vadd.f32 0.0, %v309
  %v311 = vpop.f32.mrb[0].mxu0
  %v312 = vpop.f32.mrb[0].mxu0
  %v313 = vpop.f32.mrb[0].mxu0
  %314 = vdwg.mxu0
  %v315 = vadd.f32 %v261, %v310
  %v316 = vld [vmem:[%s6] sm:$0xff]
  %318 = vset.pattern.permute.xlu0 0
  %319 = vperm.xlu0 %318, %v316
  %v320 = vpop.permute.xlu0 %319
  %v322 = vadd.f32 %v315, %v320
  %v323 = vld [vmem:[%s8] sm:$0x3]
  %v324 = vunpack.c.l.bf16 %v323
  %v326 = vlaneseq
  %v327 = vshrl.u32 %v326, 7
  %v328 = vsub.s32 0, %v327
  %v329 = vrot.slane %v324, %v328
  %v330 = vlaneseq
  %v331 = vshrl.u32 %v330, 7
  %v332 = vsub.s32 2, %v331
  %v333 = vrot.slane %v324, %v332
  %v336 = vlaneseq
  %v337 = vshrl.u32 %v336, 7
  %v338 = vsub.s32 0, %v337
  %v339 = vrot.slane %v329, %v338
  %v340 = vlaneseq
  %v341 = vshrl.u32 %v340, 7
  %v342 = vsub.s32 0, %v341
  %v343 = vrot.slane %v333, %v342
  %346 = vrot.lane.b32.xlu0 %v339, 124
  %v347 = vpop.permute.xlu0 %346
  %348 = vrot.lane.b32.xlu0 %v343, 124
  %v349 = vpop.permute.xlu0 %348
  %v350 = vsel %vm177, %v347, %v349
  %v352 = vmul.f32 %v322, %v350
  %353 = vst [vmem:[%s9] sm:$0xff] %v352
  // Predicated region
  $region38: #{meblock_forward.14} parent=0 // pred_check
    _
  $region39: #{meblock_forward.14} parent=0 // pred_check_branch
    %355 = sbr.rel (0) target = $region41
  $region40: #{meblock_forward.14} parent=0 // pred_region
    _
  $region41: #{meblock_forward.14} parent=0 // pred_fallthru
    _
  // Predicated region
  $region42: #{meblock_forward.14} parent=0 // pred_check
    _
  $region43: #{meblock_forward.14} parent=0 // pred_check_branch
    %357 = sbr.rel (0) target = $region45
  $region44: #{meblock_forward.14} parent=0 // pred_region
    _
  $region45: #{meblock_forward.14} parent=0 // pred_fallthru
    _

// kernel: meblock_forward.19
$region0: #{meblock_forward.19}
  #allocation0 [shape = 'u32[]', space=smem, size = 0x4, offset = 0x4, fixed_abs, tag = 'smem constant byte address 0x4 - core index']
  #allocation1 [shape = 'u32[144,128]{1,0:T(1,128)}', space=vmem, size = 0x12000, scoped, tag = 'internal scratch']
  #allocation2 [shape = 'f32[8,806]{1,0:T(8,128)}', space=vmem, size = 0x7000, scoped, tag = 'scratch operand']
  %s0 = inlined_call_operand.vmem [shape: f32[16,844], index: 0, kind: input, shape index: {}]
  %s1 = inlined_call_operand.vmem [shape: bf16[8,144], index: 1, kind: input, shape index: {}]
  %s2 = inlined_call_operand.vmem [shape: f32[8,1], index: 2, kind: input, shape index: {}]
  %s3 = inlined_call_operand.vmem [shape: bf16[8,72], index: 3, kind: input, shape index: {}]
  %s4 = inlined_call_operand.vmem [shape: f32[8,1], index: 4, kind: input, shape index: {}]
  %s5 = inlined_call_operand.vmem [shape: bf16[8,16], index: 5, kind: input, shape index: {}]
  %s6 = inlined_call_operand.vmem [shape: f32[8,1], index: 6, kind: input, shape index: {}]
  %s7 = inlined_call_operand.vmem [shape: f32[16,768], index: 7, kind: input, shape index: {}]
  %s8 = inlined_call_operand.vmem [shape: bf16[1,806], index: 8, kind: input, shape index: {}]
  %s9 = inlined_call_operand.vmem [shape: f32[8,768], index: 9, kind: output, shape index: {}]
  %s10 = sld [smem:[#allocation0]]
  $region46: #{meblock_forward.19} parent=0
    _
  %s12 = ssub.s32 1, %s10
  %s13 = scalar_select 0, %s12, %s10
  // Predicated region
  $region2: #{meblock_forward.19} parent=0 // pred_check
    _
  $region3: #{meblock_forward.19} parent=0 // pred_check_branch
    %15 = sbr.rel (0) target = $region5
  $region4: #{meblock_forward.19} parent=0 // pred_region
    _
  $region5: #{meblock_forward.19} parent=0 // pred_fallthru
    _
  // Predicated region
  $region6: #{meblock_forward.19} parent=0 // pred_check
    _
  $region7: #{meblock_forward.19} parent=0 // pred_check_branch
    %17 = sbr.rel (0) target = $region9
  $region8: #{meblock_forward.19} parent=0 // pred_region
    _
  $region9: #{meblock_forward.19} parent=0 // pred_fallthru
    _
  // Predicated region
  $region10: #{meblock_forward.19} parent=0 // pred_check
    _
  $region11: #{meblock_forward.19} parent=0 // pred_check_branch
    %19 = sbr.rel (0) target = $region13
  $region12: #{meblock_forward.19} parent=0 // pred_region
    _
  $region13: #{meblock_forward.19} parent=0 // pred_fallthru
    _
  // Predicated region
  $region14: #{meblock_forward.19} parent=0 // pred_check
    _
  $region15: #{meblock_forward.19} parent=0 // pred_check_branch
    %21 = sbr.rel (0) target = $region17
  $region16: #{meblock_forward.19} parent=0 // pred_region
    _
  $region17: #{meblock_forward.19} parent=0 // pred_fallthru
    _
  // Predicated region
  $region18: #{meblock_forward.19} parent=0 // pred_check
    _
  $region19: #{meblock_forward.19} parent=0 // pred_check_branch
    %23 = sbr.rel (0) target = $region21
  $region20: #{meblock_forward.19} parent=0 // pred_region
    _
  $region21: #{meblock_forward.19} parent=0 // pred_fallthru
    _
  // Predicated region
  $region22: #{meblock_forward.19} parent=0 // pred_check
    _
  $region23: #{meblock_forward.19} parent=0 // pred_check_branch
    %25 = sbr.rel (0) target = $region25
  $region24: #{meblock_forward.19} parent=0 // pred_region
    _
  $region25: #{meblock_forward.19} parent=0 // pred_fallthru
    _
  // Predicated region
  $region26: #{meblock_forward.19} parent=0 // pred_check
    _
  $region27: #{meblock_forward.19} parent=0 // pred_check_branch
    %27 = sbr.rel (0) target = $region29
  $region28: #{meblock_forward.19} parent=0 // pred_region
    _
  $region29: #{meblock_forward.19} parent=0 // pred_fallthru
    _
  // Predicated region
  $region30: #{meblock_forward.19} parent=0 // pred_check
    _
  $region31: #{meblock_forward.19} parent=0 // pred_check_branch
    %29 = sbr.rel (0) target = $region33
  $region32: #{meblock_forward.19} parent=0 // pred_region
    _
  $region33: #{meblock_forward.19} parent=0 // pred_fallthru
    _
  // Predicated region
  $region34: #{meblock_forward.19} parent=0 // pred_check
    _
  $region35: #{meblock_forward.19} parent=0 // pred_check_branch
    %31 = sbr.rel (0) target = $region37
  $region36: #{meblock_forward.19} parent=0 // pred_region
    _
  $region37: #{meblock_forward.19} parent=0 // pred_fallthru
    _
  %v33 = vld [vmem:[%s0] sm:$0xff]
  %v34 = vld [vmem:[%s0 + $0x8] sm:$0xff]
  %v35 = vld [vmem:[%s0 + $0x10] sm:$0xff]
  %v36 = vld [vmem:[%s0 + $0x18] sm:$0xff]
  %v37 = vld [vmem:[%s0 + $0x20] sm:$0xff]
  %v38 = vld [vmem:[%s0 + $0x28] sm:$0xff]
  %v39 = vld [vmem:[%s0 + $0x30] sm:$0xff]
  %v40 = vld [vmem:[%s0 + $0x38] sm:$0xff]
  %v41 = vld [vmem:[%s0 + $0x40] sm:$0xff]
  %v42 = vld [vmem:[%s0 + $0x48] sm:$0xff]
  %v43 = vld [vmem:[%s0 + $0x50] sm:$0xff]
  %v44 = vld [vmem:[%s0 + $0x58] sm:$0xff]
  %v45 = vld [vmem:[%s0 + $0x60] sm:$0xff]
  %v46 = vld [vmem:[%s0 + $0x68] sm:$0xff]
  %61 = vrot.lane.b32.xlu0 %v33, 127
  %v62 = vpop.permute.xlu0 %61
  %63 = vrot.lane.b32.xlu0 %v34, 127
  %v64 = vpop.permute.xlu0 %63
  %65 = vrot.lane.b32.xlu0 %v35, 127
  %v66 = vpop.permute.xlu0 %65
  %67 = vrot.lane.b32.xlu0 %v36, 127
  %v68 = vpop.permute.xlu0 %67
  %69 = vrot.lane.b32.xlu0 %v37, 127
  %v70 = vpop.permute.xlu0 %69
  %71 = vrot.lane.b32.xlu0 %v38, 127
  %v72 = vpop.permute.xlu0 %71
  %73 = vrot.lane.b32.xlu0 %v39, 127
  %v74 = vpop.permute.xlu0 %73
  %75 = vrot.lane.b32.xlu0 %v40, 127
  %v76 = vpop.permute.xlu0 %75
  %77 = vrot.lane.b32.xlu0 %v41, 127
  %v78 = vpop.permute.xlu0 %77
  %79 = vrot.lane.b32.xlu0 %v42, 127
  %v80 = vpop.permute.xlu0 %79
  %81 = vrot.lane.b32.xlu0 %v43, 127
  %v82 = vpop.permute.xlu0 %81
  %83 = vrot.lane.b32.xlu0 %v44, 127
  %v84 = vpop.permute.xlu0 %83
  %85 = vrot.lane.b32.xlu0 %v45, 127
  %v86 = vpop.permute.xlu0 %85
  %87 = vrot.lane.b32.xlu0 %v46, 127
  %v88 = vpop.permute.xlu0 %87
  %vm89 = vcmask 1039360
  %v90 = vsel %vm89, %v62, %v64
  %v91 = vsel %vm89, %v64, %v66
  %v92 = vsel %vm89, %v66, %v68
  %v93 = vsel %vm89, %v68, %v70
  %v94 = vsel %vm89, %v70, %v72
  %v95 = vsel %vm89, %v72, %v74
  %v96 = vsel %vm89, %v76, %v78
  %v97 = vsel %vm89, %v78, %v80
  %v98 = vsel %vm89, %v80, %v82
  %v99 = vsel %vm89, %v82, %v84
  %v100 = vsel %vm89, %v84, %v86
  %v101 = vsel %vm89, %v86, %v88
  %116 = vrot.lane.b32.xlu0 %v33, 126
  %v117 = vpop.permute.xlu0 %116
  %118 = vrot.lane.b32.xlu0 %v34, 126
  %v119 = vpop.permute.xlu0 %118
  %120 = vrot.lane.b32.xlu0 %v35, 126
  %v121 = vpop.permute.xlu0 %120
  %122 = vrot.lane.b32.xlu0 %v36, 126
  %v123 = vpop.permute.xlu0 %122
  %124 = vrot.lane.b32.xlu0 %v37, 126
  %v125 = vpop.permute.xlu0 %124
  %126 = vrot.lane.b32.xlu0 %v38, 126
  %v127 = vpop.permute.xlu0 %126
  %128 = vrot.lane.b32.xlu0 %v39, 126
  %v129 = vpop.permute.xlu0 %128
  %130 = vrot.lane.b32.xlu0 %v40, 126
  %v131 = vpop.permute.xlu0 %130
  %132 = vrot.lane.b32.xlu0 %v41, 126
  %v133 = vpop.permute.xlu0 %132
  %134 = vrot.lane.b32.xlu0 %v42, 126
  %v135 = vpop.permute.xlu0 %134
  %136 = vrot.lane.b32.xlu0 %v43, 126
  %v137 = vpop.permute.xlu0 %136
  %138 = vrot.lane.b32.xlu0 %v44, 126
  %v139 = vpop.permute.xlu0 %138
  %140 = vrot.lane.b32.xlu0 %v45, 126
  %v141 = vpop.permute.xlu0 %140
  %142 = vrot.lane.b32.xlu0 %v46, 126
  %v143 = vpop.permute.xlu0 %142
  %vm144 = vcmask 1031168
  %v145 = vsel %vm144, %v117, %v119
  %v146 = vsel %vm144, %v119, %v121
  %v147 = vsel %vm144, %v121, %v123
  %v148 = vsel %vm144, %v123, %v125
  %v149 = vsel %vm144, %v125, %v127
  %v150 = vsel %vm144, %v127, %v129
  %v151 = vsel %vm144, %v131, %v133
  %v152 = vsel %vm144, %v133, %v135
  %v153 = vsel %vm144, %v135, %v137
  %v154 = vsel %vm144, %v137, %v139
  %v155 = vsel %vm144, %v139, %v141
  %v156 = vsel %vm144, %v141, %v143
  %171 = vrot.lane.b32.xlu0 %v33, 110
  %v172 = vpop.permute.xlu0 %171
  %173 = vrot.lane.b32.xlu0 %v34, 110
  %v174 = vpop.permute.xlu0 %173
  %175 = vrot.lane.b32.xlu0 %v35, 110
  %v176 = vpop.permute.xlu0 %175
  %177 = vrot.lane.b32.xlu0 %v36, 110
  %v178 = vpop.permute.xlu0 %177
  %179 = vrot.lane.b32.xlu0 %v37, 110
  %v180 = vpop.permute.xlu0 %179
  %181 = vrot.lane.b32.xlu0 %v38, 110
  %v182 = vpop.permute.xlu0 %181
  %183 = vrot.lane.b32.xlu0 %v39, 110
  %v184 = vpop.permute.xlu0 %183
  %185 = vrot.lane.b32.xlu0 %v40, 110
  %v186 = vpop.permute.xlu0 %185
  %187 = vrot.lane.b32.xlu0 %v41, 110
  %v188 = vpop.permute.xlu0 %187
  %189 = vrot.lane.b32.xlu0 %v42, 110
  %v190 = vpop.permute.xlu0 %189
  %191 = vrot.lane.b32.xlu0 %v43, 110
  %v192 = vpop.permute.xlu0 %191
  %193 = vrot.lane.b32.xlu0 %v44, 110
  %v194 = vpop.permute.xlu0 %193
  %195 = vrot.lane.b32.xlu0 %v45, 110
  %v196 = vpop.permute.xlu0 %195
  %197 = vrot.lane.b32.xlu0 %v46, 110
  %v198 = vpop.permute.xlu0 %197
  %vm199 = vcmask 900096
  %v200 = vsel %vm199, %v172, %v174
  %v201 = vsel %vm199, %v174, %v176
  %v202 = vsel %vm199, %v176, %v178
  %v203 = vsel %vm199, %v178, %v180
  %v204 = vsel %vm199, %v180, %v182
  %v205 = vsel %vm199, %v182, %v184
  %v206 = vsel %vm199, %v186, %v188
  %v207 = vsel %vm199, %v188, %v190
  %v208 = vsel %vm199, %v190, %v192
  %v209 = vsel %vm199, %v192, %v194
  %v210 = vsel %vm199, %v194, %v196
  %v211 = vsel %vm199, %v196, %v198
  %226 = vrot.lane.b32.xlu0 %v33, 109
  %v227 = vpop.permute.xlu0 %226
  %228 = vrot.lane.b32.xlu0 %v34, 109
  %v229 = vpop.permute.xlu0 %228
  %230 = vrot.lane.b32.xlu0 %v35, 109
  %v231 = vpop.permute.xlu0 %230
  %232 = vrot.lane.b32.xlu0 %v36, 109
  %v233 = vpop.permute.xlu0 %232
  %234 = vrot.lane.b32.xlu0 %v37, 109
  %v235 = vpop.permute.xlu0 %234
  %236 = vrot.lane.b32.xlu0 %v38, 109
  %v237 = vpop.permute.xlu0 %236
  %238 = vrot.lane.b32.xlu0 %v39, 109
  %v239 = vpop.permute.xlu0 %238
  %240 = vrot.lane.b32.xlu0 %v40, 109
  %v241 = vpop.permute.xlu0 %240
  %242 = vrot.lane.b32.xlu0 %v41, 109
  %v243 = vpop.permute.xlu0 %242
  %244 = vrot.lane.b32.xlu0 %v42, 109
  %v245 = vpop.permute.xlu0 %244
  %246 = vrot.lane.b32.xlu0 %v43, 109
  %v247 = vpop.permute.xlu0 %246
  %248 = vrot.lane.b32.xlu0 %v44, 109
  %v249 = vpop.permute.xlu0 %248
  %250 = vrot.lane.b32.xlu0 %v45, 109
  %v251 = vpop.permute.xlu0 %250
  %252 = vrot.lane.b32.xlu0 %v46, 109
  %v253 = vpop.permute.xlu0 %252
  %vm254 = vcmask 891904
  %v255 = vsel %vm254, %v227, %v229
  %v256 = vsel %vm254, %v229, %v231
  %v257 = vsel %vm254, %v231, %v233
  %v258 = vsel %vm254, %v233, %v235
  %v259 = vsel %vm254, %v235, %v237
  %v260 = vsel %vm254, %v237, %v239
  %v261 = vsel %vm254, %v241, %v243
  %v262 = vsel %vm254, %v243, %v245
  %v263 = vsel %vm254, %v245, %v247
  %v264 = vsel %vm254, %v247, %v249
  %v265 = vsel %vm254, %v249, %v251
  %v266 = vsel %vm254, %v251, %v253
  %281 = vrot.lane.b32.xlu0 %v33, 108
  %v282 = vpop.permute.xlu0 %281
  %283 = vrot.lane.b32.xlu0 %v34, 108
  %v284 = vpop.permute.xlu0 %283
  %285 = vrot.lane.b32.xlu0 %v35, 108
  %v286 = vpop.permute.xlu0 %285
  %287 = vrot.lane.b32.xlu0 %v36, 108
  %v288 = vpop.permute.xlu0 %287
  %289 = vrot.lane.b32.xlu0 %v37, 108
  %v290 = vpop.permute.xlu0 %289
  %291 = vrot.lane.b32.xlu0 %v38, 108
  %v292 = vpop.permute.xlu0 %291
  %293 = vrot.lane.b32.xlu0 %v39, 108
  %v294 = vpop.permute.xlu0 %293
  %295 = vrot.lane.b32.xlu0 %v40, 108
  %v296 = vpop.permute.xlu0 %295
  %297 = vrot.lane.b32.xlu0 %v41, 108
  %v298 = vpop.permute.xlu0 %297
  %299 = vrot.lane.b32.xlu0 %v42, 108
  %v300 = vpop.permute.xlu0 %299
  %301 = vrot.lane.b32.xlu0 %v43, 108
  %v302 = vpop.permute.xlu0 %301
  %303 = vrot.lane.b32.xlu0 %v44, 108
  %v304 = vpop.permute.xlu0 %303
  %305 = vrot.lane.b32.xlu0 %v45, 108
  %v306 = vpop.permute.xlu0 %305
  %307 = vrot.lane.b32.xlu0 %v46, 108
  %v308 = vpop.permute.xlu0 %307
  %vm309 = vcmask 883712
  %v310 = vsel %vm309, %v282, %v284
  %v311 = vsel %vm309, %v284, %v286
  %v312 = vsel %vm309, %v286, %v288
  %v313 = vsel %vm309, %v288, %v290
  %v314 = vsel %vm309, %v290, %v292
  %v315 = vsel %vm309, %v292, %v294
  %v316 = vsel %vm309, %v296, %v298
  %v317 = vsel %vm309, %v298, %v300
  %v318 = vsel %vm309, %v300, %v302
  %v319 = vsel %vm309, %v302, %v304
  %v320 = vsel %vm309, %v304, %v306
  %v321 = vsel %vm309, %v306, %v308
  %336 = vrot.lane.b32.xlu0 %v33, 92
  %v337 = vpop.permute.xlu0 %336
  %338 = vrot.lane.b32.xlu0 %v34, 92
  %v339 = vpop.permute.xlu0 %338
  %340 = vrot.lane.b32.xlu0 %v35, 92
  %v341 = vpop.permute.xlu0 %340
  %342 = vrot.lane.b32.xlu0 %v36, 92
  %v343 = vpop.permute.xlu0 %342
  %344 = vrot.lane.b32.xlu0 %v37, 92
  %v345 = vpop.permute.xlu0 %344
  %346 = vrot.lane.b32.xlu0 %v38, 92
  %v347 = vpop.permute.xlu0 %346
  %348 = vrot.lane.b32.xlu0 %v39, 92
  %v349 = vpop.permute.xlu0 %348
  %350 = vrot.lane.b32.xlu0 %v40, 92
  %v351 = vpop.permute.xlu0 %350
  %352 = vrot.lane.b32.xlu0 %v41, 92
  %v353 = vpop.permute.xlu0 %352
  %354 = vrot.lane.b32.xlu0 %v42, 92
  %v355 = vpop.permute.xlu0 %354
  %356 = vrot.lane.b32.xlu0 %v43, 92
  %v357 = vpop.permute.xlu0 %356
  %358 = vrot.lane.b32.xlu0 %v44, 92
  %v359 = vpop.permute.xlu0 %358
  %360 = vrot.lane.b32.xlu0 %v45, 92
  %v361 = vpop.permute.xlu0 %360
  %362 = vrot.lane.b32.xlu0 %v46, 92
  %v363 = vpop.permute.xlu0 %362
  %vm364 = vcmask 752640
  %v365 = vsel %vm364, %v337, %v339
  %v366 = vsel %vm364, %v339, %v341
  %v367 = vsel %vm364, %v341, %v343
  %v368 = vsel %vm364, %v343, %v345
  %v369 = vsel %vm364, %v345, %v347
  %v370 = vsel %vm364, %v347, %v349
  %v371 = vsel %vm364, %v351, %v353
  %v372 = vsel %vm364, %v353, %v355
  %v373 = vsel %vm364, %v355, %v357
  %v374 = vsel %vm364, %v357, %v359
  %v375 = vsel %vm364, %v359, %v361
  %v376 = vsel %vm364, %v361, %v363
  %391 = vrot.lane.b32.xlu0 %v33, 91
  %v392 = vpop.permute.xlu0 %391
  %393 = vrot.lane.b32.xlu0 %v34, 91
  %v394 = vpop.permute.xlu0 %393
  %395 = vrot.lane.b32.xlu0 %v35, 91
  %v396 = vpop.permute.xlu0 %395
  %397 = vrot.lane.b32.xlu0 %v36, 91
  %v398 = vpop.permute.xlu0 %397
  %399 = vrot.lane.b32.xlu0 %v37, 91
  %v400 = vpop.permute.xlu0 %399
  %401 = vrot.lane.b32.xlu0 %v38, 91
  %v402 = vpop.permute.xlu0 %401
  %403 = vrot.lane.b32.xlu0 %v39, 91
  %v404 = vpop.permute.xlu0 %403
  %405 = vrot.lane.b32.xlu0 %v40, 91
  %v406 = vpop.permute.xlu0 %405
  %407 = vrot.lane.b32.xlu0 %v41, 91
  %v408 = vpop.permute.xlu0 %407
  %409 = vrot.lane.b32.xlu0 %v42, 91
  %v410 = vpop.permute.xlu0 %409
  %411 = vrot.lane.b32.xlu0 %v43, 91
  %v412 = vpop.permute.xlu0 %411
  %413 = vrot.lane.b32.xlu0 %v44, 91
  %v414 = vpop.permute.xlu0 %413
  %415 = vrot.lane.b32.xlu0 %v45, 91
  %v416 = vpop.permute.xlu0 %415
  %417 = vrot.lane.b32.xlu0 %v46, 91
  %v418 = vpop.permute.xlu0 %417
  %vm419 = vcmask 744448
  %v420 = vsel %vm419, %v392, %v394
  %v421 = vsel %vm419, %v394, %v396
  %v422 = vsel %vm419, %v396, %v398
  %v423 = vsel %vm419, %v398, %v400
  %v424 = vsel %vm419, %v400, %v402
  %v425 = vsel %vm419, %v402, %v404
  %v426 = vsel %vm419, %v406, %v408
  %v427 = vsel %vm419, %v408, %v410
  %v428 = vsel %vm419, %v410, %v412
  %v429 = vsel %vm419, %v412, %v414
  %v430 = vsel %vm419, %v414, %v416
  %v431 = vsel %vm419, %v416, %v418
  %446 = vrot.lane.b32.xlu0 %v33, 90
  %v447 = vpop.permute.xlu0 %446
  %448 = vrot.lane.b32.xlu0 %v34, 90
  %v449 = vpop.permute.xlu0 %448
  %450 = vrot.lane.b32.xlu0 %v35, 90
  %v451 = vpop.permute.xlu0 %450
  %452 = vrot.lane.b32.xlu0 %v36, 90
  %v453 = vpop.permute.xlu0 %452
  %454 = vrot.lane.b32.xlu0 %v37, 90
  %v455 = vpop.permute.xlu0 %454
  %456 = vrot.lane.b32.xlu0 %v38, 90
  %v457 = vpop.permute.xlu0 %456
  %458 = vrot.lane.b32.xlu0 %v39, 90
  %v459 = vpop.permute.xlu0 %458
  %460 = vrot.lane.b32.xlu0 %v40, 90
  %v461 = vpop.permute.xlu0 %460
  %462 = vrot.lane.b32.xlu0 %v41, 90
  %v463 = vpop.permute.xlu0 %462
  %464 = vrot.lane.b32.xlu0 %v42, 90
  %v465 = vpop.permute.xlu0 %464
  %466 = vrot.lane.b32.xlu0 %v43, 90
  %v467 = vpop.permute.xlu0 %466
  %468 = vrot.lane.b32.xlu0 %v44, 90
  %v469 = vpop.permute.xlu0 %468
  %470 = vrot.lane.b32.xlu0 %v45, 90
  %v471 = vpop.permute.xlu0 %470
  %472 = vrot.lane.b32.xlu0 %v46, 90
  %v473 = vpop.permute.xlu0 %472
  %vm474 = vcmask 736256
  %v475 = vsel %vm474, %v447, %v449
  %v476 = vsel %vm474, %v449, %v451
  %v477 = vsel %vm474, %v451, %v453
  %v478 = vsel %vm474, %v453, %v455
  %v479 = vsel %vm474, %v455, %v457
  %v480 = vsel %vm474, %v457, %v459
  %v481 = vsel %vm474, %v461, %v463
  %v482 = vsel %vm474, %v463, %v465
  %v483 = vsel %vm474, %v465, %v467
  %v484 = vsel %vm474, %v467, %v469
  %v485 = vsel %vm474, %v469, %v471
  %v486 = vsel %vm474, %v471, %v473
  %v501 = vld [vmem:[%s1] sm:$0xff]
  %v502 = vpack.c.bf16 %v40, %v33
  %v503 = vpack.c.bf16 %v41, %v34
  %v504 = vpack.c.bf16 %v42, %v35
  %v505 = vpack.c.bf16 %v43, %v36
  %v506 = vpack.c.bf16 %v44, %v37
  %v507 = vpack.c.bf16 %v45, %v38
  %v508 = vpack.c.bf16 %v46, %v39
  %v509 = vpack.c.bf16 %v96, %v90
  %v510 = vpack.c.bf16 %v97, %v91
  %v511 = vpack.c.bf16 %v98, %v92
  %v512 = vpack.c.bf16 %v99, %v93
  %v513 = vpack.c.bf16 %v100, %v94
  %v514 = vpack.c.bf16 %v101, %v95
  %v515 = vpack.c.bf16 %v88, %v74
  %v516 = vpack.c.bf16 %v151, %v145
  %v517 = vpack.c.bf16 %v152, %v146
  %v518 = vpack.c.bf16 %v153, %v147
  %v519 = vpack.c.bf16 %v154, %v148
  %v520 = vpack.c.bf16 %v155, %v149
  %v521 = vpack.c.bf16 %v156, %v150
  %v522 = vpack.c.bf16 %v143, %v129
  %v523 = vpack.c.bf16 %v206, %v200
  %v524 = vpack.c.bf16 %v207, %v201
  %v525 = vpack.c.bf16 %v208, %v202
  %v526 = vpack.c.bf16 %v209, %v203
  %v527 = vpack.c.bf16 %v210, %v204
  %v528 = vpack.c.bf16 %v211, %v205
  %v529 = vpack.c.bf16 %v198, %v184
  %v530 = vpack.c.bf16 %v261, %v255
  %v531 = vpack.c.bf16 %v262, %v256
  %v532 = vpack.c.bf16 %v263, %v257
  %v533 = vpack.c.bf16 %v264, %v258
  %v534 = vpack.c.bf16 %v265, %v259
  %v535 = vpack.c.bf16 %v266, %v260
  %v536 = vpack.c.bf16 %v253, %v239
  %v537 = vpack.c.bf16 %v316, %v310
  %v538 = vpack.c.bf16 %v317, %v311
  %v539 = vpack.c.bf16 %v318, %v312
  %v540 = vpack.c.bf16 %v319, %v313
  %v541 = vpack.c.bf16 %v320, %v314
  %v542 = vpack.c.bf16 %v321, %v315
  %v543 = vpack.c.bf16 %v308, %v294
  %v544 = vpack.c.bf16 %v371, %v365
  %v545 = vpack.c.bf16 %v372, %v366
  %v546 = vpack.c.bf16 %v373, %v367
  %v547 = vpack.c.bf16 %v374, %v368
  %v548 = vpack.c.bf16 %v375, %v369
  %v549 = vpack.c.bf16 %v376, %v370
  %v550 = vpack.c.bf16 %v363, %v349
  %v551 = vpack.c.bf16 %v426, %v420
  %v552 = vpack.c.bf16 %v427, %v421
  %v553 = vpack.c.bf16 %v428, %v422
  %v554 = vpack.c.bf16 %v429, %v423
  %v555 = vpack.c.bf16 %v430, %v424
  %v556 = vpack.c.bf16 %v431, %v425
  %v557 = vpack.c.bf16 %v418, %v404
  %v558 = vpack.c.bf16 %v481, %v475
  %v559 = vpack.c.bf16 %v482, %v476
  %v560 = vpack.c.bf16 %v483, %v477
  %v561 = vpack.c.bf16 %v484, %v478
  %v562 = vpack.c.bf16 %v485, %v479
  %v563 = vpack.c.bf16 %v486, %v480
  %v564 = vpack.c.bf16 %v473, %v459
  %v565 = vld [vmem:[%s2] sm:$0xff]
  %567 = vset.pattern.permute.xlu0 0
  %568 = vperm.xlu0 %567, %v565
  %v569 = vpop.permute.xlu0 %568
  %v572 = vunpack.c.l.b16 %v501
  %v573 = vunpack.c.h.b16 %v501
  %v574 = vpack.c.b16 %v572, %v572
  %v575 = vpack.c.b16 %v573, %v573
  %vm577 = vcmask 130048
  %v579 = vsel %vm577, %v575, 0
  %581 = vmatprep.subr.bf16.mxu0 %v503
  %582 = vmatpush1.bf16.msra.mxu0 %v502
  %583 = vmatprep.subr.bf16.mxu0 %v510
  %584 = vmatpush1.bf16.msra.mxu0 %v509
  %585 = vmatprep.subr.bf16.mxu0 %v517
  %586 = vmatpush1.bf16.msra.mxu0 %v516
  %587 = vmatprep.subr.bf16.mxu0 %v524
  %588 = vmatpush1.bf16.msra.mxu0 %v523
  %589 = vmatprep.subr.bf16.mxu0 %v531
  %590 = vmatpush1.bf16.msra.mxu0 %v530
  %591 = vmatprep.subr.bf16.mxu0 %v538
  %592 = vmatpush1.bf16.msra.mxu0 %v537
  %593 = vmatprep.subr.bf16.mxu0 %v545
  %594 = vmatpush1.bf16.msra.mxu0 %v544
  %595 = vmatprep.subr.bf16.mxu0 %v552
  %596 = vmatpush1.bf16.msra.mxu0 %v551
  %597 = vmatprep.subr.bf16.mxu0 %v559
  %598 = vmatpush1.bf16.msra.mxu0 %v558
  %599 = vmatprep.subr.bf16.mxu0 0
  %600 = vmatpush1.bf16.msra.mxu0 0
  %601 = vmatprep.subr.bf16.mxu0 0
  %602 = vmatpush1.bf16.msra.mxu0 0
  %603 = vmatprep.subr.bf16.mxu0 0
  %604 = vmatpush1.bf16.msra.mxu0 0
  %605 = vmatprep.subr.bf16.mxu0 0
  %606 = vmatpush1.bf16.msra.mxu0 0
  %607 = vmatprep.subr.bf16.mxu0 0
  %608 = vmatpush1.bf16.msra.mxu0 0
  %609 = vmatprep.subr.bf16.mxu0 0
  %610 = vmatpush1.bf16.msra.mxu0 0
  %611 = vmatprep.subr.bf16.mxu0 0
  %612 = vmatpush1.bf16.msra.mxu0 0
  %613 = vmatprep.mubr.bf16.mxu0 %v579
  %614 = vmatmul.mubr.bf16.gmra.mrb[0].mxu0 %v574
  %v615 = vpop.f32.mrb[0].mxu0
  %v616 = vadd.f32 %v569, %v615
  %v617 = vpop.f32.mrb[0].mxu0
  %v618 = vadd.f32 %v569, %v617
  %v619 = vpop.f32.mrb[0].mxu0
  %v620 = vpop.f32.mrb[0].mxu0
  %621 = vdwg.mxu0
  %622 = vmatprep.subr.bf16.mxu0 %v505
  %623 = vmatpush1.bf16.msra.mxu0 %v504
  %624 = vmatprep.subr.bf16.mxu0 %v512
  %625 = vmatpush1.bf16.msra.mxu0 %v511
  %626 = vmatprep.subr.bf16.mxu0 %v519
  %627 = vmatpush1.bf16.msra.mxu0 %v518
  %628 = vmatprep.subr.bf16.mxu0 %v526
  %629 = vmatpush1.bf16.msra.mxu0 %v525
  %630 = vmatprep.subr.bf16.mxu0 %v533
  %631 = vmatpush1.bf16.msra.mxu0 %v532
  %632 = vmatprep.subr.bf16.mxu0 %v540
  %633 = vmatpush1.bf16.msra.mxu0 %v539
  %634 = vmatprep.subr.bf16.mxu0 %v547
  %635 = vmatpush1.bf16.msra.mxu0 %v546
  %636 = vmatprep.subr.bf16.mxu0 %v554
  %637 = vmatpush1.bf16.msra.mxu0 %v553
  %638 = vmatprep.subr.bf16.mxu0 %v561
  %639 = vmatpush1.bf16.msra.mxu0 %v560
  %640 = vmatprep.subr.bf16.mxu0 0
  %641 = vmatpush1.bf16.msra.mxu0 0
  %642 = vmatprep.subr.bf16.mxu0 0
  %643 = vmatpush1.bf16.msra.mxu0 0
  %644 = vmatprep.subr.bf16.mxu0 0
  %645 = vmatpush1.bf16.msra.mxu0 0
  %646 = vmatprep.subr.bf16.mxu0 0
  %647 = vmatpush1.bf16.msra.mxu0 0
  %648 = vmatprep.subr.bf16.mxu0 0
  %649 = vmatpush1.bf16.msra.mxu0 0
  %650 = vmatprep.subr.bf16.mxu0 0
  %651 = vmatpush1.bf16.msra.mxu0 0
  %652 = vmatprep.subr.bf16.mxu0 0
  %653 = vmatpush1.bf16.msra.mxu0 0
  %654 = vmatprep.mubr.bf16.mxu0 %v579
  %655 = vmatmul.mubr.bf16.gmra.mrb[0].mxu0 %v574
  %v656 = vpop.f32.mrb[0].mxu0
  %v657 = vadd.f32 %v569, %v656
  %v658 = vpop.f32.mrb[0].mxu0
  %v659 = vadd.f32 %v569, %v658
  %v660 = vpop.f32.mrb[0].mxu0
  %v661 = vpop.f32.mrb[0].mxu0
  %662 = vdwg.mxu0
  %663 = vmatprep.subr.bf16.mxu0 %v507
  %664 = vmatpush1.bf16.msra.mxu0 %v506
  %665 = vmatprep.subr.bf16.mxu0 %v514
  %666 = vmatpush1.bf16.msra.mxu0 %v513
  %667 = vmatprep.subr.bf16.mxu0 %v521
  %668 = vmatpush1.bf16.msra.mxu0 %v520
  %669 = vmatprep.subr.bf16.mxu0 %v528
  %670 = vmatpush1.bf16.msra.mxu0 %v527
  %671 = vmatprep.subr.bf16.mxu0 %v535
  %672 = vmatpush1.bf16.msra.mxu0 %v534
  %673 = vmatprep.subr.bf16.mxu0 %v542
  %674 = vmatpush1.bf16.msra.mxu0 %v541
  %675 = vmatprep.subr.bf16.mxu0 %v549
  %676 = vmatpush1.bf16.msra.mxu0 %v548
  %677 = vmatprep.subr.bf16.mxu0 %v556
  %678 = vmatpush1.bf16.msra.mxu0 %v555
  %679 = vmatprep.subr.bf16.mxu0 %v563
  %680 = vmatpush1.bf16.msra.mxu0 %v562
  %681 = vmatprep.subr.bf16.mxu0 0
  %682 = vmatpush1.bf16.msra.mxu0 0
  %683 = vmatprep.subr.bf16.mxu0 0
  %684 = vmatpush1.bf16.msra.mxu0 0
  %685 = vmatprep.subr.bf16.mxu0 0
  %686 = vmatpush1.bf16.msra.mxu0 0
  %687 = vmatprep.subr.bf16.mxu0 0
  %688 = vmatpush1.bf16.msra.mxu0 0
  %689 = vmatprep.subr.bf16.mxu0 0
  %690 = vmatpush1.bf16.msra.mxu0 0
  %691 = vmatprep.subr.bf16.mxu0 0
  %692 = vmatpush1.bf16.msra.mxu0 0
  %693 = vmatprep.subr.bf16.mxu0 0
  %694 = vmatpush1.bf16.msra.mxu0 0
  %695 = vmatprep.mubr.bf16.mxu0 %v579
  %696 = vmatmul.mubr.bf16.gmra.mrb[0].mxu0 %v574
  %v697 = vpop.f32.mrb[0].mxu0
  %v698 = vadd.f32 %v569, %v697
  %v699 = vpop.f32.mrb[0].mxu0
  %v700 = vadd.f32 %v569, %v699
  %v701 = vpop.f32.mrb[0].mxu0
  %v702 = vpop.f32.mrb[0].mxu0
  %703 = vdwg.mxu0
  %704 = vmatprep.subr.bf16.mxu0 0
  %705 = vmatpush1.bf16.msra.mxu0 %v508
  %706 = vmatprep.subr.bf16.mxu0 0
  %707 = vmatpush1.bf16.msra.mxu0 %v515
  %708 = vmatprep.subr.bf16.mxu0 0
  %709 = vmatpush1.bf16.msra.mxu0 %v522
  %710 = vmatprep.subr.bf16.mxu0 0
  %711 = vmatpush1.bf16.msra.mxu0 %v529
  %712 = vmatprep.subr.bf16.mxu0 0
  %713 = vmatpush1.bf16.msra.mxu0 %v536
  %714 = vmatprep.subr.bf16.mxu0 0
  %715 = vmatpush1.bf16.msra.mxu0 %v543
  %716 = vmatprep.subr.bf16.mxu0 0
  %717 = vmatpush1.bf16.msra.mxu0 %v550
  %718 = vmatprep.subr.bf16.mxu0 0
  %719 = vmatpush1.bf16.msra.mxu0 %v557
  %720 = vmatprep.subr.bf16.mxu0 0
  %721 = vmatpush1.bf16.msra.mxu0 %v564
  %722 = vmatprep.subr.bf16.mxu0 0
  %723 = vmatpush1.bf16.msra.mxu0 0
  %724 = vmatprep.subr.bf16.mxu0 0
  %725 = vmatpush1.bf16.msra.mxu0 0
  %726 = vmatprep.subr.bf16.mxu0 0
  %727 = vmatpush1.bf16.msra.mxu0 0
  %728 = vmatprep.subr.bf16.mxu0 0
  %729 = vmatpush1.bf16.msra.mxu0 0
  %730 = vmatprep.subr.bf16.mxu0 0
  %731 = vmatpush1.bf16.msra.mxu0 0
  %732 = vmatprep.subr.bf16.mxu0 0
  %733 = vmatpush1.bf16.msra.mxu0 0
  %734 = vmatprep.subr.bf16.mxu0 0
  %735 = vmatpush1.bf16.msra.mxu0 0
  %736 = vmatprep.mubr.bf16.mxu0 %v579
  %737 = vmatmul.mubr.bf16.gmra.mrb[0].mxu0 %v574
  %v738 = vpop.f32.mrb[0].mxu0
  %v739 = vadd.f32 %v569, %v738
  %v740 = vpop.f32.mrb[0].mxu0
  %v741 = vpop.f32.mrb[0].mxu0
  %v742 = vpop.f32.mrb[0].mxu0
  %743 = vdwg.mxu0
  %v744 = vmax.f32 %v616, 0.0
  %v745 = vmax.f32 %v618, 0.0
  %v746 = vmax.f32 %v657, 0.0
  %v747 = vmax.f32 %v659, 0.0
  %v748 = vmax.f32 %v698, 0.0
  %v749 = vmax.f32 %v700, 0.0
  %v750 = vmax.f32 %v739, 0.0
  %v751 = vld [vmem:[%s8] sm:$0x7f]
  %v752 = vunpack.c.l.bf16 %v751
  %v753 = vunpack.c.h.bf16 %v751
  %v756 = vlaneseq
  %v757 = vshrl.u32 %v756, 7
  %v758 = vsub.s32 0, %v757
  %v759 = vrot.slane %v752, %v758
  %v760 = vlaneseq
  %v761 = vshrl.u32 %v760, 7
  %v762 = vsub.s32 2, %v761
  %v763 = vrot.slane %v752, %v762
  %v764 = vlaneseq
  %v765 = vshrl.u32 %v764, 7
  %v766 = vsub.s32 4, %v765
  %v767 = vrot.slane %v752, %v766
  %v768 = vlaneseq
  %v769 = vshrl.u32 %v768, 7
  %v770 = vsub.s32 6, %v769
  %v771 = vrot.slane %v752, %v770
  %v772 = vlaneseq
  %v773 = vshrl.u32 %v772, 7
  %v774 = vsub.s32 0, %v773
  %v775 = vrot.slane %v753, %v774
  %v776 = vlaneseq
  %v777 = vshrl.u32 %v776, 7
  %v778 = vsub.s32 2, %v777
  %v779 = vrot.slane %v753, %v778
  %v780 = vlaneseq
  %v781 = vshrl.u32 %v780, 7
  %v782 = vsub.s32 4, %v781
  %v783 = vrot.slane %v753, %v782
  %v791 = vlaneseq
  %v792 = vshrl.u32 %v791, 7
  %v793 = vsub.s32 0, %v792
  %v794 = vrot.slane %v759, %v793
  %v795 = vlaneseq
  %v796 = vshrl.u32 %v795, 7
  %v797 = vsub.s32 0, %v796
  %v798 = vrot.slane %v763, %v797
  %v799 = vlaneseq
  %v800 = vshrl.u32 %v799, 7
  %v801 = vsub.s32 0, %v800
  %v802 = vrot.slane %v767, %v801
  %v803 = vlaneseq
  %v804 = vshrl.u32 %v803, 7
  %v805 = vsub.s32 0, %v804
  %v806 = vrot.slane %v771, %v805
  %v807 = vlaneseq
  %v808 = vshrl.u32 %v807, 7
  %v809 = vsub.s32 0, %v808
  %v810 = vrot.slane %v775, %v809
  %v811 = vlaneseq
  %v812 = vshrl.u32 %v811, 7
  %v813 = vsub.s32 0, %v812
  %v814 = vrot.slane %v779, %v813
  %v815 = vlaneseq
  %v816 = vshrl.u32 %v815, 7
  %v817 = vsub.s32 0, %v816
  %v818 = vrot.slane %v783, %v817
  %v819 = vmul.f32 %v744, %v794
  %v820 = vmul.f32 %v745, %v798
  %v821 = vmul.f32 %v746, %v802
  %v822 = vmul.f32 %v747, %v806
  %v823 = vmul.f32 %v748, %v810
  %v824 = vmul.f32 %v749, %v814
  %v825 = vmul.f32 %v750, %v818
  %826 = vst [vmem:[#allocation2] sm:$0xff] %v819
  %827 = vst [vmem:[#allocation2 + $0x8] sm:$0xff] %v820
  %828 = vst [vmem:[#allocation2 + $0x10] sm:$0xff] %v821
  %829 = vst [vmem:[#allocation2 + $0x18] sm:$0xff] %v822
  %830 = vst [vmem:[#allocation2 + $0x20] sm:$0xff] %v823
  %831 = vst [vmem:[#allocation2 + $0x28] sm:$0xff] %v824
  %vm832 = vcmask 310272
  %833 = vst.msk [vmem:[#allocation2 + $0x30] sm:$0xff] %vm832, %v825
  %v834 = vld [vmem:[#allocation2] sm:$0xff]
  %v835 = vld [vmem:[#allocation2 + $0x8] sm:$0xff]
  %v836 = vld [vmem:[#allocation2 + $0x10] sm:$0xff]
  %v837 = vld [vmem:[#allocation2 + $0x18] sm:$0xff]
  %v838 = vld [vmem:[#allocation2 + $0x20] sm:$0xff]
  %v839 = vld [vmem:[#allocation2 + $0x28] sm:$0xff]
  %v840 = vld [vmem:[#allocation2 + $0x30] sm:$0xff]
  %848 = vrot.lane.b32.xlu0 %v834, 127
  %v849 = vpop.permute.xlu0 %848
  %850 = vrot.lane.b32.xlu0 %v835, 127
  %v851 = vpop.permute.xlu0 %850
  %852 = vrot.lane.b32.xlu0 %v836, 127
  %v853 = vpop.permute.xlu0 %852
  %854 = vrot.lane.b32.xlu0 %v837, 127
  %v855 = vpop.permute.xlu0 %854
  %856 = vrot.lane.b32.xlu0 %v838, 127
  %v857 = vpop.permute.xlu0 %856
  %858 = vrot.lane.b32.xlu0 %v839, 127
  %v859 = vpop.permute.xlu0 %858
  %860 = vrot.lane.b32.xlu0 %v840, 127
  %v861 = vpop.permute.xlu0 %860
  %v862 = vsel %vm89, %v849, %v851
  %v863 = vsel %vm89, %v851, %v853
  %v864 = vsel %vm89, %v853, %v855
  %v865 = vsel %vm89, %v855, %v857
  %v866 = vsel %vm89, %v857, %v859
  %v867 = vsel %vm89, %v859, %v861
  %874 = vrot.lane.b32.xlu0 %v834, 126
  %v875 = vpop.permute.xlu0 %874
  %876 = vrot.lane.b32.xlu0 %v835, 126
  %v877 = vpop.permute.xlu0 %876
  %878 = vrot.lane.b32.xlu0 %v836, 126
  %v879 = vpop.permute.xlu0 %878
  %880 = vrot.lane.b32.xlu0 %v837, 126
  %v881 = vpop.permute.xlu0 %880
  %882 = vrot.lane.b32.xlu0 %v838, 126
  %v883 = vpop.permute.xlu0 %882
  %884 = vrot.lane.b32.xlu0 %v839, 126
  %v885 = vpop.permute.xlu0 %884
  %886 = vrot.lane.b32.xlu0 %v840, 126
  %v887 = vpop.permute.xlu0 %886
  %v888 = vsel %vm144, %v875, %v877
  %v889 = vsel %vm144, %v877, %v879
  %v890 = vsel %vm144, %v879, %v881
  %v891 = vsel %vm144, %v881, %v883
  %v892 = vsel %vm144, %v883, %v885
  %v893 = vsel %vm144, %v885, %v887
  %900 = vrot.lane.b32.xlu0 %v834, 110
  %v901 = vpop.permute.xlu0 %900
  %902 = vrot.lane.b32.xlu0 %v835, 110
  %v903 = vpop.permute.xlu0 %902
  %904 = vrot.lane.b32.xlu0 %v836, 110
  %v905 = vpop.permute.xlu0 %904
  %906 = vrot.lane.b32.xlu0 %v837, 110
  %v907 = vpop.permute.xlu0 %906
  %908 = vrot.lane.b32.xlu0 %v838, 110
  %v909 = vpop.permute.xlu0 %908
  %910 = vrot.lane.b32.xlu0 %v839, 110
  %v911 = vpop.permute.xlu0 %910
  %912 = vrot.lane.b32.xlu0 %v840, 110
  %v913 = vpop.permute.xlu0 %912
  %v914 = vsel %vm199, %v901, %v903
  %v915 = vsel %vm199, %v903, %v905
  %v916 = vsel %vm199, %v905, %v907
  %v917 = vsel %vm199, %v907, %v909
  %v918 = vsel %vm199, %v909, %v911
  %v919 = vsel %vm199, %v911, %v913
  %926 = vrot.lane.b32.xlu0 %v834, 109
  %v927 = vpop.permute.xlu0 %926
  %928 = vrot.lane.b32.xlu0 %v835, 109
  %v929 = vpop.permute.xlu0 %928
  %930 = vrot.lane.b32.xlu0 %v836, 109
  %v931 = vpop.permute.xlu0 %930
  %932 = vrot.lane.b32.xlu0 %v837, 109
  %v933 = vpop.permute.xlu0 %932
  %934 = vrot.lane.b32.xlu0 %v838, 109
  %v935 = vpop.permute.xlu0 %934
  %936 = vrot.lane.b32.xlu0 %v839, 109
  %v937 = vpop.permute.xlu0 %936
  %938 = vrot.lane.b32.xlu0 %v840, 109
  %v939 = vpop.permute.xlu0 %938
  %v940 = vsel %vm254, %v927, %v929
  %v941 = vsel %vm254, %v929, %v931
  %v942 = vsel %vm254, %v931, %v933
  %v943 = vsel %vm254, %v933, %v935
  %v944 = vsel %vm254, %v935, %v937
  %v945 = vsel %vm254, %v937, %v939
  %952 = vrot.lane.b32.xlu0 %v834, 108
  %v953 = vpop.permute.xlu0 %952
  %954 = vrot.lane.b32.xlu0 %v835, 108
  %v955 = vpop.permute.xlu0 %954
  %956 = vrot.lane.b32.xlu0 %v836, 108
  %v957 = vpop.permute.xlu0 %956
  %958 = vrot.lane.b32.xlu0 %v837, 108
  %v959 = vpop.permute.xlu0 %958
  %960 = vrot.lane.b32.xlu0 %v838, 108
  %v961 = vpop.permute.xlu0 %960
  %962 = vrot.lane.b32.xlu0 %v839, 108
  %v963 = vpop.permute.xlu0 %962
  %964 = vrot.lane.b32.xlu0 %v840, 108
  %v965 = vpop.permute.xlu0 %964
  %v966 = vsel %vm309, %v953, %v955
  %v967 = vsel %vm309, %v955, %v957
  %v968 = vsel %vm309, %v957, %v959
  %v969 = vsel %vm309, %v959, %v961
  %v970 = vsel %vm309, %v961, %v963
  %v971 = vsel %vm309, %v963, %v965
  %978 = vrot.lane.b32.xlu0 %v834, 92
  %v979 = vpop.permute.xlu0 %978
  %980 = vrot.lane.b32.xlu0 %v835, 92
  %v981 = vpop.permute.xlu0 %980
  %982 = vrot.lane.b32.xlu0 %v836, 92
  %v983 = vpop.permute.xlu0 %982
  %984 = vrot.lane.b32.xlu0 %v837, 92
  %v985 = vpop.permute.xlu0 %984
  %986 = vrot.lane.b32.xlu0 %v838, 92
  %v987 = vpop.permute.xlu0 %986
  %988 = vrot.lane.b32.xlu0 %v839, 92
  %v989 = vpop.permute.xlu0 %988
  %990 = vrot.lane.b32.xlu0 %v840, 92
  %v991 = vpop.permute.xlu0 %990
  %v992 = vsel %vm364, %v979, %v981
  %v993 = vsel %vm364, %v981, %v983
  %v994 = vsel %vm364, %v983, %v985
  %v995 = vsel %vm364, %v985, %v987
  %v996 = vsel %vm364, %v987, %v989
  %v997 = vsel %vm364, %v989, %v991
  %1004 = vrot.lane.b32.xlu0 %v834, 91
  %v1005 = vpop.permute.xlu0 %1004
  %1006 = vrot.lane.b32.xlu0 %v835, 91
  %v1007 = vpop.permute.xlu0 %1006
  %1008 = vrot.lane.b32.xlu0 %v836, 91
  %v1009 = vpop.permute.xlu0 %1008
  %1010 = vrot.lane.b32.xlu0 %v837, 91
  %v1011 = vpop.permute.xlu0 %1010
  %1012 = vrot.lane.b32.xlu0 %v838, 91
  %v1013 = vpop.permute.xlu0 %1012
  %1014 = vrot.lane.b32.xlu0 %v839, 91
  %v1015 = vpop.permute.xlu0 %1014
  %1016 = vrot.lane.b32.xlu0 %v840, 91
  %v1017 = vpop.permute.xlu0 %1016
  %v1018 = vsel %vm419, %v1005, %v1007
  %v1019 = vsel %vm419, %v1007, %v1009
  %v1020 = vsel %vm419, %v1009, %v1011
  %v1021 = vsel %vm419, %v1011, %v1013
  %v1022 = vsel %vm419, %v1013, %v1015
  %v1023 = vsel %vm419, %v1015, %v1017
  %1030 = vrot.lane.b32.xlu0 %v834, 90
  %v1031 = vpop.permute.xlu0 %1030
  %1032 = vrot.lane.b32.xlu0 %v835, 90
  %v1033 = vpop.permute.xlu0 %1032
  %1034 = vrot.lane.b32.xlu0 %v836, 90
  %v1035 = vpop.permute.xlu0 %1034
  %1036 = vrot.lane.b32.xlu0 %v837, 90
  %v1037 = vpop.permute.xlu0 %1036
  %1038 = vrot.lane.b32.xlu0 %v838, 90
  %v1039 = vpop.permute.xlu0 %1038
  %1040 = vrot.lane.b32.xlu0 %v839, 90
  %v1041 = vpop.permute.xlu0 %1040
  %1042 = vrot.lane.b32.xlu0 %v840, 90
  %v1043 = vpop.permute.xlu0 %1042
  %v1044 = vsel %vm474, %v1031, %v1033
  %v1045 = vsel %vm474, %v1033, %v1035
  %v1046 = vsel %vm474, %v1035, %v1037
  %v1047 = vsel %vm474, %v1037, %v1039
  %v1048 = vsel %vm474, %v1039, %v1041
  %v1049 = vsel %vm474, %v1041, %v1043
  %v1056 = vld [vmem:[%s3] sm:$0xf]
  %v1057 = vpack.c.bf16 %v862, %v834
  %v1058 = vpack.c.bf16 %v863, %v835
  %v1059 = vpack.c.bf16 %v864, %v836
  %v1060 = vpack.c.bf16 %v865, %v837
  %v1061 = vpack.c.bf16 %v866, %v838
  %v1062 = vpack.c.bf16 %v867, %v839
  %v1063 = vpack.c.bf16 %v914, %v888
  %v1064 = vpack.c.bf16 %v915, %v889
  %v1065 = vpack.c.bf16 %v916, %v890
  %v1066 = vpack.c.bf16 %v917, %v891
  %v1067 = vpack.c.bf16 %v918, %v892
  %v1068 = vpack.c.bf16 %v919, %v893
  %v1069 = vpack.c.bf16 %v966, %v940
  %v1070 = vpack.c.bf16 %v967, %v941
  %v1071 = vpack.c.bf16 %v968, %v942
  %v1072 = vpack.c.bf16 %v969, %v943
  %v1073 = vpack.c.bf16 %v970, %v944
  %v1074 = vpack.c.bf16 %v971, %v945
  %v1075 = vpack.c.bf16 %v1018, %v992
  %v1076 = vpack.c.bf16 %v1019, %v993
  %v1077 = vpack.c.bf16 %v1020, %v994
  %v1078 = vpack.c.bf16 %v1021, %v995
  %v1079 = vpack.c.bf16 %v1022, %v996
  %v1080 = vpack.c.bf16 %v1023, %v997
  %v1081 = vpack.c.bf16 %v1044, %v1044
  %v1082 = vpack.c.bf16 %v1045, %v1045
  %v1083 = vpack.c.bf16 %v1046, %v1046
  %v1084 = vpack.c.bf16 %v1047, %v1047
  %v1085 = vpack.c.bf16 %v1048, %v1048
  %v1086 = vpack.c.bf16 %v1049, %v1049
  %v1087 = vld [vmem:[%s4] sm:$0xff]
  %1089 = vset.pattern.permute.xlu0 0
  %1090 = vperm.xlu0 %1089, %v1087
  %v1091 = vpop.permute.xlu0 %1090
  %vm1093 = vcmask 588800
  %v1095 = vsel %vm1093, %v1056, 0
  %vm1097 = vcmask 1043456
  %v1099 = vsel %vm1097, %v1081, 0
  %v1102 = vsel %vm1097, %v1082, 0
  %v1105 = vsel %vm1097, %v1083, 0
  %v1108 = vsel %vm1097, %v1084, 0
  %v1111 = vsel %vm1097, %v1085, 0
  %v1114 = vsel %vm1097, %v1086, 0
  %1116 = vmatprep.subr.bf16.mxu0 %v1058
  %1117 = vmatpush1.bf16.msra.mxu0 %v1057
  %1118 = vmatprep.subr.bf16.mxu0 %v1064
  %1119 = vmatpush1.bf16.msra.mxu0 %v1063
  %1120 = vmatprep.subr.bf16.mxu0 %v1070
  %1121 = vmatpush1.bf16.msra.mxu0 %v1069
  %1122 = vmatprep.subr.bf16.mxu0 %v1076
  %1123 = vmatpush1.bf16.msra.mxu0 %v1075
  %1124 = vmatprep.subr.bf16.mxu0 %v1102
  %1125 = vmatpush1.bf16.msra.mxu0 %v1099
  %1126 = vmatprep.subr.bf16.mxu0 0
  %1127 = vmatpush1.bf16.msra.mxu0 0
  %1128 = vmatprep.subr.bf16.mxu0 0
  %1129 = vmatpush1.bf16.msra.mxu0 0
  %1130 = vmatprep.subr.bf16.mxu0 0
  %1131 = vmatpush1.bf16.msra.mxu0 0
  %1132 = vmatprep.subr.bf16.mxu0 0
  %1133 = vmatpush1.bf16.msra.mxu0 0
  %1134 = vmatprep.subr.bf16.mxu0 0
  %1135 = vmatpush1.bf16.msra.mxu0 0
  %1136 = vmatprep.subr.bf16.mxu0 0
  %1137 = vmatpush1.bf16.msra.mxu0 0
  %1138 = vmatprep.subr.bf16.mxu0 0
  %1139 = vmatpush1.bf16.msra.mxu0 0
  %1140 = vmatprep.subr.bf16.mxu0 0
  %1141 = vmatpush1.bf16.msra.mxu0 0
  %1142 = vmatprep.subr.bf16.mxu0 0
  %1143 = vmatpush1.bf16.msra.mxu0 0
  %1144 = vmatprep.subr.bf16.mxu0 0
  %1145 = vmatpush1.bf16.msra.mxu0 0
  %1146 = vmatprep.subr.bf16.mxu0 0
  %1147 = vmatpush1.bf16.msra.mxu0 0
  %1148 = vmatprep.mubr.bf16.mxu0 0
  %1149 = vmatmul.mubr.bf16.gmra.mrb[0].mxu0 %v1095
  %v1150 = vpop.f32.mrb[0].mxu0
  %v1151 = vadd.f32 %v1091, %v1150
  %v1152 = vpop.f32.mrb[0].mxu0
  %v1153 = vadd.f32 %v1091, %v1152
  %v1154 = vpop.f32.mrb[0].mxu0
  %v1155 = vpop.f32.mrb[0].mxu0
  %1156 = vdwg.mxu0
  %1157 = vmatprep.subr.bf16.mxu0 %v1060
  %1158 = vmatpush1.bf16.msra.mxu0 %v1059
  %1159 = vmatprep.subr.bf16.mxu0 %v1066
  %1160 = vmatpush1.bf16.msra.mxu0 %v1065
  %1161 = vmatprep.subr.bf16.mxu0 %v1072
  %1162 = vmatpush1.bf16.msra.mxu0 %v1071
  %1163 = vmatprep.subr.bf16.mxu0 %v1078
  %1164 = vmatpush1.bf16.msra.mxu0 %v1077
  %1165 = vmatprep.subr.bf16.mxu0 %v1108
  %1166 = vmatpush1.bf16.msra.mxu0 %v1105
  %1167 = vmatprep.subr.bf16.mxu0 0
  %1168 = vmatpush1.bf16.msra.mxu0 0
  %1169 = vmatprep.subr.bf16.mxu0 0
  %1170 = vmatpush1.bf16.msra.mxu0 0
  %1171 = vmatprep.subr.bf16.mxu0 0
  %1172 = vmatpush1.bf16.msra.mxu0 0
  %1173 = vmatprep.subr.bf16.mxu0 0
  %1174 = vmatpush1.bf16.msra.mxu0 0
  %1175 = vmatprep.subr.bf16.mxu0 0
  %1176 = vmatpush1.bf16.msra.mxu0 0
  %1177 = vmatprep.subr.bf16.mxu0 0
  %1178 = vmatpush1.bf16.msra.mxu0 0
  %1179 = vmatprep.subr.bf16.mxu0 0
  %1180 = vmatpush1.bf16.msra.mxu0 0
  %1181 = vmatprep.subr.bf16.mxu0 0
  %1182 = vmatpush1.bf16.msra.mxu0 0
  %1183 = vmatprep.subr.bf16.mxu0 0
  %1184 = vmatpush1.bf16.msra.mxu0 0
  %1185 = vmatprep.subr.bf16.mxu0 0
  %1186 = vmatpush1.bf16.msra.mxu0 0
  %1187 = vmatprep.subr.bf16.mxu0 0
  %1188 = vmatpush1.bf16.msra.mxu0 0
  %1189 = vmatprep.mubr.bf16.mxu0 0
  %1190 = vmatmul.mubr.bf16.gmra.mrb[0].mxu0 %v1095
  %v1191 = vpop.f32.mrb[0].mxu0
  %v1192 = vadd.f32 %v1091, %v1191
  %v1193 = vpop.f32.mrb[0].mxu0
  %v1194 = vadd.f32 %v1091, %v1193
  %v1195 = vpop.f32.mrb[0].mxu0
  %v1196 = vpop.f32.mrb[0].mxu0
  %1197 = vdwg.mxu0
  %1198 = vmatprep.subr.bf16.mxu0 %v1062
  %1199 = vmatpush1.bf16.msra.mxu0 %v1061
  %1200 = vmatprep.subr.bf16.mxu0 %v1068
  %1201 = vmatpush1.bf16.msra.mxu0 %v1067
  %1202 = vmatprep.subr.bf16.mxu0 %v1074
  %1203 = vmatpush1.bf16.msra.mxu0 %v1073
  %1204 = vmatprep.subr.bf16.mxu0 %v1080
  %1205 = vmatpush1.bf16.msra.mxu0 %v1079
  %1206 = vmatprep.subr.bf16.mxu0 %v1114
  %1207 = vmatpush1.bf16.msra.mxu0 %v1111
  %1208 = vmatprep.subr.bf16.mxu0 0
  %1209 = vmatpush1.bf16.msra.mxu0 0
  %1210 = vmatprep.subr.bf16.mxu0 0
  %1211 = vmatpush1.bf16.msra.mxu0 0
  %1212 = vmatprep.subr.bf16.mxu0 0
  %1213 = vmatpush1.bf16.msra.mxu0 0
  %1214 = vmatprep.subr.bf16.mxu0 0
  %1215 = vmatpush1.bf16.msra.mxu0 0
  %1216 = vmatprep.subr.bf16.mxu0 0
  %1217 = vmatpush1.bf16.msra.mxu0 0
  %1218 = vmatprep.subr.bf16.mxu0 0
  %1219 = vmatpush1.bf16.msra.mxu0 0
  %1220 = vmatprep.subr.bf16.mxu0 0
  %1221 = vmatpush1.bf16.msra.mxu0 0
  %1222 = vmatprep.subr.bf16.mxu0 0
  %1223 = vmatpush1.bf16.msra.mxu0 0
  %1224 = vmatprep.subr.bf16.mxu0 0
  %1225 = vmatpush1.bf16.msra.mxu0 0
  %1226 = vmatprep.subr.bf16.mxu0 0
  %1227 = vmatpush1.bf16.msra.mxu0 0
  %1228 = vmatprep.subr.bf16.mxu0 0
  %1229 = vmatpush1.bf16.msra.mxu0 0
  %1230 = vmatprep.mubr.bf16.mxu0 0
  %1231 = vmatmul.mubr.bf16.gmra.mrb[0].mxu0 %v1095
  %v1232 = vpop.f32.mrb[0].mxu0
  %v1233 = vadd.f32 %v1091, %v1232
  %v1234 = vpop.f32.mrb[0].mxu0
  %v1235 = vadd.f32 %v1091, %v1234
  %v1236 = vpop.f32.mrb[0].mxu0
  %v1237 = vpop.f32.mrb[0].mxu0
  %1238 = vdwg.mxu0
  %v1239 = vld [vmem:[%s7] sm:$0xff]
  %v1240 = vld [vmem:[%s7 + $0x8] sm:$0xff]
  %v1241 = vld [vmem:[%s7 + $0x10] sm:$0xff]
  %v1242 = vld [vmem:[%s7 + $0x18] sm:$0xff]
  %v1243 = vld [vmem:[%s7 + $0x20] sm:$0xff]
  %v1244 = vld [vmem:[%s7 + $0x28] sm:$0xff]
  %v1245 = vld [vmem:[%s7 + $0x30] sm:$0xff]
  %v1246 = vld [vmem:[%s7 + $0x38] sm:$0xff]
  %v1247 = vld [vmem:[%s7 + $0x40] sm:$0xff]
  %v1248 = vld [vmem:[%s7 + $0x48] sm:$0xff]
  %v1249 = vld [vmem:[%s7 + $0x50] sm:$0xff]
  %v1250 = vld [vmem:[%s7 + $0x58] sm:$0xff]
  %v1251 = vld [vmem:[%s5] sm:$0xf]
  %v1252 = vpack.c.bf16 %v1245, %v1239
  %v1253 = vpack.c.bf16 %v1246, %v1240
  %v1254 = vpack.c.bf16 %v1247, %v1241
  %v1255 = vpack.c.bf16 %v1248, %v1242
  %v1256 = vpack.c.bf16 %v1249, %v1243
  %v1257 = vpack.c.bf16 %v1250, %v1244
  %v1259 = vsel %vm577, %v1251, 0
  %1261 = vmatprep.subr.bf16.mxu0 %v1253
  %1262 = vmatpush1.bf16.msra.mxu0 %v1252
  %1263 = vmatprep.subr.bf16.mxu0 0
  %1264 = vmatpush1.bf16.msra.mxu0 0
  %1265 = vmatprep.subr.bf16.mxu0 0
  %1266 = vmatpush1.bf16.msra.mxu0 0
  %1267 = vmatprep.subr.bf16.mxu0 0
  %1268 = vmatpush1.bf16.msra.mxu0 0
  %1269 = vmatprep.subr.bf16.mxu0 0
  %1270 = vmatpush1.bf16.msra.mxu0 0
  %1271 = vmatprep.subr.bf16.mxu0 0
  %1272 = vmatpush1.bf16.msra.mxu0 0
  %1273 = vmatprep.subr.bf16.mxu0 0
  %1274 = vmatpush1.bf16.msra.mxu0 0
  %1275 = vmatprep.subr.bf16.mxu0 0
  %1276 = vmatpush1.bf16.msra.mxu0 0
  %1277 = vmatprep.subr.bf16.mxu0 0
  %1278 = vmatpush1.bf16.msra.mxu0 0
  %1279 = vmatprep.subr.bf16.mxu0 0
  %1280 = vmatpush1.bf16.msra.mxu0 0
  %1281 = vmatprep.subr.bf16.mxu0 0
  %1282 = vmatpush1.bf16.msra.mxu0 0
  %1283 = vmatprep.subr.bf16.mxu0 0
  %1284 = vmatpush1.bf16.msra.mxu0 0
  %1285 = vmatprep.subr.bf16.mxu0 0
  %1286 = vmatpush1.bf16.msra.mxu0 0
  %1287 = vmatprep.subr.bf16.mxu0 0
  %1288 = vmatpush1.bf16.msra.mxu0 0
  %1289 = vmatprep.subr.bf16.mxu0 0
  %1290 = vmatpush1.bf16.msra.mxu0 0
  %1291 = vmatprep.subr.bf16.mxu0 0
  %1292 = vmatpush1.bf16.msra.mxu0 0
  %1293 = vmatprep.mubr.bf16.mxu0 0
  %1294 = vmatmul.mubr.bf16.gmra.mrb[0].mxu0 %v1259
  %v1295 = vpop.f32.mrb[0].mxu0
  %v1296 = vadd.f32 0.0, %v1295
  %v1297 = vpop.f32.mrb[0].mxu0
  %v1298 = vadd.f32 0.0, %v1297
  %v1299 = vpop.f32.mrb[0].mxu0
  %v1300 = vpop.f32.mrb[0].mxu0
  %1301 = vdwg.mxu0
  %1302 = vmatprep.subr.bf16.mxu0 %v1255
  %1303 = vmatpush1.bf16.msra.mxu0 %v1254
  %1304 = vmatprep.subr.bf16.mxu0 0
  %1305 = vmatpush1.bf16.msra.mxu0 0
  %1306 = vmatprep.subr.bf16.mxu0 0
  %1307 = vmatpush1.bf16.msra.mxu0 0
  %1308 = vmatprep.subr.bf16.mxu0 0
  %1309 = vmatpush1.bf16.msra.mxu0 0
  %1310 = vmatprep.subr.bf16.mxu0 0
  %1311 = vmatpush1.bf16.msra.mxu0 0
  %1312 = vmatprep.subr.bf16.mxu0 0
  %1313 = vmatpush1.bf16.msra.mxu0 0
  %1314 = vmatprep.subr.bf16.mxu0 0
  %1315 = vmatpush1.bf16.msra.mxu0 0
  %1316 = vmatprep.subr.bf16.mxu0 0
  %1317 = vmatpush1.bf16.msra.mxu0 0
  %1318 = vmatprep.subr.bf16.mxu0 0
  %1319 = vmatpush1.bf16.msra.mxu0 0
  %1320 = vmatprep.subr.bf16.mxu0 0
  %1321 = vmatpush1.bf16.msra.mxu0 0
  %1322 = vmatprep.subr.bf16.mxu0 0
  %1323 = vmatpush1.bf16.msra.mxu0 0
  %1324 = vmatprep.subr.bf16.mxu0 0
  %1325 = vmatpush1.bf16.msra.mxu0 0
  %1326 = vmatprep.subr.bf16.mxu0 0
  %1327 = vmatpush1.bf16.msra.mxu0 0
  %1328 = vmatprep.subr.bf16.mxu0 0
  %1329 = vmatpush1.bf16.msra.mxu0 0
  %1330 = vmatprep.subr.bf16.mxu0 0
  %1331 = vmatpush1.bf16.msra.mxu0 0
  %1332 = vmatprep.subr.bf16.mxu0 0
  %1333 = vmatpush1.bf16.msra.mxu0 0
  %1334 = vmatprep.mubr.bf16.mxu0 0
  %1335 = vmatmul.mubr.bf16.gmra.mrb[0].mxu0 %v1259
  %v1336 = vpop.f32.mrb[0].mxu0
  %v1337 = vadd.f32 0.0, %v1336
  %v1338 = vpop.f32.mrb[0].mxu0
  %v1339 = vadd.f32 0.0, %v1338
  %v1340 = vpop.f32.mrb[0].mxu0
  %v1341 = vpop.f32.mrb[0].mxu0
  %1342 = vdwg.mxu0
  %1343 = vmatprep.subr.bf16.mxu0 %v1257
  %1344 = vmatpush1.bf16.msra.mxu0 %v1256
  %1345 = vmatprep.subr.bf16.mxu0 0
  %1346 = vmatpush1.bf16.msra.mxu0 0
  %1347 = vmatprep.subr.bf16.mxu0 0
  %1348 = vmatpush1.bf16.msra.mxu0 0
  %1349 = vmatprep.subr.bf16.mxu0 0
  %1350 = vmatpush1.bf16.msra.mxu0 0
  %1351 = vmatprep.subr.bf16.mxu0 0
  %1352 = vmatpush1.bf16.msra.mxu0 0
  %1353 = vmatprep.subr.bf16.mxu0 0
  %1354 = vmatpush1.bf16.msra.mxu0 0
  %1355 = vmatprep.subr.bf16.mxu0 0
  %1356 = vmatpush1.bf16.msra.mxu0 0
  %1357 = vmatprep.subr.bf16.mxu0 0
  %1358 = vmatpush1.bf16.msra.mxu0 0
  %1359 = vmatprep.subr.bf16.mxu0 0
  %1360 = vmatpush1.bf16.msra.mxu0 0
  %1361 = vmatprep.subr.bf16.mxu0 0
  %1362 = vmatpush1.bf16.msra.mxu0 0
  %1363 = vmatprep.subr.bf16.mxu0 0
  %1364 = vmatpush1.bf16.msra.mxu0 0
  %1365 = vmatprep.subr.bf16.mxu0 0
  %1366 = vmatpush1.bf16.msra.mxu0 0
  %1367 = vmatprep.subr.bf16.mxu0 0
  %1368 = vmatpush1.bf16.msra.mxu0 0
  %1369 = vmatprep.subr.bf16.mxu0 0
  %1370 = vmatpush1.bf16.msra.mxu0 0
  %1371 = vmatprep.subr.bf16.mxu0 0
  %1372 = vmatpush1.bf16.msra.mxu0 0
  %1373 = vmatprep.subr.bf16.mxu0 0
  %1374 = vmatpush1.bf16.msra.mxu0 0
  %1375 = vmatprep.mubr.bf16.mxu0 0
  %1376 = vmatmul.mubr.bf16.gmra.mrb[0].mxu0 %v1259
  %v1377 = vpop.f32.mrb[0].mxu0
  %v1378 = vadd.f32 0.0, %v1377
  %v1379 = vpop.f32.mrb[0].mxu0
  %v1380 = vadd.f32 0.0, %v1379
  %v1381 = vpop.f32.mrb[0].mxu0
  %v1382 = vpop.f32.mrb[0].mxu0
  %1383 = vdwg.mxu0
  %v1384 = vadd.f32 %v1151, %v1296
  %v1385 = vadd.f32 %v1153, %v1298
  %v1386 = vadd.f32 %v1192, %v1337
  %v1387 = vadd.f32 %v1194, %v1339
  %v1388 = vadd.f32 %v1233, %v1378
  %v1389 = vadd.f32 %v1235, %v1380
  %v1390 = vld [vmem:[%s6] sm:$0xff]
  %1392 = vset.pattern.permute.xlu0 0
  %1393 = vperm.xlu0 %1392, %v1390
  %v1394 = vpop.permute.xlu0 %1393
  %v1396 = vadd.f32 %v1384, %v1394
  %v1397 = vadd.f32 %v1385, %v1394
  %v1398 = vadd.f32 %v1386, %v1394
  %v1399 = vadd.f32 %v1387, %v1394
  %v1400 = vadd.f32 %v1388, %v1394
  %v1401 = vadd.f32 %v1389, %v1394
  %v1402 = vld [vmem:[%s8] sm:$0x7f]
  %v1403 = vunpack.c.l.bf16 %v1402
  %v1404 = vunpack.c.h.bf16 %v1402
  %v1407 = vlaneseq
  %v1408 = vshrl.u32 %v1407, 7
  %v1409 = vsub.s32 0, %v1408
  %v1410 = vrot.slane %v1403, %v1409
  %v1411 = vlaneseq
  %v1412 = vshrl.u32 %v1411, 7
  %v1413 = vsub.s32 2, %v1412
  %v1414 = vrot.slane %v1403, %v1413
  %v1415 = vlaneseq
  %v1416 = vshrl.u32 %v1415, 7
  %v1417 = vsub.s32 4, %v1416
  %v1418 = vrot.slane %v1403, %v1417
  %v1419 = vlaneseq
  %v1420 = vshrl.u32 %v1419, 7
  %v1421 = vsub.s32 6, %v1420
  %v1422 = vrot.slane %v1403, %v1421
  %v1423 = vlaneseq
  %v1424 = vshrl.u32 %v1423, 7
  %v1425 = vsub.s32 0, %v1424
  %v1426 = vrot.slane %v1404, %v1425
  %v1427 = vlaneseq
  %v1428 = vshrl.u32 %v1427, 7
  %v1429 = vsub.s32 2, %v1428
  %v1430 = vrot.slane %v1404, %v1429
  %v1431 = vlaneseq
  %v1432 = vshrl.u32 %v1431, 7
  %v1433 = vsub.s32 4, %v1432
  %v1434 = vrot.slane %v1404, %v1433
  %v1442 = vlaneseq
  %v1443 = vshrl.u32 %v1442, 7
  %v1444 = vsub.s32 0, %v1443
  %v1445 = vrot.slane %v1410, %v1444
  %v1446 = vlaneseq
  %v1447 = vshrl.u32 %v1446, 7
  %v1448 = vsub.s32 0, %v1447
  %v1449 = vrot.slane %v1414, %v1448
  %v1450 = vlaneseq
  %v1451 = vshrl.u32 %v1450, 7
  %v1452 = vsub.s32 0, %v1451
  %v1453 = vrot.slane %v1418, %v1452
  %v1454 = vlaneseq
  %v1455 = vshrl.u32 %v1454, 7
  %v1456 = vsub.s32 0, %v1455
  %v1457 = vrot.slane %v1422, %v1456
  %v1458 = vlaneseq
  %v1459 = vshrl.u32 %v1458, 7
  %v1460 = vsub.s32 0, %v1459
  %v1461 = vrot.slane %v1426, %v1460
  %v1462 = vlaneseq
  %v1463 = vshrl.u32 %v1462, 7
  %v1464 = vsub.s32 0, %v1463
  %v1465 = vrot.slane %v1430, %v1464
  %v1466 = vlaneseq
  %v1467 = vshrl.u32 %v1466, 7
  %v1468 = vsub.s32 0, %v1467
  %v1469 = vrot.slane %v1434, %v1468
  %1477 = vrot.lane.b32.xlu0 %v1445, 109
  %v1478 = vpop.permute.xlu0 %1477
  %1479 = vrot.lane.b32.xlu0 %v1449, 109
  %v1480 = vpop.permute.xlu0 %1479
  %1481 = vrot.lane.b32.xlu0 %v1453, 109
  %v1482 = vpop.permute.xlu0 %1481
  %1483 = vrot.lane.b32.xlu0 %v1457, 109
  %v1484 = vpop.permute.xlu0 %1483
  %1485 = vrot.lane.b32.xlu0 %v1461, 109
  %v1486 = vpop.permute.xlu0 %1485
  %1487 = vrot.lane.b32.xlu0 %v1465, 109
  %v1488 = vpop.permute.xlu0 %1487
  %1489 = vrot.lane.b32.xlu0 %v1469, 109
  %v1490 = vpop.permute.xlu0 %1489
  %v1491 = vsel %vm254, %v1478, %v1480
  %v1492 = vsel %vm254, %v1480, %v1482
  %v1493 = vsel %vm254, %v1482, %v1484
  %v1494 = vsel %vm254, %v1484, %v1486
  %v1495 = vsel %vm254, %v1486, %v1488
  %v1496 = vsel %vm254, %v1488, %v1490
  %v1503 = vmul.f32 %v1396, %v1491
  %v1504 = vmul.f32 %v1397, %v1492
  %v1505 = vmul.f32 %v1398, %v1493
  %v1506 = vmul.f32 %v1399, %v1494
  %v1507 = vmul.f32 %v1400, %v1495
  %v1508 = vmul.f32 %v1401, %v1496
  %1509 = vst [vmem:[%s9] sm:$0xff] %v1503
  %1510 = vst [vmem:[%s9 + $0x8] sm:$0xff] %v1504
  %1511 = vst [vmem:[%s9 + $0x10] sm:$0xff] %v1505
  %1512 = vst [vmem:[%s9 + $0x18] sm:$0xff] %v1506
  %1513 = vst [vmem:[%s9 + $0x20] sm:$0xff] %v1507
  %1514 = vst [vmem:[%s9 + $0x28] sm:$0xff] %v1508
  // Predicated region
  $region38: #{meblock_forward.19} parent=0 // pred_check
    _
  $region39: #{meblock_forward.19} parent=0 // pred_check_branch
    %1516 = sbr.rel (0) target = $region41
  $region40: #{meblock_forward.19} parent=0 // pred_region
    _
  $region41: #{meblock_forward.19} parent=0 // pred_fallthru
    _
  // Predicated region
  $region42: #{meblock_forward.19} parent=0 // pred_check
    _
  $region43: #{meblock_forward.19} parent=0 // pred_check_branch
    %1518 = sbr.rel (0) target = $region45
  $region44: #{meblock_forward.19} parent=0 // pred_region
    _
  $region45: #{meblock_forward.19} parent=0 // pred_fallthru
    _

</llo_original>
